<compile_context>
chip_gen: v5e
topology: v5e:2x2
jax: 0.10.0
libtpu: 0.0.40
codegen_flags: <defaults>
</compile_context>

<pallas_src>
import functools
import math

import numpy as np
import jax
import jax.numpy as jnp
from jax.experimental import pallas as pl
from jax.experimental.pallas import tpu as pltpu


# ----------------------------------------------------------------------------
# Pallas kernel: fused (general|individual) x (3 scales) trilinear sampling
# ----------------------------------------------------------------------------
def _fused_voxel_kernel(xyz_ref, gl_ref, gm_ref, gs_ref,
                        il_ref, im_ref, is_ref, out_ref, *,
                        dims, xyz_min, xyz_max, rows_per_level):
    # xyz_ref : (3, TN)         f32 points, lane-dense
    # g*_ref  : (2C, S_level)   f32 flattened grids (channels on sublanes,
    #                           spatial flattened row-major over (D, H, W))
    # i*_ref  : (S_level, 3)    f32 precomputed (d, h, w) per flattened index
    # out_ref : (6C, TN)        rows = [scale_l(gen|ind), scale_m(..), scale_s(..)]
    xyz = xyz_ref[...].astype(jnp.float32)                    # (3, TN)

    # Normalized coordinates in [0, 1] per axis, shared by all three levels.
    u = [(xyz[a:a + 1, :] - xyz_min[a]) * (1.0 / (xyz_max[a] - xyz_min[a]))
         for a in range(3)]                                    # 3 x (1, TN)

    def level(grid_ref, idx_ref, dhw, row0):
        idx = idx_ref[...]                                     # (S, 3) f32
        wmat = None
        for a in range(3):
            f = u[a] * (dhw[a] - 1.0)        # (1, TN) grid-space coordinate
            sa = idx[:, a:a + 1]             # (S, 1)  float spatial index
            # Tent/hat weight: 1-t at the lower corner, t at the upper corner,
            # 0 elsewhere (and 0 for out-of-range corners -> zeros padding).
            one = jnp.maximum(1.0 - jnp.abs(sa - f), 0.0)      # (S, TN)
            wmat = one if wmat is None else wmat * one

        # (2C, S) @ (S, TN) on the MXU -> (2C, TN); write straight into the
        # 8-sublane-aligned row slice for this scale (no concatenate).
        res = jnp.dot(grid_ref[...], wmat, preferred_element_type=jnp.float32)
        out_ref[row0:row0 + rows_per_level, :] = res

    level(gl_ref, il_ref, dims[0], 0)
    level(gm_ref, im_ref, dims[1], rows_per_level)
    level(gs_ref, is_ref, dims[2], 2 * rows_per_level)


# ----------------------------------------------------------------------------
# Preprocessing (hoist out of the per-forward path; cache per param update)
# ----------------------------------------------------------------------------
def preprocess_voxel_grids(general, individual):
    """Pad, fuse (general|individual) channel-wise, build the 3 scale levels
    and the per-level float (d,h,w) index tables.  Independent of xyz."""
    C = general.shape[1]

    def pad_grid(g_ncdhw):
        _, _, Gx, Gy, Gz = g_ncdhw.shape
        x_pad = math.ceil((Gx - 1) / 4.0) * 4 - Gx + 1
        y_pad = math.ceil((Gy - 1) / 4.0) * 4 - Gy + 1
        z_pad = math.ceil((Gz - 1) / 4.0) * 4 - Gz + 1
        g = jnp.pad(g_ncdhw.astype(jnp.float32),
                    ((0, 0), (0, 0), (0, x_pad), (0, y_pad), (0, z_pad)))
        return g[0]                                            # (C, D, H, W)

    fused = jnp.concatenate([pad_grid(general), pad_grid(individual)], axis=0)

    grids, idx_tabs, dims = [], [], []
    for s in (1, 2, 4):                                        # vox_l, vox_m, vox_s
        sub = fused[:, ::s, ::s, ::s]
        D, H, W = (int(sub.shape[1]), int(sub.shape[2]), int(sub.shape[3]))
        grids.append(sub.reshape(2 * C, D * H * W))
        sidx = np.arange(D * H * W, dtype=np.int64)
        idx_tabs.append(jnp.asarray(
            np.stack([sidx // (H * W), (sidx // W) % H, sidx % W], axis=1),
            dtype=jnp.float32))                                # (S, 3) float
        dims.append((D, H, W))
    return grids, idx_tabs, tuple(dims), C


def _default_tile_n():
    # 128 on v5* (128-wide MXU, single vst slot); 256 fills v6e/v7x MXU.
    try:
        kind = jax.devices()[0].device_kind.lower()
    except Exception:
        return 256
    return 128 if "v5" in kind else 256


# ----------------------------------------------------------------------------
# Sampling path (jit this; pass cached preprocessed grids)
# ----------------------------------------------------------------------------
def voxel_features(xyz, grids, idx_tabs, *, dims, num_channels,
                   xyz_min, xyz_max, tile_n=None):
    """Returns (general_feat, individual_feat), each (*xyz.shape[:-1], 3*C)."""
    if tile_n is None:
        tile_n = _default_tile_n()
    lead = xyz.shape[:-1]
    xyz_flat = xyz.reshape(-1, 3).astype(jnp.float32)
    N = xyz_flat.shape[0]
    C = num_channels
    c2 = 2 * C

    n_pad = (-N) % tile_n
    Np = N + n_pad
    xyz_t = jnp.pad(xyz_flat, ((0, n_pad), (0, 0))).T          # (3, Np)

    kernel = functools.partial(
        _fused_voxel_kernel,
        dims=tuple(tuple(int(v) for v in d) for d in dims),
        xyz_min=tuple(float(v) for v in xyz_min),
        xyz_max=tuple(float(v) for v in xyz_max),
        rows_per_level=c2)

    # Grid-invariant resident operands (constant index_map -> DMA'd once).
    # TODO(synk): at production resolutions single-buffer these
    # (pipeline_mode=pl.Buffered(1)) and add a blocked-S accumulation axis.
    grid_specs = [pl.BlockSpec(g.shape, lambda i: (0, 0)) for g in grids]
    idx_specs = [pl.BlockSpec(t.shape, lambda i: (0, 0)) for t in idx_tabs]

    out = pl.pallas_call(
        kernel,
        out_shape=jax.ShapeDtypeStruct((3 * c2, Np), jnp.float32),
        grid=(pl.cdiv(Np, tile_n),),
        in_specs=[pl.BlockSpec((3, tile_n), lambda i: (0, i))]
                 + grid_specs + idx_specs,
        out_specs=pl.BlockSpec((3 * c2, tile_n), lambda i: (0, i)),
        compiler_params=pltpu.CompilerParams(
            dimension_semantics=("parallel",)),
    )(xyz_t, *grids, *idx_tabs)

    # Row layout: [level, {gen, ind}, channel]; restore torch concat order
    # (vox_l, vox_m, vox_s) per grid with one reshape + transpose each.
    feats = out[:, :N].reshape(3, 2, C, N)
    gen = feats[:, 0].transpose(2, 0, 1).reshape(N, 3 * C)
    ind = feats[:, 1].transpose(2, 0, 1).reshape(N, 3 * C)
    return gen.reshape(*lead, 3 * C), ind.reshape(*lead, 3 * C)


def voxel_model_forward(xyz, general, individual, xyz_min, xyz_max, *,
                        tile_n=None):
    """Convenience wrapper matching the torch module's forward signature."""
    grids, idx_tabs, dims, C = preprocess_voxel_grids(general, individual)
    return voxel_features(xyz, tuple(grids), tuple(idx_tabs), dims=dims,
                          num_channels=C,
                          xyz_min=tuple(float(v) for v in xyz_min),
                          xyz_max=tuple(float(v) for v in xyz_max),
                          tile_n=tile_n)


# ----------------------------------------------------------------------------
# Pure-JAX reference (explicit gather) for validation
# ----------------------------------------------------------------------------
def _ref_trilinear(xyz, grid_dhwc, xyz_min, xyz_max):
    D, H, W, C = grid_dhwc.shape
    sizes = jnp.array([D, H, W], jnp.float32)
    frac = (xyz - jnp.asarray(xyz_min)) / (jnp.asarray(xyz_max) - jnp.asarray(xyz_min))
    f = frac * (sizes - 1.0)
    i0 = jnp.floor(f).astype(jnp.int32)
    t = f - i0
    out = jnp.zeros((xyz.shape[0], C), jnp.float32)
    for dd in (0, 1):
        for hh in (0, 1):
            for ww in (0, 1):
                idx = i0 + jnp.array([dd, hh, ww], jnp.int32)
                wgt = ((t[:, 0] if dd else 1 - t[:, 0]) *
                       (t[:, 1] if hh else 1 - t[:, 1]) *
                       (t[:, 2] if ww else 1 - t[:, 2]))
                valid = jnp.all((idx >= 0) & (idx < jnp.array([D, H, W])), -1)
                di = jnp.clip(idx[:, 0], 0, D - 1)
                hi = jnp.clip(idx[:, 1], 0, H - 1)
                wi = jnp.clip(idx[:, 2], 0, W - 1)
                vals = grid_dhwc[di, hi, wi]
                out = out + (wgt * valid)[:, None] * vals
    return out


def _ref_mult_dist_interp(xyz_flat, grid_ncdhw, xyz_min, xyz_max):
    _, C, Gx, Gy, Gz = grid_ncdhw.shape
    x_pad = math.ceil((Gx - 1) / 4.0) * 4 - Gx + 1
    y_pad = math.ceil((Gy - 1) / 4.0) * 4 - Gy + 1
    z_pad = math.ceil((Gz - 1) / 4.0) * 4 - Gz + 1
    g = jnp.pad(grid_ncdhw.astype(jnp.float32),
                ((0, 0), (0, 0), (0, x_pad), (0, y_pad), (0, z_pad)))
    g_dhwc = jnp.transpose(g[0], (1, 2, 3, 0))
    feats = [_ref_trilinear(xyz_flat, g_dhwc[::s, ::s, ::s, :], xyz_min, xyz_max)
             for s in (1, 2, 4)]
    return jnp.concatenate(feats, -1)


# ----------------------------------------------------------------------------
if __name__ == "__main__":
    # Module config (small): num_voxels=8 -> num_voxels**3 = 512 total voxels.
    xyz_min = np.array([-1.5, -1.5, -1.5], np.float32)
    xyz_max = np.array([1.5, 1.5, 1.5], np.float32)
    k0_dim = 4
    num_voxels = 8 ** 3  # module does num_voxels ** 3 internally

    # _set_grid_resolution (torch .long() truncation; +eps guards fp cube-root
    # jitter — for this config world_size == [8, 8, 8] as in the torch module).
    voxel_size = float((xyz_max - xyz_min).prod() / num_voxels) ** (1.0 / 3.0)
    world_size = np.floor((xyz_max - xyz_min) / voxel_size + 1e-6).astype(np.int64)
    Gx, Gy, Gz = [int(v) for v in world_size]

    # Parameters: module inits them to zeros; use small deterministic random
    # values instead so the test is non-trivial (synthetic, no checkpoint).
    key = jax.random.PRNGKey(0)
    kg, ki, kx = jax.random.split(key, 3)
    general = 0.1 * jax.random.normal(kg, (1, k0_dim, Gx, Gy, Gz), jnp.float32)
    individual = 0.1 * jax.random.normal(ki, (1, k0_dim, Gx, Gy, Gz), jnp.float32)

    # Query points, mostly inside the box with a few outside (tests zeros pad).
    N = 128
    xyz = jax.random.uniform(kx, (N, 3), jnp.float32, minval=-1.6, maxval=1.6)

    # Preprocess once (cacheable per parameter update), jit only the sampler.
    grids, idx_tabs, dims, C = preprocess_voxel_grids(general, individual)
    fwd = jax.jit(functools.partial(
        voxel_features, dims=dims, num_channels=C,
        xyz_min=tuple(float(v) for v in xyz_min),
        xyz_max=tuple(float(v) for v in xyz_max)))
    gen, ind = fwd(xyz, tuple(grids), tuple(idx_tabs))
    jax.block_until_ready((gen, ind))

    # Validate against pure-JAX gather reference.
    gen_ref = _ref_mult_dist_interp(xyz, general, xyz_min, xyz_max)
    ind_ref = _ref_mult_dist_interp(xyz, individual, xyz_min, xyz_max)
    assert gen.shape == (N, 3 * k0_dim) and ind.shape == (N, 3 * k0_dim)
    np.testing.assert_allclose(np.asarray(gen), np.asarray(gen_ref),
                               rtol=1e-4, atol=1e-5)
    np.testing.assert_allclose(np.asarray(ind), np.asarray(ind_ref),
                               rtol=1e-4, atol=1e-5)

    print("KERNEL_OK")
</pallas_src>

<mosaic_0001>
module attributes {stable_mosaic.version = 11 : i64} {
  func.func @_fused_voxel_kernel(%arg0: i32, %arg1: memref<3x256xf32, #tpu.memory_space<vmem>>, %arg2: memref<8x729xf32, #tpu.memory_space<vmem>>, %arg3: memref<8x125xf32, #tpu.memory_space<vmem>>, %arg4: memref<8x27xf32, #tpu.memory_space<vmem>>, %arg5: memref<729x3xf32, #tpu.memory_space<vmem>>, %arg6: memref<125x3xf32, #tpu.memory_space<vmem>>, %arg7: memref<27x3xf32, #tpu.memory_space<vmem>>, %arg8: memref<24x256xf32, #tpu.memory_space<vmem>>) attributes {dimension_semantics = [#tpu.dimension_semantics<parallel>], iteration_bounds = array<i64: 1>, scalar_prefetch = 0 : i64, scratch_operands = 0 : i64, tpu.core_type = #tpu.core_type<tc>, window_params = [{transform_indices = @transform_0, window_bounds = array<i64: 3, 256>}, {pipeline_mode = #tpu.pipeline_mode<synchronous>, transform_indices = @transform_1, window_bounds = array<i64: 8, 729>}, {pipeline_mode = #tpu.pipeline_mode<synchronous>, transform_indices = @transform_2, window_bounds = array<i64: 8, 125>}, {pipeline_mode = #tpu.pipeline_mode<synchronous>, transform_indices = @transform_3, window_bounds = array<i64: 8, 27>}, {pipeline_mode = #tpu.pipeline_mode<synchronous>, transform_indices = @transform_4, window_bounds = array<i64: 729, 3>}, {pipeline_mode = #tpu.pipeline_mode<synchronous>, transform_indices = @transform_5, window_bounds = array<i64: 125, 3>}, {pipeline_mode = #tpu.pipeline_mode<synchronous>, transform_indices = @transform_6, window_bounds = array<i64: 27, 3>}, {transform_indices = @transform_7, window_bounds = array<i64: 24, 256>}]} {
    %c0 = arith.constant 0 : index
    %c0_0 = arith.constant 0 : index
    %0 = vector.load %arg1[%c0, %c0_0] : memref<3x256xf32, #tpu.memory_space<vmem>>, vector<3x256xf32>
    %1 = vector.extract_strided_slice %0 {offsets = [0, 0], sizes = [1, 256], strides = [1, 1]} : vector<3x256xf32> to vector<1x256xf32>
    %cst = arith.constant -1.500000e+00 : f32
    %2 = vector.broadcast %cst : f32 to vector<1x256xf32>
    %3 = arith.subf %1, %2 : vector<1x256xf32>
    %cst_1 = arith.constant 0.333333343 : f32
    %4 = vector.broadcast %cst_1 : f32 to vector<1x256xf32>
    %5 = arith.mulf %3, %4 : vector<1x256xf32>
    %6 = vector.extract_strided_slice %0 {offsets = [1, 0], sizes = [1, 256], strides = [1, 1]} : vector<3x256xf32> to vector<1x256xf32>
    %cst_2 = arith.constant -1.500000e+00 : f32
    %7 = vector.broadcast %cst_2 : f32 to vector<1x256xf32>
    %8 = arith.subf %6, %7 : vector<1x256xf32>
    %cst_3 = arith.constant 0.333333343 : f32
    %9 = vector.broadcast %cst_3 : f32 to vector<1x256xf32>
    %10 = arith.mulf %8, %9 : vector<1x256xf32>
    %11 = vector.extract_strided_slice %0 {offsets = [2, 0], sizes = [1, 256], strides = [1, 1]} : vector<3x256xf32> to vector<1x256xf32>
    %cst_4 = arith.constant -1.500000e+00 : f32
    %12 = vector.broadcast %cst_4 : f32 to vector<1x256xf32>
    %13 = arith.subf %11, %12 : vector<1x256xf32>
    %cst_5 = arith.constant 0.333333343 : f32
    %14 = vector.broadcast %cst_5 : f32 to vector<1x256xf32>
    %15 = arith.mulf %13, %14 : vector<1x256xf32>
    %c0_6 = arith.constant 0 : index
    %c0_7 = arith.constant 0 : index
    %16 = vector.load %arg5[%c0_6, %c0_7] : memref<729x3xf32, #tpu.memory_space<vmem>>, vector<729x3xf32>
    %cst_8 = arith.constant 8.000000e+00 : f32
    %17 = vector.broadcast %cst_8 : f32 to vector<1x256xf32>
    %18 = arith.mulf %5, %17 : vector<1x256xf32>
    %19 = vector.extract_strided_slice %16 {offsets = [0, 0], sizes = [729, 1], strides = [1, 1]} : vector<729x3xf32> to vector<729x1xf32>
    %20 = vector.broadcast %19 : vector<729x1xf32> to vector<729x256xf32>
    %21 = vector.broadcast %18 : vector<1x256xf32> to vector<729x256xf32>
    %22 = arith.subf %20, %21 : vector<729x256xf32>
    %23 = math.absf %22 : vector<729x256xf32>
    %cst_9 = arith.constant 1.000000e+00 : f32
    %24 = vector.broadcast %cst_9 : f32 to vector<729x256xf32>
    %25 = arith.subf %24, %23 : vector<729x256xf32>
    %cst_10 = arith.constant 0.000000e+00 : f32
    %26 = vector.broadcast %cst_10 : f32 to vector<729x256xf32>
    %27 = arith.maximumf %25, %26 : vector<729x256xf32>
    %cst_11 = arith.constant 8.000000e+00 : f32
    %28 = vector.broadcast %cst_11 : f32 to vector<1x256xf32>
    %29 = arith.mulf %10, %28 : vector<1x256xf32>
    %30 = vector.extract_strided_slice %16 {offsets = [0, 1], sizes = [729, 1], strides = [1, 1]} : vector<729x3xf32> to vector<729x1xf32>
    %31 = vector.broadcast %30 : vector<729x1xf32> to vector<729x256xf32>
    %32 = vector.broadcast %29 : vector<1x256xf32> to vector<729x256xf32>
    %33 = arith.subf %31, %32 : vector<729x256xf32>
    %34 = math.absf %33 : vector<729x256xf32>
    %cst_12 = arith.constant 1.000000e+00 : f32
    %35 = vector.broadcast %cst_12 : f32 to vector<729x256xf32>
    %36 = arith.subf %35, %34 : vector<729x256xf32>
    %cst_13 = arith.constant 0.000000e+00 : f32
    %37 = vector.broadcast %cst_13 : f32 to vector<729x256xf32>
    %38 = arith.maximumf %36, %37 : vector<729x256xf32>
    %39 = arith.mulf %27, %38 : vector<729x256xf32>
    %cst_14 = arith.constant 8.000000e+00 : f32
    %40 = vector.broadcast %cst_14 : f32 to vector<1x256xf32>
    %41 = arith.mulf %15, %40 : vector<1x256xf32>
    %42 = vector.extract_strided_slice %16 {offsets = [0, 2], sizes = [729, 1], strides = [1, 1]} : vector<729x3xf32> to vector<729x1xf32>
    %43 = vector.broadcast %42 : vector<729x1xf32> to vector<729x256xf32>
    %44 = vector.broadcast %41 : vector<1x256xf32> to vector<729x256xf32>
    %45 = arith.subf %43, %44 : vector<729x256xf32>
    %46 = math.absf %45 : vector<729x256xf32>
    %cst_15 = arith.constant 1.000000e+00 : f32
    %47 = vector.broadcast %cst_15 : f32 to vector<729x256xf32>
    %48 = arith.subf %47, %46 : vector<729x256xf32>
    %cst_16 = arith.constant 0.000000e+00 : f32
    %49 = vector.broadcast %cst_16 : f32 to vector<729x256xf32>
    %50 = arith.maximumf %48, %49 : vector<729x256xf32>
    %51 = arith.mulf %39, %50 : vector<729x256xf32>
    %c0_17 = arith.constant 0 : index
    %c0_18 = arith.constant 0 : index
    %52 = vector.load %arg2[%c0_17, %c0_18] : memref<8x729xf32, #tpu.memory_space<vmem>>, vector<8x729xf32>
    %cst_19 = arith.constant dense<0.000000e+00> : vector<8x256xf32>
    %53 = tpu.matmul %52, %51, %cst_19 {dimension_numbers = #tpu.dot_dimension_numbers<[1], [0], [0], [1], [0, 0, 1, 1], [], []>} : vector<8x729xf32>, vector<729x256xf32>, vector<8x256xf32> -> vector<8x256xf32>
    %c0_20 = arith.constant 0 : index
    %c0_21 = arith.constant 0 : index
    %54 = vector.load %arg8[%c0_20, %c0_21] : memref<24x256xf32, #tpu.memory_space<vmem>>, vector<8x256xf32>
    tpu.vector_store %arg8[%c0_20, %c0_21], %53 {strides = array<i32>} : memref<24x256xf32, #tpu.memory_space<vmem>>, vector<8x256xf32>,
    %c0_22 = arith.constant 0 : index
    %c0_23 = arith.constant 0 : index
    %55 = vector.load %arg6[%c0_22, %c0_23] : memref<125x3xf32, #tpu.memory_space<vmem>>, vector<125x3xf32>
    %cst_24 = arith.constant 4.000000e+00 : f32
    %56 = vector.broadcast %cst_24 : f32 to vector<1x256xf32>
    %57 = arith.mulf %5, %56 : vector<1x256xf32>
    %58 = vector.extract_strided_slice %55 {offsets = [0, 0], sizes = [125, 1], strides = [1, 1]} : vector<125x3xf32> to vector<125x1xf32>
    %59 = vector.broadcast %58 : vector<125x1xf32> to vector<125x256xf32>
    %60 = vector.broadcast %57 : vector<1x256xf32> to vector<125x256xf32>
    %61 = arith.subf %59, %60 : vector<125x256xf32>
    %62 = math.absf %61 : vector<125x256xf32>
    %cst_25 = arith.constant 1.000000e+00 : f32
    %63 = vector.broadcast %cst_25 : f32 to vector<125x256xf32>
    %64 = arith.subf %63, %62 : vector<125x256xf32>
    %cst_26 = arith.constant 0.000000e+00 : f32
    %65 = vector.broadcast %cst_26 : f32 to vector<125x256xf32>
    %66 = arith.maximumf %64, %65 : vector<125x256xf32>
    %cst_27 = arith.constant 4.000000e+00 : f32
    %67 = vector.broadcast %cst_27 : f32 to vector<1x256xf32>
    %68 = arith.mulf %10, %67 : vector<1x256xf32>
    %69 = vector.extract_strided_slice %55 {offsets = [0, 1], sizes = [125, 1], strides = [1, 1]} : vector<125x3xf32> to vector<125x1xf32>
    %70 = vector.broadcast %69 : vector<125x1xf32> to vector<125x256xf32>
    %71 = vector.broadcast %68 : vector<1x256xf32> to vector<125x256xf32>
    %72 = arith.subf %70, %71 : vector<125x256xf32>
    %73 = math.absf %72 : vector<125x256xf32>
    %cst_28 = arith.constant 1.000000e+00 : f32
    %74 = vector.broadcast %cst_28 : f32 to vector<125x256xf32>
    %75 = arith.subf %74, %73 : vector<125x256xf32>
    %cst_29 = arith.constant 0.000000e+00 : f32
    %76 = vector.broadcast %cst_29 : f32 to vector<125x256xf32>
    %77 = arith.maximumf %75, %76 : vector<125x256xf32>
    %78 = arith.mulf %66, %77 : vector<125x256xf32>
    %cst_30 = arith.constant 4.000000e+00 : f32
    %79 = vector.broadcast %cst_30 : f32 to vector<1x256xf32>
    %80 = arith.mulf %15, %79 : vector<1x256xf32>
    %81 = vector.extract_strided_slice %55 {offsets = [0, 2], sizes = [125, 1], strides = [1, 1]} : vector<125x3xf32> to vector<125x1xf32>
    %82 = vector.broadcast %81 : vector<125x1xf32> to vector<125x256xf32>
    %83 = vector.broadcast %80 : vector<1x256xf32> to vector<125x256xf32>
    %84 = arith.subf %82, %83 : vector<125x256xf32>
    %85 = math.absf %84 : vector<125x256xf32>
    %cst_31 = arith.constant 1.000000e+00 : f32
    %86 = vector.broadcast %cst_31 : f32 to vector<125x256xf32>
    %87 = arith.subf %86, %85 : vector<125x256xf32>
    %cst_32 = arith.constant 0.000000e+00 : f32
    %88 = vector.broadcast %cst_32 : f32 to vector<125x256xf32>
    %89 = arith.maximumf %87, %88 : vector<125x256xf32>
    %90 = arith.mulf %78, %89 : vector<125x256xf32>
    %c0_33 = arith.constant 0 : index
    %c0_34 = arith.constant 0 : index
    %91 = vector.load %arg3[%c0_33, %c0_34] : memref<8x125xf32, #tpu.memory_space<vmem>>, vector<8x125xf32>
    %cst_35 = arith.constant dense<0.000000e+00> : vector<8x256xf32>
    %92 = tpu.matmul %91, %90, %cst_35 {dimension_numbers = #tpu.dot_dimension_numbers<[1], [0], [0], [1], [0, 0, 1, 1], [], []>} : vector<8x125xf32>, vector<125x256xf32>, vector<8x256xf32> -> vector<8x256xf32>
    %c8 = arith.constant 8 : index
    %c0_36 = arith.constant 0 : index
    %93 = vector.load %arg8[%c8, %c0_36] : memref<24x256xf32, #tpu.memory_space<vmem>>, vector<8x256xf32>
    tpu.vector_store %arg8[%c8, %c0_36], %92 {strides = array<i32>} : memref<24x256xf32, #tpu.memory_space<vmem>>, vector<8x256xf32>,
    %c0_37 = arith.constant 0 : index
    %c0_38 = arith.constant 0 : index
    %94 = vector.load %arg7[%c0_37, %c0_38] : memref<27x3xf32, #tpu.memory_space<vmem>>, vector<27x3xf32>
    %cst_39 = arith.constant 2.000000e+00 : f32
    %95 = vector.broadcast %cst_39 : f32 to vector<1x256xf32>
    %96 = arith.mulf %5, %95 : vector<1x256xf32>
    %97 = vector.extract_strided_slice %94 {offsets = [0, 0], sizes = [27, 1], strides = [1, 1]} : vector<27x3xf32> to vector<27x1xf32>
    %98 = vector.broadcast %97 : vector<27x1xf32> to vector<27x256xf32>
    %99 = vector.broadcast %96 : vector<1x256xf32> to vector<27x256xf32>
    %100 = arith.subf %98, %99 : vector<27x256xf32>
    %101 = math.absf %100 : vector<27x256xf32>
    %cst_40 = arith.constant 1.000000e+00 : f32
    %102 = vector.broadcast %cst_40 : f32 to vector<27x256xf32>
    %103 = arith.subf %102, %101 : vector<27x256xf32>
    %cst_41 = arith.constant 0.000000e+00 : f32
    %104 = vector.broadcast %cst_41 : f32 to vector<27x256xf32>
    %105 = arith.maximumf %103, %104 : vector<27x256xf32>
    %cst_42 = arith.constant 2.000000e+00 : f32
    %106 = vector.broadcast %cst_42 : f32 to vector<1x256xf32>
    %107 = arith.mulf %10, %106 : vector<1x256xf32>
    %108 = vector.extract_strided_slice %94 {offsets = [0, 1], sizes = [27, 1], strides = [1, 1]} : vector<27x3xf32> to vector<27x1xf32>
    %109 = vector.broadcast %108 : vector<27x1xf32> to vector<27x256xf32>
    %110 = vector.broadcast %107 : vector<1x256xf32> to vector<27x256xf32>
    %111 = arith.subf %109, %110 : vector<27x256xf32>
    %112 = math.absf %111 : vector<27x256xf32>
    %cst_43 = arith.constant 1.000000e+00 : f32
    %113 = vector.broadcast %cst_43 : f32 to vector<27x256xf32>
    %114 = arith.subf %113, %112 : vector<27x256xf32>
    %cst_44 = arith.constant 0.000000e+00 : f32
    %115 = vector.broadcast %cst_44 : f32 to vector<27x256xf32>
    %116 = arith.maximumf %114, %115 : vector<27x256xf32>
    %117 = arith.mulf %105, %116 : vector<27x256xf32>
    %cst_45 = arith.constant 2.000000e+00 : f32
    %118 = vector.broadcast %cst_45 : f32 to vector<1x256xf32>
    %119 = arith.mulf %15, %118 : vector<1x256xf32>
    %120 = vector.extract_strided_slice %94 {offsets = [0, 2], sizes = [27, 1], strides = [1, 1]} : vector<27x3xf32> to vector<27x1xf32>
    %121 = vector.broadcast %120 : vector<27x1xf32> to vector<27x256xf32>
    %122 = vector.broadcast %119 : vector<1x256xf32> to vector<27x256xf32>
    %123 = arith.subf %121, %122 : vector<27x256xf32>
    %124 = math.absf %123 : vector<27x256xf32>
    %cst_46 = arith.constant 1.000000e+00 : f32
    %125 = vector.broadcast %cst_46 : f32 to vector<27x256xf32>
    %126 = arith.subf %125, %124 : vector<27x256xf32>
    %cst_47 = arith.constant 0.000000e+00 : f32
    %127 = vector.broadcast %cst_47 : f32 to vector<27x256xf32>
    %128 = arith.maximumf %126, %127 : vector<27x256xf32>
    %129 = arith.mulf %117, %128 : vector<27x256xf32>
    %c0_48 = arith.constant 0 : index
    %c0_49 = arith.constant 0 : index
    %130 = vector.load %arg4[%c0_48, %c0_49] : memref<8x27xf32, #tpu.memory_space<vmem>>, vector<8x27xf32>
    %cst_50 = arith.constant dense<0.000000e+00> : vector<8x256xf32>
    %131 = tpu.matmul %130, %129, %cst_50 {dimension_numbers = #tpu.dot_dimension_numbers<[1], [0], [0], [1], [0, 0, 1, 1], [], []>} : vector<8x27xf32>, vector<27x256xf32>, vector<8x256xf32> -> vector<8x256xf32>
    %c16 = arith.constant 16 : index
    %c0_51 = arith.constant 0 : index
    %132 = vector.load %arg8[%c16, %c0_51] : memref<24x256xf32, #tpu.memory_space<vmem>>, vector<8x256xf32>
    tpu.vector_store %arg8[%c16, %c0_51], %131 {strides = array<i32>} : memref<24x256xf32, #tpu.memory_space<vmem>>, vector<8x256xf32>,
    return
  }
  func.func @transform_0(%arg0: i32) -> (i32, i32) {
    %c0_i32 = arith.constant 0 : i32
    %c0_i32_0 = arith.constant 0 : i32
    return %c0_i32, %arg0 : i32, i32
  }
  func.func @transform_1(%arg0: i32) -> (i32, i32) {
    %c0_i32 = arith.constant 0 : i32
    %c0_i32_0 = arith.constant 0 : i32
    %c0_i32_1 = arith.constant 0 : i32
    return %c0_i32, %c0_i32_0 : i32, i32
  }
  func.func @transform_2(%arg0: i32) -> (i32, i32) {
    %c0_i32 = arith.constant 0 : i32
    %c0_i32_0 = arith.constant 0 : i32
    %c0_i32_1 = arith.constant 0 : i32
    return %c0_i32, %c0_i32_0 : i32, i32
  }
  func.func @transform_3(%arg0: i32) -> (i32, i32) {
    %c0_i32 = arith.constant 0 : i32
    %c0_i32_0 = arith.constant 0 : i32
    %c0_i32_1 = arith.constant 0 : i32
    return %c0_i32, %c0_i32_0 : i32, i32
  }
  func.func @transform_4(%arg0: i32) -> (i32, i32) {
    %c0_i32 = arith.constant 0 : i32
    %c0_i32_0 = arith.constant 0 : i32
    %c0_i32_1 = arith.constant 0 : i32
    return %c0_i32, %c0_i32_0 : i32, i32
  }
  func.func @transform_5(%arg0: i32) -> (i32, i32) {
    %c0_i32 = arith.constant 0 : i32
    %c0_i32_0 = arith.constant 0 : i32
    %c0_i32_1 = arith.constant 0 : i32
    return %c0_i32, %c0_i32_0 : i32, i32
  }
  func.func @transform_6(%arg0: i32) -> (i32, i32) {
    %c0_i32 = arith.constant 0 : i32
    %c0_i32_0 = arith.constant 0 : i32
    %c0_i32_1 = arith.constant 0 : i32
    return %c0_i32, %c0_i32_0 : i32, i32
  }
  func.func @transform_7(%arg0: i32) -> (i32, i32) {
    %c0_i32 = arith.constant 0 : i32
    %c0_i32_0 = arith.constant 0 : i32
    return %c0_i32, %arg0 : i32, i32
  }
}

</mosaic_0001>

<llo_original>
// kernel: voxel_features.1
$region0: #{voxel_features.1}
  #allocation0 [shape = 'u32[]', space=smem, size = 0x4, offset = 0x4, fixed_abs, tag = 'smem constant byte address 0x4 - core index']
  #allocation1 [shape = 'u32[72,128]{1,0:T(1,128)}', space=vmem, size = 0x9000, scoped, tag = 'internal scratch']
  %s0 = inlined_call_operand.vmem [shape: f32[3,256], index: 0, kind: input, shape index: {}]
  %s1 = inlined_call_operand.vmem [shape: f32[8,729], index: 1, kind: input, shape index: {}]
  %s2 = inlined_call_operand.vmem [shape: f32[8,125], index: 2, kind: input, shape index: {}]
  %s3 = inlined_call_operand.vmem [shape: f32[8,27], index: 3, kind: input, shape index: {}]
  %s4 = inlined_call_operand.vmem [shape: f32[729,3], index: 4, kind: input, shape index: {}]
  %s5 = inlined_call_operand.vmem [shape: f32[125,3], index: 5, kind: input, shape index: {}]
  %s6 = inlined_call_operand.vmem [shape: f32[27,3], index: 6, kind: input, shape index: {}]
  %s7 = inlined_call_operand.vmem [shape: f32[24,256], index: 7, kind: output, shape index: {}]
  %s8 = sld [smem:[#allocation0]]
  $region38: #{voxel_features.1} parent=0
    _
  %s10 = ssub.s32 1, %s8
  %s11 = scalar_select 0, %s10, %s8
  // Predicated region
  $region2: #{voxel_features.1} parent=0 // pred_check
    _
  $region3: #{voxel_features.1} parent=0 // pred_check_branch
    %13 = sbr.rel (0) target = $region5
  $region4: #{voxel_features.1} parent=0 // pred_region
    _
  $region5: #{voxel_features.1} parent=0 // pred_fallthru
    _
  // Predicated region
  $region6: #{voxel_features.1} parent=0 // pred_check
    _
  $region7: #{voxel_features.1} parent=0 // pred_check_branch
    %15 = sbr.rel (0) target = $region9
  $region8: #{voxel_features.1} parent=0 // pred_region
    _
  $region9: #{voxel_features.1} parent=0 // pred_fallthru
    _
  // Predicated region
  $region10: #{voxel_features.1} parent=0 // pred_check
    _
  $region11: #{voxel_features.1} parent=0 // pred_check_branch
    %17 = sbr.rel (0) target = $region13
  $region12: #{voxel_features.1} parent=0 // pred_region
    _
  $region13: #{voxel_features.1} parent=0 // pred_fallthru
    _
  // Predicated region
  $region14: #{voxel_features.1} parent=0 // pred_check
    _
  $region15: #{voxel_features.1} parent=0 // pred_check_branch
    %19 = sbr.rel (0) target = $region17
  $region16: #{voxel_features.1} parent=0 // pred_region
    _
  $region17: #{voxel_features.1} parent=0 // pred_fallthru
    _
  // Predicated region
  $region18: #{voxel_features.1} parent=0 // pred_check
    _
  $region19: #{voxel_features.1} parent=0 // pred_check_branch
    %21 = sbr.rel (0) target = $region21
  $region20: #{voxel_features.1} parent=0 // pred_region
    _
  $region21: #{voxel_features.1} parent=0 // pred_fallthru
    _
  // Predicated region
  $region22: #{voxel_features.1} parent=0 // pred_check
    _
  $region23: #{voxel_features.1} parent=0 // pred_check_branch
    %23 = sbr.rel (0) target = $region25
  $region24: #{voxel_features.1} parent=0 // pred_region
    _
  $region25: #{voxel_features.1} parent=0 // pred_fallthru
    _
  // Predicated region
  $region26: #{voxel_features.1} parent=0 // pred_check
    _
  $region27: #{voxel_features.1} parent=0 // pred_check_branch
    %25 = sbr.rel (0) target = $region29
  $region28: #{voxel_features.1} parent=0 // pred_region
    _
  $region29: #{voxel_features.1} parent=0 // pred_fallthru
    _
  %v26 = vld [vmem:[%s0] sm:$0x77]
  %v27 = vsub.f32 %v26, -1.5
  %v28 = vmul.f32 %v27, 0.33333334
  %v29 = vld [vmem:[%s4] sm:$0xff]
  %v30 = vld [vmem:[%s4 + $0x8] sm:$0xff]
  %v31 = vld [vmem:[%s4 + $0x10] sm:$0xff]
  %v32 = vld [vmem:[%s4 + $0x18] sm:$0xff]
  %v33 = vld [vmem:[%s4 + $0x20] sm:$0xff]
  %v34 = vld [vmem:[%s4 + $0x28] sm:$0xff]
  %v35 = vld [vmem:[%s4 + $0x30] sm:$0xff]
  %v36 = vld [vmem:[%s4 + $0x38] sm:$0xff]
  %v37 = vld [vmem:[%s4 + $0x40] sm:$0xff]
  %v38 = vld [vmem:[%s4 + $0x48] sm:$0xff]
  %v39 = vld [vmem:[%s4 + $0x50] sm:$0xff]
  %v40 = vld [vmem:[%s4 + $0x58] sm:$0xff]
  %v41 = vld [vmem:[%s4 + $0x60] sm:$0xff]
  %v42 = vld [vmem:[%s4 + $0x68] sm:$0xff]
  %v43 = vld [vmem:[%s4 + $0x70] sm:$0xff]
  %v44 = vld [vmem:[%s4 + $0x78] sm:$0xff]
  %v45 = vld [vmem:[%s4 + $0x80] sm:$0xff]
  %v46 = vld [vmem:[%s4 + $0x88] sm:$0xff]
  %v47 = vld [vmem:[%s4 + $0x90] sm:$0xff]
  %v48 = vld [vmem:[%s4 + $0x98] sm:$0xff]
  %v49 = vld [vmem:[%s4 + $0xa0] sm:$0xff]
  %v50 = vld [vmem:[%s4 + $0xa8] sm:$0xff]
  %v51 = vld [vmem:[%s4 + $0xb0] sm:$0xff]
  %v52 = vld [vmem:[%s4 + $0xb8] sm:$0xff]
  %v53 = vld [vmem:[%s4 + $0xc0] sm:$0xff]
  %v54 = vld [vmem:[%s4 + $0xc8] sm:$0xff]
  %v55 = vld [vmem:[%s4 + $0xd0] sm:$0xff]
  %v56 = vld [vmem:[%s4 + $0xd8] sm:$0xff]
  %v57 = vld [vmem:[%s4 + $0xe0] sm:$0xff]
  %v58 = vld [vmem:[%s4 + $0xe8] sm:$0xff]
  %v59 = vld [vmem:[%s4 + $0xf0] sm:$0xff]
  %v60 = vld [vmem:[%s4 + $0xf8] sm:$0xff]
  %v61 = vld [vmem:[%s4 + $0x100] sm:$0xff]
  %v62 = vld [vmem:[%s4 + $0x108] sm:$0xff]
  %v63 = vld [vmem:[%s4 + $0x110] sm:$0xff]
  %v64 = vld [vmem:[%s4 + $0x118] sm:$0xff]
  %v65 = vld [vmem:[%s4 + $0x120] sm:$0xff]
  %v66 = vld [vmem:[%s4 + $0x128] sm:$0xff]
  %v67 = vld [vmem:[%s4 + $0x130] sm:$0xff]
  %v68 = vld [vmem:[%s4 + $0x138] sm:$0xff]
  %v69 = vld [vmem:[%s4 + $0x140] sm:$0xff]
  %v70 = vld [vmem:[%s4 + $0x148] sm:$0xff]
  %v71 = vld [vmem:[%s4 + $0x150] sm:$0xff]
  %v72 = vld [vmem:[%s4 + $0x158] sm:$0xff]
  %v73 = vld [vmem:[%s4 + $0x160] sm:$0xff]
  %v74 = vld [vmem:[%s4 + $0x168] sm:$0xff]
  %v75 = vld [vmem:[%s4 + $0x170] sm:$0xff]
  %v76 = vld [vmem:[%s4 + $0x178] sm:$0xff]
  %v77 = vld [vmem:[%s4 + $0x180] sm:$0xff]
  %v78 = vld [vmem:[%s4 + $0x188] sm:$0xff]
  %v79 = vld [vmem:[%s4 + $0x190] sm:$0xff]
  %v80 = vld [vmem:[%s4 + $0x198] sm:$0xff]
  %v81 = vld [vmem:[%s4 + $0x1a0] sm:$0xff]
  %v82 = vld [vmem:[%s4 + $0x1a8] sm:$0xff]
  %v83 = vld [vmem:[%s4 + $0x1b0] sm:$0xff]
  %v84 = vld [vmem:[%s4 + $0x1b8] sm:$0xff]
  %v85 = vld [vmem:[%s4 + $0x1c0] sm:$0xff]
  %v86 = vld [vmem:[%s4 + $0x1c8] sm:$0xff]
  %v87 = vld [vmem:[%s4 + $0x1d0] sm:$0xff]
  %v88 = vld [vmem:[%s4 + $0x1d8] sm:$0xff]
  %v89 = vld [vmem:[%s4 + $0x1e0] sm:$0xff]
  %v90 = vld [vmem:[%s4 + $0x1e8] sm:$0xff]
  %v91 = vld [vmem:[%s4 + $0x1f0] sm:$0xff]
  %v92 = vld [vmem:[%s4 + $0x1f8] sm:$0xff]
  %v93 = vld [vmem:[%s4 + $0x200] sm:$0xff]
  %v94 = vld [vmem:[%s4 + $0x208] sm:$0xff]
  %v95 = vld [vmem:[%s4 + $0x210] sm:$0xff]
  %v96 = vld [vmem:[%s4 + $0x218] sm:$0xff]
  %v97 = vld [vmem:[%s4 + $0x220] sm:$0xff]
  %v98 = vld [vmem:[%s4 + $0x228] sm:$0xff]
  %v99 = vld [vmem:[%s4 + $0x230] sm:$0xff]
  %v100 = vld [vmem:[%s4 + $0x238] sm:$0xff]
  %v101 = vld [vmem:[%s4 + $0x240] sm:$0xff]
  %v102 = vld [vmem:[%s4 + $0x248] sm:$0xff]
  %v103 = vld [vmem:[%s4 + $0x250] sm:$0xff]
  %v104 = vld [vmem:[%s4 + $0x258] sm:$0xff]
  %v105 = vld [vmem:[%s4 + $0x260] sm:$0xff]
  %v106 = vld [vmem:[%s4 + $0x268] sm:$0xff]
  %v107 = vld [vmem:[%s4 + $0x270] sm:$0xff]
  %v108 = vld [vmem:[%s4 + $0x278] sm:$0xff]
  %v109 = vld [vmem:[%s4 + $0x280] sm:$0xff]
  %v110 = vld [vmem:[%s4 + $0x288] sm:$0xff]
  %v111 = vld [vmem:[%s4 + $0x290] sm:$0xff]
  %v112 = vld [vmem:[%s4 + $0x298] sm:$0xff]
  %v113 = vld [vmem:[%s4 + $0x2a0] sm:$0xff]
  %v114 = vld [vmem:[%s4 + $0x2a8] sm:$0xff]
  %v115 = vld [vmem:[%s4 + $0x2b0] sm:$0xff]
  %v116 = vld [vmem:[%s4 + $0x2b8] sm:$0xff]
  %v117 = vld [vmem:[%s4 + $0x2c0] sm:$0xff]
  %v118 = vld [vmem:[%s4 + $0x2c8] sm:$0xff]
  %v119 = vld [vmem:[%s4 + $0x2d0] sm:$0xff]
  %v120 = vld [vmem:[%s4 + $0x2d8] sm:$0x1]
  %v121 = vmul.f32 %v28, 8.0
  %123 = vset.pattern.permute.xlu0 0
  %124 = vperm.xlu0 %123, %v29
  %v125 = vpop.permute.xlu0 %124
  %128 = vset.pattern.permute.xlu0 0
  %129 = vperm.xlu0 %128, %v30
  %v130 = vpop.permute.xlu0 %129
  %133 = vset.pattern.permute.xlu0 0
  %134 = vperm.xlu0 %133, %v31
  %v135 = vpop.permute.xlu0 %134
  %138 = vset.pattern.permute.xlu0 0
  %139 = vperm.xlu0 %138, %v32
  %v140 = vpop.permute.xlu0 %139
  %143 = vset.pattern.permute.xlu0 0
  %144 = vperm.xlu0 %143, %v33
  %v145 = vpop.permute.xlu0 %144
  %148 = vset.pattern.permute.xlu0 0
  %149 = vperm.xlu0 %148, %v34
  %v150 = vpop.permute.xlu0 %149
  %153 = vset.pattern.permute.xlu0 0
  %154 = vperm.xlu0 %153, %v35
  %v155 = vpop.permute.xlu0 %154
  %158 = vset.pattern.permute.xlu0 0
  %159 = vperm.xlu0 %158, %v36
  %v160 = vpop.permute.xlu0 %159
  %163 = vset.pattern.permute.xlu0 0
  %164 = vperm.xlu0 %163, %v37
  %v165 = vpop.permute.xlu0 %164
  %168 = vset.pattern.permute.xlu0 0
  %169 = vperm.xlu0 %168, %v38
  %v170 = vpop.permute.xlu0 %169
  %173 = vset.pattern.permute.xlu0 0
  %174 = vperm.xlu0 %173, %v39
  %v175 = vpop.permute.xlu0 %174
  %178 = vset.pattern.permute.xlu0 0
  %179 = vperm.xlu0 %178, %v40
  %v180 = vpop.permute.xlu0 %179
  %183 = vset.pattern.permute.xlu0 0
  %184 = vperm.xlu0 %183, %v41
  %v185 = vpop.permute.xlu0 %184
  %188 = vset.pattern.permute.xlu0 0
  %189 = vperm.xlu0 %188, %v42
  %v190 = vpop.permute.xlu0 %189
  %193 = vset.pattern.permute.xlu0 0
  %194 = vperm.xlu0 %193, %v43
  %v195 = vpop.permute.xlu0 %194
  %198 = vset.pattern.permute.xlu0 0
  %199 = vperm.xlu0 %198, %v44
  %v200 = vpop.permute.xlu0 %199
  %203 = vset.pattern.permute.xlu0 0
  %204 = vperm.xlu0 %203, %v45
  %v205 = vpop.permute.xlu0 %204
  %208 = vset.pattern.permute.xlu0 0
  %209 = vperm.xlu0 %208, %v46
  %v210 = vpop.permute.xlu0 %209
  %213 = vset.pattern.permute.xlu0 0
  %214 = vperm.xlu0 %213, %v47
  %v215 = vpop.permute.xlu0 %214
  %218 = vset.pattern.permute.xlu0 0
  %219 = vperm.xlu0 %218, %v48
  %v220 = vpop.permute.xlu0 %219
  %223 = vset.pattern.permute.xlu0 0
  %224 = vperm.xlu0 %223, %v49
  %v225 = vpop.permute.xlu0 %224
  %228 = vset.pattern.permute.xlu0 0
  %229 = vperm.xlu0 %228, %v50
  %v230 = vpop.permute.xlu0 %229
  %233 = vset.pattern.permute.xlu0 0
  %234 = vperm.xlu0 %233, %v51
  %v235 = vpop.permute.xlu0 %234
  %238 = vset.pattern.permute.xlu0 0
  %239 = vperm.xlu0 %238, %v52
  %v240 = vpop.permute.xlu0 %239
  %243 = vset.pattern.permute.xlu0 0
  %244 = vperm.xlu0 %243, %v53
  %v245 = vpop.permute.xlu0 %244
  %248 = vset.pattern.permute.xlu0 0
  %249 = vperm.xlu0 %248, %v54
  %v250 = vpop.permute.xlu0 %249
  %253 = vset.pattern.permute.xlu0 0
  %254 = vperm.xlu0 %253, %v55
  %v255 = vpop.permute.xlu0 %254
  %258 = vset.pattern.permute.xlu0 0
  %259 = vperm.xlu0 %258, %v56
  %v260 = vpop.permute.xlu0 %259
  %263 = vset.pattern.permute.xlu0 0
  %264 = vperm.xlu0 %263, %v57
  %v265 = vpop.permute.xlu0 %264
  %268 = vset.pattern.permute.xlu0 0
  %269 = vperm.xlu0 %268, %v58
  %v270 = vpop.permute.xlu0 %269
  %273 = vset.pattern.permute.xlu0 0
  %274 = vperm.xlu0 %273, %v59
  %v275 = vpop.permute.xlu0 %274
  %278 = vset.pattern.permute.xlu0 0
  %279 = vperm.xlu0 %278, %v60
  %v280 = vpop.permute.xlu0 %279
  %283 = vset.pattern.permute.xlu0 0
  %284 = vperm.xlu0 %283, %v61
  %v285 = vpop.permute.xlu0 %284
  %288 = vset.pattern.permute.xlu0 0
  %289 = vperm.xlu0 %288, %v62
  %v290 = vpop.permute.xlu0 %289
  %293 = vset.pattern.permute.xlu0 0
  %294 = vperm.xlu0 %293, %v63
  %v295 = vpop.permute.xlu0 %294
  %298 = vset.pattern.permute.xlu0 0
  %299 = vperm.xlu0 %298, %v64
  %v300 = vpop.permute.xlu0 %299
  %303 = vset.pattern.permute.xlu0 0
  %304 = vperm.xlu0 %303, %v65
  %v305 = vpop.permute.xlu0 %304
  %308 = vset.pattern.permute.xlu0 0
  %309 = vperm.xlu0 %308, %v66
  %v310 = vpop.permute.xlu0 %309
  %313 = vset.pattern.permute.xlu0 0
  %314 = vperm.xlu0 %313, %v67
  %v315 = vpop.permute.xlu0 %314
  %318 = vset.pattern.permute.xlu0 0
  %319 = vperm.xlu0 %318, %v68
  %v320 = vpop.permute.xlu0 %319
  %323 = vset.pattern.permute.xlu0 0
  %324 = vperm.xlu0 %323, %v69
  %v325 = vpop.permute.xlu0 %324
  %328 = vset.pattern.permute.xlu0 0
  %329 = vperm.xlu0 %328, %v70
  %v330 = vpop.permute.xlu0 %329
  %333 = vset.pattern.permute.xlu0 0
  %334 = vperm.xlu0 %333, %v71
  %v335 = vpop.permute.xlu0 %334
  %338 = vset.pattern.permute.xlu0 0
  %339 = vperm.xlu0 %338, %v72
  %v340 = vpop.permute.xlu0 %339
  %343 = vset.pattern.permute.xlu0 0
  %344 = vperm.xlu0 %343, %v73
  %v345 = vpop.permute.xlu0 %344
  %348 = vset.pattern.permute.xlu0 0
  %349 = vperm.xlu0 %348, %v74
  %v350 = vpop.permute.xlu0 %349
  %353 = vset.pattern.permute.xlu0 0
  %354 = vperm.xlu0 %353, %v75
  %v355 = vpop.permute.xlu0 %354
  %358 = vset.pattern.permute.xlu0 0
  %359 = vperm.xlu0 %358, %v76
  %v360 = vpop.permute.xlu0 %359
  %363 = vset.pattern.permute.xlu0 0
  %364 = vperm.xlu0 %363, %v77
  %v365 = vpop.permute.xlu0 %364
  %368 = vset.pattern.permute.xlu0 0
  %369 = vperm.xlu0 %368, %v78
  %v370 = vpop.permute.xlu0 %369
  %373 = vset.pattern.permute.xlu0 0
  %374 = vperm.xlu0 %373, %v79
  %v375 = vpop.permute.xlu0 %374
  %378 = vset.pattern.permute.xlu0 0
  %379 = vperm.xlu0 %378, %v80
  %v380 = vpop.permute.xlu0 %379
  %383 = vset.pattern.permute.xlu0 0
  %384 = vperm.xlu0 %383, %v81
  %v385 = vpop.permute.xlu0 %384
  %388 = vset.pattern.permute.xlu0 0
  %389 = vperm.xlu0 %388, %v82
  %v390 = vpop.permute.xlu0 %389
  %393 = vset.pattern.permute.xlu0 0
  %394 = vperm.xlu0 %393, %v83
  %v395 = vpop.permute.xlu0 %394
  %398 = vset.pattern.permute.xlu0 0
  %399 = vperm.xlu0 %398, %v84
  %v400 = vpop.permute.xlu0 %399
  %403 = vset.pattern.permute.xlu0 0
  %404 = vperm.xlu0 %403, %v85
  %v405 = vpop.permute.xlu0 %404
  %408 = vset.pattern.permute.xlu0 0
  %409 = vperm.xlu0 %408, %v86
  %v410 = vpop.permute.xlu0 %409
  %413 = vset.pattern.permute.xlu0 0
  %414 = vperm.xlu0 %413, %v87
  %v415 = vpop.permute.xlu0 %414
  %418 = vset.pattern.permute.xlu0 0
  %419 = vperm.xlu0 %418, %v88
  %v420 = vpop.permute.xlu0 %419
  %423 = vset.pattern.permute.xlu0 0
  %424 = vperm.xlu0 %423, %v89
  %v425 = vpop.permute.xlu0 %424
  %428 = vset.pattern.permute.xlu0 0
  %429 = vperm.xlu0 %428, %v90
  %v430 = vpop.permute.xlu0 %429
  %433 = vset.pattern.permute.xlu0 0
  %434 = vperm.xlu0 %433, %v91
  %v435 = vpop.permute.xlu0 %434
  %438 = vset.pattern.permute.xlu0 0
  %439 = vperm.xlu0 %438, %v92
  %v440 = vpop.permute.xlu0 %439
  %443 = vset.pattern.permute.xlu0 0
  %444 = vperm.xlu0 %443, %v93
  %v445 = vpop.permute.xlu0 %444
  %448 = vset.pattern.permute.xlu0 0
  %449 = vperm.xlu0 %448, %v94
  %v450 = vpop.permute.xlu0 %449
  %453 = vset.pattern.permute.xlu0 0
  %454 = vperm.xlu0 %453, %v95
  %v455 = vpop.permute.xlu0 %454
  %458 = vset.pattern.permute.xlu0 0
  %459 = vperm.xlu0 %458, %v96
  %v460 = vpop.permute.xlu0 %459
  %463 = vset.pattern.permute.xlu0 0
  %464 = vperm.xlu0 %463, %v97
  %v465 = vpop.permute.xlu0 %464
  %468 = vset.pattern.permute.xlu0 0
  %469 = vperm.xlu0 %468, %v98
  %v470 = vpop.permute.xlu0 %469
  %473 = vset.pattern.permute.xlu0 0
  %474 = vperm.xlu0 %473, %v99
  %v475 = vpop.permute.xlu0 %474
  %478 = vset.pattern.permute.xlu0 0
  %479 = vperm.xlu0 %478, %v100
  %v480 = vpop.permute.xlu0 %479
  %483 = vset.pattern.permute.xlu0 0
  %484 = vperm.xlu0 %483, %v101
  %v485 = vpop.permute.xlu0 %484
  %488 = vset.pattern.permute.xlu0 0
  %489 = vperm.xlu0 %488, %v102
  %v490 = vpop.permute.xlu0 %489
  %493 = vset.pattern.permute.xlu0 0
  %494 = vperm.xlu0 %493, %v103
  %v495 = vpop.permute.xlu0 %494
  %498 = vset.pattern.permute.xlu0 0
  %499 = vperm.xlu0 %498, %v104
  %v500 = vpop.permute.xlu0 %499
  %503 = vset.pattern.permute.xlu0 0
  %504 = vperm.xlu0 %503, %v105
  %v505 = vpop.permute.xlu0 %504
  %508 = vset.pattern.permute.xlu0 0
  %509 = vperm.xlu0 %508, %v106
  %v510 = vpop.permute.xlu0 %509
  %513 = vset.pattern.permute.xlu0 0
  %514 = vperm.xlu0 %513, %v107
  %v515 = vpop.permute.xlu0 %514
  %518 = vset.pattern.permute.xlu0 0
  %519 = vperm.xlu0 %518, %v108
  %v520 = vpop.permute.xlu0 %519
  %523 = vset.pattern.permute.xlu0 0
  %524 = vperm.xlu0 %523, %v109
  %v525 = vpop.permute.xlu0 %524
  %528 = vset.pattern.permute.xlu0 0
  %529 = vperm.xlu0 %528, %v110
  %v530 = vpop.permute.xlu0 %529
  %533 = vset.pattern.permute.xlu0 0
  %534 = vperm.xlu0 %533, %v111
  %v535 = vpop.permute.xlu0 %534
  %538 = vset.pattern.permute.xlu0 0
  %539 = vperm.xlu0 %538, %v112
  %v540 = vpop.permute.xlu0 %539
  %543 = vset.pattern.permute.xlu0 0
  %544 = vperm.xlu0 %543, %v113
  %v545 = vpop.permute.xlu0 %544
  %548 = vset.pattern.permute.xlu0 0
  %549 = vperm.xlu0 %548, %v114
  %v550 = vpop.permute.xlu0 %549
  %553 = vset.pattern.permute.xlu0 0
  %554 = vperm.xlu0 %553, %v115
  %v555 = vpop.permute.xlu0 %554
  %558 = vset.pattern.permute.xlu0 0
  %559 = vperm.xlu0 %558, %v116
  %v560 = vpop.permute.xlu0 %559
  %563 = vset.pattern.permute.xlu0 0
  %564 = vperm.xlu0 %563, %v117
  %v565 = vpop.permute.xlu0 %564
  %568 = vset.pattern.permute.xlu0 0
  %569 = vperm.xlu0 %568, %v118
  %v570 = vpop.permute.xlu0 %569
  %573 = vset.pattern.permute.xlu0 0
  %574 = vperm.xlu0 %573, %v119
  %v575 = vpop.permute.xlu0 %574
  %578 = vset.pattern.permute.xlu0 0
  %579 = vperm.xlu0 %578, %v120
  %v580 = vpop.permute.xlu0 %579
  %v583 = vperm.slane %v121, 0
  %v584 = vperm.slane %v121, 4
  %v587 = vperm.slane %v583, 0
  %v588 = vperm.slane %v584, 0
  %v589 = vsub.f32 %v125, %v587
  %v590 = vsub.f32 %v125, %v588
  %v591 = vsub.f32 %v130, %v587
  %v592 = vsub.f32 %v130, %v588
  %v593 = vsub.f32 %v135, %v587
  %v594 = vsub.f32 %v135, %v588
  %v595 = vsub.f32 %v140, %v587
  %v596 = vsub.f32 %v140, %v588
  %v597 = vsub.f32 %v145, %v587
  %v598 = vsub.f32 %v145, %v588
  %v599 = vsub.f32 %v150, %v587
  %v600 = vsub.f32 %v150, %v588
  %v601 = vsub.f32 %v155, %v587
  %v602 = vsub.f32 %v155, %v588
  %v603 = vsub.f32 %v160, %v587
  %v604 = vsub.f32 %v160, %v588
  %v605 = vsub.f32 %v165, %v587
  %v606 = vsub.f32 %v165, %v588
  %v607 = vsub.f32 %v170, %v587
  %v608 = vsub.f32 %v170, %v588
  %v609 = vsub.f32 %v175, %v587
  %v610 = vsub.f32 %v175, %v588
  %v611 = vsub.f32 %v180, %v587
  %v612 = vsub.f32 %v180, %v588
  %v613 = vsub.f32 %v185, %v587
  %v614 = vsub.f32 %v185, %v588
  %v615 = vsub.f32 %v190, %v587
  %v616 = vsub.f32 %v190, %v588
  %v617 = vsub.f32 %v195, %v587
  %v618 = vsub.f32 %v195, %v588
  %v619 = vsub.f32 %v200, %v587
  %v620 = vsub.f32 %v200, %v588
  %v621 = vsub.f32 %v205, %v587
  %v622 = vsub.f32 %v205, %v588
  %v623 = vsub.f32 %v210, %v587
  %v624 = vsub.f32 %v210, %v588
  %v625 = vsub.f32 %v215, %v587
  %v626 = vsub.f32 %v215, %v588
  %v627 = vsub.f32 %v220, %v587
  %v628 = vsub.f32 %v220, %v588
  %v629 = vsub.f32 %v225, %v587
  %v630 = vsub.f32 %v225, %v588
  %v631 = vsub.f32 %v230, %v587
  %v632 = vsub.f32 %v230, %v588
  %v633 = vsub.f32 %v235, %v587
  %v634 = vsub.f32 %v235, %v588
  %v635 = vsub.f32 %v240, %v587
  %v636 = vsub.f32 %v240, %v588
  %v637 = vsub.f32 %v245, %v587
  %v638 = vsub.f32 %v245, %v588
  %v639 = vsub.f32 %v250, %v587
  %v640 = vsub.f32 %v250, %v588
  %v641 = vsub.f32 %v255, %v587
  %v642 = vsub.f32 %v255, %v588
  %v643 = vsub.f32 %v260, %v587
  %v644 = vsub.f32 %v260, %v588
  %v645 = vsub.f32 %v265, %v587
  %v646 = vsub.f32 %v265, %v588
  %v647 = vsub.f32 %v270, %v587
  %v648 = vsub.f32 %v270, %v588
  %v649 = vsub.f32 %v275, %v587
  %v650 = vsub.f32 %v275, %v588
  %v651 = vsub.f32 %v280, %v587
  %v652 = vsub.f32 %v280, %v588
  %v653 = vsub.f32 %v285, %v587
  %v654 = vsub.f32 %v285, %v588
  %v655 = vsub.f32 %v290, %v587
  %v656 = vsub.f32 %v290, %v588
  %v657 = vsub.f32 %v295, %v587
  %v658 = vsub.f32 %v295, %v588
  %v659 = vsub.f32 %v300, %v587
  %v660 = vsub.f32 %v300, %v588
  %v661 = vsub.f32 %v305, %v587
  %v662 = vsub.f32 %v305, %v588
  %v663 = vsub.f32 %v310, %v587
  %v664 = vsub.f32 %v310, %v588
  %v665 = vsub.f32 %v315, %v587
  %v666 = vsub.f32 %v315, %v588
  %v667 = vsub.f32 %v320, %v587
  %v668 = vsub.f32 %v320, %v588
  %v669 = vsub.f32 %v325, %v587
  %v670 = vsub.f32 %v325, %v588
  %v671 = vsub.f32 %v330, %v587
  %v672 = vsub.f32 %v330, %v588
  %v673 = vsub.f32 %v335, %v587
  %v674 = vsub.f32 %v335, %v588
  %v675 = vsub.f32 %v340, %v587
  %v676 = vsub.f32 %v340, %v588
  %v677 = vsub.f32 %v345, %v587
  %v678 = vsub.f32 %v345, %v588
  %v679 = vsub.f32 %v350, %v587
  %v680 = vsub.f32 %v350, %v588
  %v681 = vsub.f32 %v355, %v587
  %v682 = vsub.f32 %v355, %v588
  %v683 = vsub.f32 %v360, %v587
  %v684 = vsub.f32 %v360, %v588
  %v685 = vsub.f32 %v365, %v587
  %v686 = vsub.f32 %v365, %v588
  %v687 = vsub.f32 %v370, %v587
  %v688 = vsub.f32 %v370, %v588
  %v689 = vsub.f32 %v375, %v587
  %v690 = vsub.f32 %v375, %v588
  %v691 = vsub.f32 %v380, %v587
  %v692 = vsub.f32 %v380, %v588
  %v693 = vsub.f32 %v385, %v587
  %v694 = vsub.f32 %v385, %v588
  %v695 = vsub.f32 %v390, %v587
  %v696 = vsub.f32 %v390, %v588
  %v697 = vsub.f32 %v395, %v587
  %v698 = vsub.f32 %v395, %v588
  %v699 = vsub.f32 %v400, %v587
  %v700 = vsub.f32 %v400, %v588
  %v701 = vsub.f32 %v405, %v587
  %v702 = vsub.f32 %v405, %v588
  %v703 = vsub.f32 %v410, %v587
  %v704 = vsub.f32 %v410, %v588
  %v705 = vsub.f32 %v415, %v587
  %v706 = vsub.f32 %v415, %v588
  %v707 = vsub.f32 %v420, %v587
  %v708 = vsub.f32 %v420, %v588
  %v709 = vsub.f32 %v425, %v587
  %v710 = vsub.f32 %v425, %v588
  %v711 = vsub.f32 %v430, %v587
  %v712 = vsub.f32 %v430, %v588
  %v713 = vsub.f32 %v435, %v587
  %v714 = vsub.f32 %v435, %v588
  %v715 = vsub.f32 %v440, %v587
  %v716 = vsub.f32 %v440, %v588
  %v717 = vsub.f32 %v445, %v587
  %v718 = vsub.f32 %v445, %v588
  %v719 = vsub.f32 %v450, %v587
  %v720 = vsub.f32 %v450, %v588
  %v721 = vsub.f32 %v455, %v587
  %v722 = vsub.f32 %v455, %v588
  %v723 = vsub.f32 %v460, %v587
  %v724 = vsub.f32 %v460, %v588
  %v725 = vsub.f32 %v465, %v587
  %v726 = vsub.f32 %v465, %v588
  %v727 = vsub.f32 %v470, %v587
  %v728 = vsub.f32 %v470, %v588
  %v729 = vsub.f32 %v475, %v587
  %v730 = vsub.f32 %v475, %v588
  %v731 = vsub.f32 %v480, %v587
  %v732 = vsub.f32 %v480, %v588
  %v733 = vsub.f32 %v485, %v587
  %v734 = vsub.f32 %v485, %v588
  %v735 = vsub.f32 %v490, %v587
  %v736 = vsub.f32 %v490, %v588
  %v737 = vsub.f32 %v495, %v587
  %v738 = vsub.f32 %v495, %v588
  %v739 = vsub.f32 %v500, %v587
  %v740 = vsub.f32 %v500, %v588
  %v741 = vsub.f32 %v505, %v587
  %v742 = vsub.f32 %v505, %v588
  %v743 = vsub.f32 %v510, %v587
  %v744 = vsub.f32 %v510, %v588
  %v745 = vsub.f32 %v515, %v587
  %v746 = vsub.f32 %v515, %v588
  %v747 = vsub.f32 %v520, %v587
  %v748 = vsub.f32 %v520, %v588
  %v749 = vsub.f32 %v525, %v587
  %v750 = vsub.f32 %v525, %v588
  %v751 = vsub.f32 %v530, %v587
  %v752 = vsub.f32 %v530, %v588
  %v753 = vsub.f32 %v535, %v587
  %v754 = vsub.f32 %v535, %v588
  %v755 = vsub.f32 %v540, %v587
  %v756 = vsub.f32 %v540, %v588
  %v757 = vsub.f32 %v545, %v587
  %v758 = vsub.f32 %v545, %v588
  %v759 = vsub.f32 %v550, %v587
  %v760 = vsub.f32 %v550, %v588
  %v761 = vsub.f32 %v555, %v587
  %v762 = vsub.f32 %v555, %v588
  %v763 = vsub.f32 %v560, %v587
  %v764 = vsub.f32 %v560, %v588
  %v765 = vsub.f32 %v565, %v587
  %v766 = vsub.f32 %v565, %v588
  %v767 = vsub.f32 %v570, %v587
  %v768 = vsub.f32 %v570, %v588
  %v769 = vsub.f32 %v575, %v587
  %v770 = vsub.f32 %v575, %v588
  %v771 = vsub.f32 %v580, %v587
  %v772 = vsub.f32 %v580, %v588
  %v773 = vand.u32 2147483647, %v589
  %v774 = vand.u32 2147483647, %v590
  %v775 = vand.u32 2147483647, %v591
  %v776 = vand.u32 2147483647, %v592
  %v777 = vand.u32 2147483647, %v593
  %v778 = vand.u32 2147483647, %v594
  %v779 = vand.u32 2147483647, %v595
  %v780 = vand.u32 2147483647, %v596
  %v781 = vand.u32 2147483647, %v597
  %v782 = vand.u32 2147483647, %v598
  %v783 = vand.u32 2147483647, %v599
  %v784 = vand.u32 2147483647, %v600
  %v785 = vand.u32 2147483647, %v601
  %v786 = vand.u32 2147483647, %v602
  %v787 = vand.u32 2147483647, %v603
  %v788 = vand.u32 2147483647, %v604
  %v789 = vand.u32 2147483647, %v605
  %v790 = vand.u32 2147483647, %v606
  %v791 = vand.u32 2147483647, %v607
  %v792 = vand.u32 2147483647, %v608
  %v793 = vand.u32 2147483647, %v609
  %v794 = vand.u32 2147483647, %v610
  %v795 = vand.u32 2147483647, %v611
  %v796 = vand.u32 2147483647, %v612
  %v797 = vand.u32 2147483647, %v613
  %v798 = vand.u32 2147483647, %v614
  %v799 = vand.u32 2147483647, %v615
  %v800 = vand.u32 2147483647, %v616
  %v801 = vand.u32 2147483647, %v617
  %v802 = vand.u32 2147483647, %v618
  %v803 = vand.u32 2147483647, %v619
  %v804 = vand.u32 2147483647, %v620
  %v805 = vand.u32 2147483647, %v621
  %v806 = vand.u32 2147483647, %v622
  %v807 = vand.u32 2147483647, %v623
  %v808 = vand.u32 2147483647, %v624
  %v809 = vand.u32 2147483647, %v625
  %v810 = vand.u32 2147483647, %v626
  %v811 = vand.u32 2147483647, %v627
  %v812 = vand.u32 2147483647, %v628
  %v813 = vand.u32 2147483647, %v629
  %v814 = vand.u32 2147483647, %v630
  %v815 = vand.u32 2147483647, %v631
  %v816 = vand.u32 2147483647, %v632
  %v817 = vand.u32 2147483647, %v633
  %v818 = vand.u32 2147483647, %v634
  %v819 = vand.u32 2147483647, %v635
  %v820 = vand.u32 2147483647, %v636
  %v821 = vand.u32 2147483647, %v637
  %v822 = vand.u32 2147483647, %v638
  %v823 = vand.u32 2147483647, %v639
  %v824 = vand.u32 2147483647, %v640
  %v825 = vand.u32 2147483647, %v641
  %v826 = vand.u32 2147483647, %v642
  %v827 = vand.u32 2147483647, %v643
  %v828 = vand.u32 2147483647, %v644
  %v829 = vand.u32 2147483647, %v645
  %v830 = vand.u32 2147483647, %v646
  %v831 = vand.u32 2147483647, %v647
  %v832 = vand.u32 2147483647, %v648
  %v833 = vand.u32 2147483647, %v649
  %v834 = vand.u32 2147483647, %v650
  %v835 = vand.u32 2147483647, %v651
  %v836 = vand.u32 2147483647, %v652
  %v837 = vand.u32 2147483647, %v653
  %v838 = vand.u32 2147483647, %v654
  %v839 = vand.u32 2147483647, %v655
  %v840 = vand.u32 2147483647, %v656
  %v841 = vand.u32 2147483647, %v657
  %v842 = vand.u32 2147483647, %v658
  %v843 = vand.u32 2147483647, %v659
  %v844 = vand.u32 2147483647, %v660
  %v845 = vand.u32 2147483647, %v661
  %v846 = vand.u32 2147483647, %v662
  %v847 = vand.u32 2147483647, %v663
  %v848 = vand.u32 2147483647, %v664
  %v849 = vand.u32 2147483647, %v665
  %v850 = vand.u32 2147483647, %v666
  %v851 = vand.u32 2147483647, %v667
  %v852 = vand.u32 2147483647, %v668
  %v853 = vand.u32 2147483647, %v669
  %v854 = vand.u32 2147483647, %v670
  %v855 = vand.u32 2147483647, %v671
  %v856 = vand.u32 2147483647, %v672
  %v857 = vand.u32 2147483647, %v673
  %v858 = vand.u32 2147483647, %v674
  %v859 = vand.u32 2147483647, %v675
  %v860 = vand.u32 2147483647, %v676
  %v861 = vand.u32 2147483647, %v677
  %v862 = vand.u32 2147483647, %v678
  %v863 = vand.u32 2147483647, %v679
  %v864 = vand.u32 2147483647, %v680
  %v865 = vand.u32 2147483647, %v681
  %v866 = vand.u32 2147483647, %v682
  %v867 = vand.u32 2147483647, %v683
  %v868 = vand.u32 2147483647, %v684
  %v869 = vand.u32 2147483647, %v685
  %v870 = vand.u32 2147483647, %v686
  %v871 = vand.u32 2147483647, %v687
  %v872 = vand.u32 2147483647, %v688
  %v873 = vand.u32 2147483647, %v689
  %v874 = vand.u32 2147483647, %v690
  %v875 = vand.u32 2147483647, %v691
  %v876 = vand.u32 2147483647, %v692
  %v877 = vand.u32 2147483647, %v693
  %v878 = vand.u32 2147483647, %v694
  %v879 = vand.u32 2147483647, %v695
  %v880 = vand.u32 2147483647, %v696
  %v881 = vand.u32 2147483647, %v697
  %v882 = vand.u32 2147483647, %v698
  %v883 = vand.u32 2147483647, %v699
  %v884 = vand.u32 2147483647, %v700
  %v885 = vand.u32 2147483647, %v701
  %v886 = vand.u32 2147483647, %v702
  %v887 = vand.u32 2147483647, %v703
  %v888 = vand.u32 2147483647, %v704
  %v889 = vand.u32 2147483647, %v705
  %v890 = vand.u32 2147483647, %v706
  %v891 = vand.u32 2147483647, %v707
  %v892 = vand.u32 2147483647, %v708
  %v893 = vand.u32 2147483647, %v709
  %v894 = vand.u32 2147483647, %v710
  %v895 = vand.u32 2147483647, %v711
  %v896 = vand.u32 2147483647, %v712
  %v897 = vand.u32 2147483647, %v713
  %v898 = vand.u32 2147483647, %v714
  %v899 = vand.u32 2147483647, %v715
  %v900 = vand.u32 2147483647, %v716
  %v901 = vand.u32 2147483647, %v717
  %v902 = vand.u32 2147483647, %v718
  %v903 = vand.u32 2147483647, %v719
  %v904 = vand.u32 2147483647, %v720
  %v905 = vand.u32 2147483647, %v721
  %v906 = vand.u32 2147483647, %v722
  %v907 = vand.u32 2147483647, %v723
  %v908 = vand.u32 2147483647, %v724
  %v909 = vand.u32 2147483647, %v725
  %v910 = vand.u32 2147483647, %v726
  %v911 = vand.u32 2147483647, %v727
  %v912 = vand.u32 2147483647, %v728
  %v913 = vand.u32 2147483647, %v729
  %v914 = vand.u32 2147483647, %v730
  %v915 = vand.u32 2147483647, %v731
  %v916 = vand.u32 2147483647, %v732
  %v917 = vand.u32 2147483647, %v733
  %v918 = vand.u32 2147483647, %v734
  %v919 = vand.u32 2147483647, %v735
  %v920 = vand.u32 2147483647, %v736
  %v921 = vand.u32 2147483647, %v737
  %v922 = vand.u32 2147483647, %v738
  %v923 = vand.u32 2147483647, %v739
  %v924 = vand.u32 2147483647, %v740
  %v925 = vand.u32 2147483647, %v741
  %v926 = vand.u32 2147483647, %v742
  %v927 = vand.u32 2147483647, %v743
  %v928 = vand.u32 2147483647, %v744
  %v929 = vand.u32 2147483647, %v745
  %v930 = vand.u32 2147483647, %v746
  %v931 = vand.u32 2147483647, %v747
  %v932 = vand.u32 2147483647, %v748
  %v933 = vand.u32 2147483647, %v749
  %v934 = vand.u32 2147483647, %v750
  %v935 = vand.u32 2147483647, %v751
  %v936 = vand.u32 2147483647, %v752
  %v937 = vand.u32 2147483647, %v753
  %v938 = vand.u32 2147483647, %v754
  %v939 = vand.u32 2147483647, %v755
  %v940 = vand.u32 2147483647, %v756
  %v941 = vand.u32 2147483647, %v757
  %v942 = vand.u32 2147483647, %v758
  %v943 = vand.u32 2147483647, %v759
  %v944 = vand.u32 2147483647, %v760
  %v945 = vand.u32 2147483647, %v761
  %v946 = vand.u32 2147483647, %v762
  %v947 = vand.u32 2147483647, %v763
  %v948 = vand.u32 2147483647, %v764
  %v949 = vand.u32 2147483647, %v765
  %v950 = vand.u32 2147483647, %v766
  %v951 = vand.u32 2147483647, %v767
  %v952 = vand.u32 2147483647, %v768
  %v953 = vand.u32 2147483647, %v769
  %v954 = vand.u32 2147483647, %v770
  %v955 = vand.u32 2147483647, %v771
  %v956 = vand.u32 2147483647, %v772
  %v957 = vsub.f32 1.0, %v773
  %v958 = vsub.f32 1.0, %v774
  %v959 = vsub.f32 1.0, %v775
  %v960 = vsub.f32 1.0, %v776
  %v961 = vsub.f32 1.0, %v777
  %v962 = vsub.f32 1.0, %v778
  %v963 = vsub.f32 1.0, %v779
  %v964 = vsub.f32 1.0, %v780
  %v965 = vsub.f32 1.0, %v781
  %v966 = vsub.f32 1.0, %v782
  %v967 = vsub.f32 1.0, %v783
  %v968 = vsub.f32 1.0, %v784
  %v969 = vsub.f32 1.0, %v785
  %v970 = vsub.f32 1.0, %v786
  %v971 = vsub.f32 1.0, %v787
  %v972 = vsub.f32 1.0, %v788
  %v973 = vsub.f32 1.0, %v789
  %v974 = vsub.f32 1.0, %v790
  %v975 = vsub.f32 1.0, %v791
  %v976 = vsub.f32 1.0, %v792
  %v977 = vsub.f32 1.0, %v793
  %v978 = vsub.f32 1.0, %v794
  %v979 = vsub.f32 1.0, %v795
  %v980 = vsub.f32 1.0, %v796
  %v981 = vsub.f32 1.0, %v797
  %v982 = vsub.f32 1.0, %v798
  %v983 = vsub.f32 1.0, %v799
  %v984 = vsub.f32 1.0, %v800
  %v985 = vsub.f32 1.0, %v801
  %v986 = vsub.f32 1.0, %v802
  %v987 = vsub.f32 1.0, %v803
  %v988 = vsub.f32 1.0, %v804
  %v989 = vsub.f32 1.0, %v805
  %v990 = vsub.f32 1.0, %v806
  %v991 = vsub.f32 1.0, %v807
  %v992 = vsub.f32 1.0, %v808
  %v993 = vsub.f32 1.0, %v809
  %v994 = vsub.f32 1.0, %v810
  %v995 = vsub.f32 1.0, %v811
  %v996 = vsub.f32 1.0, %v812
  %v997 = vsub.f32 1.0, %v813
  %v998 = vsub.f32 1.0, %v814
  %v999 = vsub.f32 1.0, %v815
  %v1000 = vsub.f32 1.0, %v816
  %v1001 = vsub.f32 1.0, %v817
  %v1002 = vsub.f32 1.0, %v818
  %v1003 = vsub.f32 1.0, %v819
  %v1004 = vsub.f32 1.0, %v820
  %v1005 = vsub.f32 1.0, %v821
  %v1006 = vsub.f32 1.0, %v822
  %v1007 = vsub.f32 1.0, %v823
  %v1008 = vsub.f32 1.0, %v824
  %v1009 = vsub.f32 1.0, %v825
  %v1010 = vsub.f32 1.0, %v826
  %v1011 = vsub.f32 1.0, %v827
  %v1012 = vsub.f32 1.0, %v828
  %v1013 = vsub.f32 1.0, %v829
  %v1014 = vsub.f32 1.0, %v830
  %v1015 = vsub.f32 1.0, %v831
  %v1016 = vsub.f32 1.0, %v832
  %v1017 = vsub.f32 1.0, %v833
  %v1018 = vsub.f32 1.0, %v834
  %v1019 = vsub.f32 1.0, %v835
  %v1020 = vsub.f32 1.0, %v836
  %v1021 = vsub.f32 1.0, %v837
  %v1022 = vsub.f32 1.0, %v838
  %v1023 = vsub.f32 1.0, %v839
  %v1024 = vsub.f32 1.0, %v840
  %v1025 = vsub.f32 1.0, %v841
  %v1026 = vsub.f32 1.0, %v842
  %v1027 = vsub.f32 1.0, %v843
  %v1028 = vsub.f32 1.0, %v844
  %v1029 = vsub.f32 1.0, %v845
  %v1030 = vsub.f32 1.0, %v846
  %v1031 = vsub.f32 1.0, %v847
  %v1032 = vsub.f32 1.0, %v848
  %v1033 = vsub.f32 1.0, %v849
  %v1034 = vsub.f32 1.0, %v850
  %v1035 = vsub.f32 1.0, %v851
  %v1036 = vsub.f32 1.0, %v852
  %v1037 = vsub.f32 1.0, %v853
  %v1038 = vsub.f32 1.0, %v854
  %v1039 = vsub.f32 1.0, %v855
  %v1040 = vsub.f32 1.0, %v856
  %v1041 = vsub.f32 1.0, %v857
  %v1042 = vsub.f32 1.0, %v858
  %v1043 = vsub.f32 1.0, %v859
  %v1044 = vsub.f32 1.0, %v860
  %v1045 = vsub.f32 1.0, %v861
  %v1046 = vsub.f32 1.0, %v862
  %v1047 = vsub.f32 1.0, %v863
  %v1048 = vsub.f32 1.0, %v864
  %v1049 = vsub.f32 1.0, %v865
  %v1050 = vsub.f32 1.0, %v866
  %v1051 = vsub.f32 1.0, %v867
  %v1052 = vsub.f32 1.0, %v868
  %v1053 = vsub.f32 1.0, %v869
  %v1054 = vsub.f32 1.0, %v870
  %v1055 = vsub.f32 1.0, %v871
  %v1056 = vsub.f32 1.0, %v872
  %v1057 = vsub.f32 1.0, %v873
  %v1058 = vsub.f32 1.0, %v874
  %v1059 = vsub.f32 1.0, %v875
  %v1060 = vsub.f32 1.0, %v876
  %v1061 = vsub.f32 1.0, %v877
  %v1062 = vsub.f32 1.0, %v878
  %v1063 = vsub.f32 1.0, %v879
  %v1064 = vsub.f32 1.0, %v880
  %v1065 = vsub.f32 1.0, %v881
  %v1066 = vsub.f32 1.0, %v882
  %v1067 = vsub.f32 1.0, %v883
  %v1068 = vsub.f32 1.0, %v884
  %v1069 = vsub.f32 1.0, %v885
  %v1070 = vsub.f32 1.0, %v886
  %v1071 = vsub.f32 1.0, %v887
  %v1072 = vsub.f32 1.0, %v888
  %v1073 = vsub.f32 1.0, %v889
  %v1074 = vsub.f32 1.0, %v890
  %v1075 = vsub.f32 1.0, %v891
  %v1076 = vsub.f32 1.0, %v892
  %v1077 = vsub.f32 1.0, %v893
  %v1078 = vsub.f32 1.0, %v894
  %v1079 = vsub.f32 1.0, %v895
  %v1080 = vsub.f32 1.0, %v896
  %v1081 = vsub.f32 1.0, %v897
  %v1082 = vsub.f32 1.0, %v898
  %v1083 = vsub.f32 1.0, %v899
  %v1084 = vsub.f32 1.0, %v900
  %v1085 = vsub.f32 1.0, %v901
  %v1086 = vsub.f32 1.0, %v902
  %v1087 = vsub.f32 1.0, %v903
  %v1088 = vsub.f32 1.0, %v904
  %v1089 = vsub.f32 1.0, %v905
  %v1090 = vsub.f32 1.0, %v906
  %v1091 = vsub.f32 1.0, %v907
  %v1092 = vsub.f32 1.0, %v908
  %v1093 = vsub.f32 1.0, %v909
  %v1094 = vsub.f32 1.0, %v910
  %v1095 = vsub.f32 1.0, %v911
  %v1096 = vsub.f32 1.0, %v912
  %v1097 = vsub.f32 1.0, %v913
  %v1098 = vsub.f32 1.0, %v914
  %v1099 = vsub.f32 1.0, %v915
  %v1100 = vsub.f32 1.0, %v916
  %v1101 = vsub.f32 1.0, %v917
  %v1102 = vsub.f32 1.0, %v918
  %v1103 = vsub.f32 1.0, %v919
  %v1104 = vsub.f32 1.0, %v920
  %v1105 = vsub.f32 1.0, %v921
  %v1106 = vsub.f32 1.0, %v922
  %v1107 = vsub.f32 1.0, %v923
  %v1108 = vsub.f32 1.0, %v924
  %v1109 = vsub.f32 1.0, %v925
  %v1110 = vsub.f32 1.0, %v926
  %v1111 = vsub.f32 1.0, %v927
  %v1112 = vsub.f32 1.0, %v928
  %v1113 = vsub.f32 1.0, %v929
  %v1114 = vsub.f32 1.0, %v930
  %v1115 = vsub.f32 1.0, %v931
  %v1116 = vsub.f32 1.0, %v932
  %v1117 = vsub.f32 1.0, %v933
  %v1118 = vsub.f32 1.0, %v934
  %v1119 = vsub.f32 1.0, %v935
  %v1120 = vsub.f32 1.0, %v936
  %v1121 = vsub.f32 1.0, %v937
  %v1122 = vsub.f32 1.0, %v938
  %v1123 = vsub.f32 1.0, %v939
  %v1124 = vsub.f32 1.0, %v940
  %v1125 = vsub.f32 1.0, %v941
  %v1126 = vsub.f32 1.0, %v942
  %v1127 = vsub.f32 1.0, %v943
  %v1128 = vsub.f32 1.0, %v944
  %v1129 = vsub.f32 1.0, %v945
  %v1130 = vsub.f32 1.0, %v946
  %v1131 = vsub.f32 1.0, %v947
  %v1132 = vsub.f32 1.0, %v948
  %v1133 = vsub.f32 1.0, %v949
  %v1134 = vsub.f32 1.0, %v950
  %v1135 = vsub.f32 1.0, %v951
  %v1136 = vsub.f32 1.0, %v952
  %v1137 = vsub.f32 1.0, %v953
  %v1138 = vsub.f32 1.0, %v954
  %v1139 = vsub.f32 1.0, %v955
  %v1140 = vsub.f32 1.0, %v956
  %v1141 = vmax.f32 %v957, 0.0
  %v1142 = vmax.f32 %v958, 0.0
  %v1143 = vmax.f32 %v959, 0.0
  %v1144 = vmax.f32 %v960, 0.0
  %v1145 = vmax.f32 %v961, 0.0
  %v1146 = vmax.f32 %v962, 0.0
  %v1147 = vmax.f32 %v963, 0.0
  %v1148 = vmax.f32 %v964, 0.0
  %v1149 = vmax.f32 %v965, 0.0
  %v1150 = vmax.f32 %v966, 0.0
  %v1151 = vmax.f32 %v967, 0.0
  %v1152 = vmax.f32 %v968, 0.0
  %v1153 = vmax.f32 %v969, 0.0
  %v1154 = vmax.f32 %v970, 0.0
  %v1155 = vmax.f32 %v971, 0.0
  %v1156 = vmax.f32 %v972, 0.0
  %v1157 = vmax.f32 %v973, 0.0
  %v1158 = vmax.f32 %v974, 0.0
  %v1159 = vmax.f32 %v975, 0.0
  %v1160 = vmax.f32 %v976, 0.0
  %v1161 = vmax.f32 %v977, 0.0
  %v1162 = vmax.f32 %v978, 0.0
  %v1163 = vmax.f32 %v979, 0.0
  %v1164 = vmax.f32 %v980, 0.0
  %v1165 = vmax.f32 %v981, 0.0
  %v1166 = vmax.f32 %v982, 0.0
  %v1167 = vmax.f32 %v983, 0.0
  %v1168 = vmax.f32 %v984, 0.0
  %v1169 = vmax.f32 %v985, 0.0
  %v1170 = vmax.f32 %v986, 0.0
  %v1171 = vmax.f32 %v987, 0.0
  %v1172 = vmax.f32 %v988, 0.0
  %v1173 = vmax.f32 %v989, 0.0
  %v1174 = vmax.f32 %v990, 0.0
  %v1175 = vmax.f32 %v991, 0.0
  %v1176 = vmax.f32 %v992, 0.0
  %v1177 = vmax.f32 %v993, 0.0
  %v1178 = vmax.f32 %v994, 0.0
  %v1179 = vmax.f32 %v995, 0.0
  %v1180 = vmax.f32 %v996, 0.0
  %v1181 = vmax.f32 %v997, 0.0
  %v1182 = vmax.f32 %v998, 0.0
  %v1183 = vmax.f32 %v999, 0.0
  %v1184 = vmax.f32 %v1000, 0.0
  %v1185 = vmax.f32 %v1001, 0.0
  %v1186 = vmax.f32 %v1002, 0.0
  %v1187 = vmax.f32 %v1003, 0.0
  %v1188 = vmax.f32 %v1004, 0.0
  %v1189 = vmax.f32 %v1005, 0.0
  %v1190 = vmax.f32 %v1006, 0.0
  %v1191 = vmax.f32 %v1007, 0.0
  %v1192 = vmax.f32 %v1008, 0.0
  %v1193 = vmax.f32 %v1009, 0.0
  %v1194 = vmax.f32 %v1010, 0.0
  %v1195 = vmax.f32 %v1011, 0.0
  %v1196 = vmax.f32 %v1012, 0.0
  %v1197 = vmax.f32 %v1013, 0.0
  %v1198 = vmax.f32 %v1014, 0.0
  %v1199 = vmax.f32 %v1015, 0.0
  %v1200 = vmax.f32 %v1016, 0.0
  %v1201 = vmax.f32 %v1017, 0.0
  %v1202 = vmax.f32 %v1018, 0.0
  %v1203 = vmax.f32 %v1019, 0.0
  %v1204 = vmax.f32 %v1020, 0.0
  %v1205 = vmax.f32 %v1021, 0.0
  %v1206 = vmax.f32 %v1022, 0.0
  %v1207 = vmax.f32 %v1023, 0.0
  %v1208 = vmax.f32 %v1024, 0.0
  %v1209 = vmax.f32 %v1025, 0.0
  %v1210 = vmax.f32 %v1026, 0.0
  %v1211 = vmax.f32 %v1027, 0.0
  %v1212 = vmax.f32 %v1028, 0.0
  %v1213 = vmax.f32 %v1029, 0.0
  %v1214 = vmax.f32 %v1030, 0.0
  %v1215 = vmax.f32 %v1031, 0.0
  %v1216 = vmax.f32 %v1032, 0.0
  %v1217 = vmax.f32 %v1033, 0.0
  %v1218 = vmax.f32 %v1034, 0.0
  %v1219 = vmax.f32 %v1035, 0.0
  %v1220 = vmax.f32 %v1036, 0.0
  %v1221 = vmax.f32 %v1037, 0.0
  %v1222 = vmax.f32 %v1038, 0.0
  %v1223 = vmax.f32 %v1039, 0.0
  %v1224 = vmax.f32 %v1040, 0.0
  %v1225 = vmax.f32 %v1041, 0.0
  %v1226 = vmax.f32 %v1042, 0.0
  %v1227 = vmax.f32 %v1043, 0.0
  %v1228 = vmax.f32 %v1044, 0.0
  %v1229 = vmax.f32 %v1045, 0.0
  %v1230 = vmax.f32 %v1046, 0.0
  %v1231 = vmax.f32 %v1047, 0.0
  %v1232 = vmax.f32 %v1048, 0.0
  %v1233 = vmax.f32 %v1049, 0.0
  %v1234 = vmax.f32 %v1050, 0.0
  %v1235 = vmax.f32 %v1051, 0.0
  %v1236 = vmax.f32 %v1052, 0.0
  %v1237 = vmax.f32 %v1053, 0.0
  %v1238 = vmax.f32 %v1054, 0.0
  %v1239 = vmax.f32 %v1055, 0.0
  %v1240 = vmax.f32 %v1056, 0.0
  %v1241 = vmax.f32 %v1057, 0.0
  %v1242 = vmax.f32 %v1058, 0.0
  %v1243 = vmax.f32 %v1059, 0.0
  %v1244 = vmax.f32 %v1060, 0.0
  %v1245 = vmax.f32 %v1061, 0.0
  %v1246 = vmax.f32 %v1062, 0.0
  %v1247 = vmax.f32 %v1063, 0.0
  %v1248 = vmax.f32 %v1064, 0.0
  %v1249 = vmax.f32 %v1065, 0.0
  %v1250 = vmax.f32 %v1066, 0.0
  %v1251 = vmax.f32 %v1067, 0.0
  %v1252 = vmax.f32 %v1068, 0.0
  %v1253 = vmax.f32 %v1069, 0.0
  %v1254 = vmax.f32 %v1070, 0.0
  %v1255 = vmax.f32 %v1071, 0.0
  %v1256 = vmax.f32 %v1072, 0.0
  %v1257 = vmax.f32 %v1073, 0.0
  %v1258 = vmax.f32 %v1074, 0.0
  %v1259 = vmax.f32 %v1075, 0.0
  %v1260 = vmax.f32 %v1076, 0.0
  %v1261 = vmax.f32 %v1077, 0.0
  %v1262 = vmax.f32 %v1078, 0.0
  %v1263 = vmax.f32 %v1079, 0.0
  %v1264 = vmax.f32 %v1080, 0.0
  %v1265 = vmax.f32 %v1081, 0.0
  %v1266 = vmax.f32 %v1082, 0.0
  %v1267 = vmax.f32 %v1083, 0.0
  %v1268 = vmax.f32 %v1084, 0.0
  %v1269 = vmax.f32 %v1085, 0.0
  %v1270 = vmax.f32 %v1086, 0.0
  %v1271 = vmax.f32 %v1087, 0.0
  %v1272 = vmax.f32 %v1088, 0.0
  %v1273 = vmax.f32 %v1089, 0.0
  %v1274 = vmax.f32 %v1090, 0.0
  %v1275 = vmax.f32 %v1091, 0.0
  %v1276 = vmax.f32 %v1092, 0.0
  %v1277 = vmax.f32 %v1093, 0.0
  %v1278 = vmax.f32 %v1094, 0.0
  %v1279 = vmax.f32 %v1095, 0.0
  %v1280 = vmax.f32 %v1096, 0.0
  %v1281 = vmax.f32 %v1097, 0.0
  %v1282 = vmax.f32 %v1098, 0.0
  %v1283 = vmax.f32 %v1099, 0.0
  %v1284 = vmax.f32 %v1100, 0.0
  %v1285 = vmax.f32 %v1101, 0.0
  %v1286 = vmax.f32 %v1102, 0.0
  %v1287 = vmax.f32 %v1103, 0.0
  %v1288 = vmax.f32 %v1104, 0.0
  %v1289 = vmax.f32 %v1105, 0.0
  %v1290 = vmax.f32 %v1106, 0.0
  %v1291 = vmax.f32 %v1107, 0.0
  %v1292 = vmax.f32 %v1108, 0.0
  %v1293 = vmax.f32 %v1109, 0.0
  %v1294 = vmax.f32 %v1110, 0.0
  %v1295 = vmax.f32 %v1111, 0.0
  %v1296 = vmax.f32 %v1112, 0.0
  %v1297 = vmax.f32 %v1113, 0.0
  %v1298 = vmax.f32 %v1114, 0.0
  %v1299 = vmax.f32 %v1115, 0.0
  %v1300 = vmax.f32 %v1116, 0.0
  %v1301 = vmax.f32 %v1117, 0.0
  %v1302 = vmax.f32 %v1118, 0.0
  %v1303 = vmax.f32 %v1119, 0.0
  %v1304 = vmax.f32 %v1120, 0.0
  %v1305 = vmax.f32 %v1121, 0.0
  %v1306 = vmax.f32 %v1122, 0.0
  %v1307 = vmax.f32 %v1123, 0.0
  %v1308 = vmax.f32 %v1124, 0.0
  %v1309 = vmax.f32 %v1125, 0.0
  %v1310 = vmax.f32 %v1126, 0.0
  %v1311 = vmax.f32 %v1127, 0.0
  %v1312 = vmax.f32 %v1128, 0.0
  %v1313 = vmax.f32 %v1129, 0.0
  %v1314 = vmax.f32 %v1130, 0.0
  %v1315 = vmax.f32 %v1131, 0.0
  %v1316 = vmax.f32 %v1132, 0.0
  %v1317 = vmax.f32 %v1133, 0.0
  %v1318 = vmax.f32 %v1134, 0.0
  %v1319 = vmax.f32 %v1135, 0.0
  %v1320 = vmax.f32 %v1136, 0.0
  %v1321 = vmax.f32 %v1137, 0.0
  %v1322 = vmax.f32 %v1138, 0.0
  %v1323 = vmax.f32 %v1139, 0.0
  %v1324 = vmax.f32 %v1140, 0.0
  %1325 = vset.pattern.permute.xlu0 1
  %1326 = vperm.xlu0 %1325, %v29
  %v1327 = vpop.permute.xlu0 %1326
  %1329 = vset.pattern.permute.xlu0 1
  %1330 = vperm.xlu0 %1329, %v30
  %v1331 = vpop.permute.xlu0 %1330
  %1333 = vset.pattern.permute.xlu0 1
  %1334 = vperm.xlu0 %1333, %v31
  %v1335 = vpop.permute.xlu0 %1334
  %1337 = vset.pattern.permute.xlu0 1
  %1338 = vperm.xlu0 %1337, %v32
  %v1339 = vpop.permute.xlu0 %1338
  %1341 = vset.pattern.permute.xlu0 1
  %1342 = vperm.xlu0 %1341, %v33
  %v1343 = vpop.permute.xlu0 %1342
  %1345 = vset.pattern.permute.xlu0 1
  %1346 = vperm.xlu0 %1345, %v34
  %v1347 = vpop.permute.xlu0 %1346
  %1349 = vset.pattern.permute.xlu0 1
  %1350 = vperm.xlu0 %1349, %v35
  %v1351 = vpop.permute.xlu0 %1350
  %1353 = vset.pattern.permute.xlu0 1
  %1354 = vperm.xlu0 %1353, %v36
  %v1355 = vpop.permute.xlu0 %1354
  %1357 = vset.pattern.permute.xlu0 1
  %1358 = vperm.xlu0 %1357, %v37
  %v1359 = vpop.permute.xlu0 %1358
  %1361 = vset.pattern.permute.xlu0 1
  %1362 = vperm.xlu0 %1361, %v38
  %v1363 = vpop.permute.xlu0 %1362
  %1365 = vset.pattern.permute.xlu0 1
  %1366 = vperm.xlu0 %1365, %v39
  %v1367 = vpop.permute.xlu0 %1366
  %1369 = vset.pattern.permute.xlu0 1
  %1370 = vperm.xlu0 %1369, %v40
  %v1371 = vpop.permute.xlu0 %1370
  %1373 = vset.pattern.permute.xlu0 1
  %1374 = vperm.xlu0 %1373, %v41
  %v1375 = vpop.permute.xlu0 %1374
  %1377 = vset.pattern.permute.xlu0 1
  %1378 = vperm.xlu0 %1377, %v42
  %v1379 = vpop.permute.xlu0 %1378
  %1381 = vset.pattern.permute.xlu0 1
  %1382 = vperm.xlu0 %1381, %v43
  %v1383 = vpop.permute.xlu0 %1382
  %1385 = vset.pattern.permute.xlu0 1
  %1386 = vperm.xlu0 %1385, %v44
  %v1387 = vpop.permute.xlu0 %1386
  %1389 = vset.pattern.permute.xlu0 1
  %1390 = vperm.xlu0 %1389, %v45
  %v1391 = vpop.permute.xlu0 %1390
  %1393 = vset.pattern.permute.xlu0 1
  %1394 = vperm.xlu0 %1393, %v46
  %v1395 = vpop.permute.xlu0 %1394
  %1397 = vset.pattern.permute.xlu0 1
  %1398 = vperm.xlu0 %1397, %v47
  %v1399 = vpop.permute.xlu0 %1398
  %1401 = vset.pattern.permute.xlu0 1
  %1402 = vperm.xlu0 %1401, %v48
  %v1403 = vpop.permute.xlu0 %1402
  %1405 = vset.pattern.permute.xlu0 1
  %1406 = vperm.xlu0 %1405, %v49
  %v1407 = vpop.permute.xlu0 %1406
  %1409 = vset.pattern.permute.xlu0 1
  %1410 = vperm.xlu0 %1409, %v50
  %v1411 = vpop.permute.xlu0 %1410
  %1413 = vset.pattern.permute.xlu0 1
  %1414 = vperm.xlu0 %1413, %v51
  %v1415 = vpop.permute.xlu0 %1414
  %1417 = vset.pattern.permute.xlu0 1
  %1418 = vperm.xlu0 %1417, %v52
  %v1419 = vpop.permute.xlu0 %1418
  %1421 = vset.pattern.permute.xlu0 1
  %1422 = vperm.xlu0 %1421, %v53
  %v1423 = vpop.permute.xlu0 %1422
  %1425 = vset.pattern.permute.xlu0 1
  %1426 = vperm.xlu0 %1425, %v54
  %v1427 = vpop.permute.xlu0 %1426
  %1429 = vset.pattern.permute.xlu0 1
  %1430 = vperm.xlu0 %1429, %v55
  %v1431 = vpop.permute.xlu0 %1430
  %1433 = vset.pattern.permute.xlu0 1
  %1434 = vperm.xlu0 %1433, %v56
  %v1435 = vpop.permute.xlu0 %1434
  %1437 = vset.pattern.permute.xlu0 1
  %1438 = vperm.xlu0 %1437, %v57
  %v1439 = vpop.permute.xlu0 %1438
  %1441 = vset.pattern.permute.xlu0 1
  %1442 = vperm.xlu0 %1441, %v58
  %v1443 = vpop.permute.xlu0 %1442
  %1445 = vset.pattern.permute.xlu0 1
  %1446 = vperm.xlu0 %1445, %v59
  %v1447 = vpop.permute.xlu0 %1446
  %1449 = vset.pattern.permute.xlu0 1
  %1450 = vperm.xlu0 %1449, %v60
  %v1451 = vpop.permute.xlu0 %1450
  %1453 = vset.pattern.permute.xlu0 1
  %1454 = vperm.xlu0 %1453, %v61
  %v1455 = vpop.permute.xlu0 %1454
  %1457 = vset.pattern.permute.xlu0 1
  %1458 = vperm.xlu0 %1457, %v62
  %v1459 = vpop.permute.xlu0 %1458
  %1461 = vset.pattern.permute.xlu0 1
  %1462 = vperm.xlu0 %1461, %v63
  %v1463 = vpop.permute.xlu0 %1462
  %1465 = vset.pattern.permute.xlu0 1
  %1466 = vperm.xlu0 %1465, %v64
  %v1467 = vpop.permute.xlu0 %1466
  %1469 = vset.pattern.permute.xlu0 1
  %1470 = vperm.xlu0 %1469, %v65
  %v1471 = vpop.permute.xlu0 %1470
  %1473 = vset.pattern.permute.xlu0 1
  %1474 = vperm.xlu0 %1473, %v66
  %v1475 = vpop.permute.xlu0 %1474
  %1477 = vset.pattern.permute.xlu0 1
  %1478 = vperm.xlu0 %1477, %v67
  %v1479 = vpop.permute.xlu0 %1478
  %1481 = vset.pattern.permute.xlu0 1
  %1482 = vperm.xlu0 %1481, %v68
  %v1483 = vpop.permute.xlu0 %1482
  %1485 = vset.pattern.permute.xlu0 1
  %1486 = vperm.xlu0 %1485, %v69
  %v1487 = vpop.permute.xlu0 %1486
  %1489 = vset.pattern.permute.xlu0 1
  %1490 = vperm.xlu0 %1489, %v70
  %v1491 = vpop.permute.xlu0 %1490
  %1493 = vset.pattern.permute.xlu0 1
  %1494 = vperm.xlu0 %1493, %v71
  %v1495 = vpop.permute.xlu0 %1494
  %1497 = vset.pattern.permute.xlu0 1
  %1498 = vperm.xlu0 %1497, %v72
  %v1499 = vpop.permute.xlu0 %1498
  %1501 = vset.pattern.permute.xlu0 1
  %1502 = vperm.xlu0 %1501, %v73
  %v1503 = vpop.permute.xlu0 %1502
  %1505 = vset.pattern.permute.xlu0 1
  %1506 = vperm.xlu0 %1505, %v74
  %v1507 = vpop.permute.xlu0 %1506
  %1509 = vset.pattern.permute.xlu0 1
  %1510 = vperm.xlu0 %1509, %v75
  %v1511 = vpop.permute.xlu0 %1510
  %1513 = vset.pattern.permute.xlu0 1
  %1514 = vperm.xlu0 %1513, %v76
  %v1515 = vpop.permute.xlu0 %1514
  %1517 = vset.pattern.permute.xlu0 1
  %1518 = vperm.xlu0 %1517, %v77
  %v1519 = vpop.permute.xlu0 %1518
  %1521 = vset.pattern.permute.xlu0 1
  %1522 = vperm.xlu0 %1521, %v78
  %v1523 = vpop.permute.xlu0 %1522
  %1525 = vset.pattern.permute.xlu0 1
  %1526 = vperm.xlu0 %1525, %v79
  %v1527 = vpop.permute.xlu0 %1526
  %1529 = vset.pattern.permute.xlu0 1
  %1530 = vperm.xlu0 %1529, %v80
  %v1531 = vpop.permute.xlu0 %1530
  %1533 = vset.pattern.permute.xlu0 1
  %1534 = vperm.xlu0 %1533, %v81
  %v1535 = vpop.permute.xlu0 %1534
  %1537 = vset.pattern.permute.xlu0 1
  %1538 = vperm.xlu0 %1537, %v82
  %v1539 = vpop.permute.xlu0 %1538
  %1541 = vset.pattern.permute.xlu0 1
  %1542 = vperm.xlu0 %1541, %v83
  %v1543 = vpop.permute.xlu0 %1542
  %1545 = vset.pattern.permute.xlu0 1
  %1546 = vperm.xlu0 %1545, %v84
  %v1547 = vpop.permute.xlu0 %1546
  %1549 = vset.pattern.permute.xlu0 1
  %1550 = vperm.xlu0 %1549, %v85
  %v1551 = vpop.permute.xlu0 %1550
  %1553 = vset.pattern.permute.xlu0 1
  %1554 = vperm.xlu0 %1553, %v86
  %v1555 = vpop.permute.xlu0 %1554
  %1557 = vset.pattern.permute.xlu0 1
  %1558 = vperm.xlu0 %1557, %v87
  %v1559 = vpop.permute.xlu0 %1558
  %1561 = vset.pattern.permute.xlu0 1
  %1562 = vperm.xlu0 %1561, %v88
  %v1563 = vpop.permute.xlu0 %1562
  %1565 = vset.pattern.permute.xlu0 1
  %1566 = vperm.xlu0 %1565, %v89
  %v1567 = vpop.permute.xlu0 %1566
  %1569 = vset.pattern.permute.xlu0 1
  %1570 = vperm.xlu0 %1569, %v90
  %v1571 = vpop.permute.xlu0 %1570
  %1573 = vset.pattern.permute.xlu0 1
  %1574 = vperm.xlu0 %1573, %v91
  %v1575 = vpop.permute.xlu0 %1574
  %1577 = vset.pattern.permute.xlu0 1
  %1578 = vperm.xlu0 %1577, %v92
  %v1579 = vpop.permute.xlu0 %1578
  %1581 = vset.pattern.permute.xlu0 1
  %1582 = vperm.xlu0 %1581, %v93
  %v1583 = vpop.permute.xlu0 %1582
  %1585 = vset.pattern.permute.xlu0 1
  %1586 = vperm.xlu0 %1585, %v94
  %v1587 = vpop.permute.xlu0 %1586
  %1589 = vset.pattern.permute.xlu0 1
  %1590 = vperm.xlu0 %1589, %v95
  %v1591 = vpop.permute.xlu0 %1590
  %1593 = vset.pattern.permute.xlu0 1
  %1594 = vperm.xlu0 %1593, %v96
  %v1595 = vpop.permute.xlu0 %1594
  %1597 = vset.pattern.permute.xlu0 1
  %1598 = vperm.xlu0 %1597, %v97
  %v1599 = vpop.permute.xlu0 %1598
  %1601 = vset.pattern.permute.xlu0 1
  %1602 = vperm.xlu0 %1601, %v98
  %v1603 = vpop.permute.xlu0 %1602
  %1605 = vset.pattern.permute.xlu0 1
  %1606 = vperm.xlu0 %1605, %v99
  %v1607 = vpop.permute.xlu0 %1606
  %1609 = vset.pattern.permute.xlu0 1
  %1610 = vperm.xlu0 %1609, %v100
  %v1611 = vpop.permute.xlu0 %1610
  %1613 = vset.pattern.permute.xlu0 1
  %1614 = vperm.xlu0 %1613, %v101
  %v1615 = vpop.permute.xlu0 %1614
  %1617 = vset.pattern.permute.xlu0 1
  %1618 = vperm.xlu0 %1617, %v102
  %v1619 = vpop.permute.xlu0 %1618
  %1621 = vset.pattern.permute.xlu0 1
  %1622 = vperm.xlu0 %1621, %v103
  %v1623 = vpop.permute.xlu0 %1622
  %1625 = vset.pattern.permute.xlu0 1
  %1626 = vperm.xlu0 %1625, %v104
  %v1627 = vpop.permute.xlu0 %1626
  %1629 = vset.pattern.permute.xlu0 1
  %1630 = vperm.xlu0 %1629, %v105
  %v1631 = vpop.permute.xlu0 %1630
  %1633 = vset.pattern.permute.xlu0 1
  %1634 = vperm.xlu0 %1633, %v106
  %v1635 = vpop.permute.xlu0 %1634
  %1637 = vset.pattern.permute.xlu0 1
  %1638 = vperm.xlu0 %1637, %v107
  %v1639 = vpop.permute.xlu0 %1638
  %1641 = vset.pattern.permute.xlu0 1
  %1642 = vperm.xlu0 %1641, %v108
  %v1643 = vpop.permute.xlu0 %1642
  %1645 = vset.pattern.permute.xlu0 1
  %1646 = vperm.xlu0 %1645, %v109
  %v1647 = vpop.permute.xlu0 %1646
  %1649 = vset.pattern.permute.xlu0 1
  %1650 = vperm.xlu0 %1649, %v110
  %v1651 = vpop.permute.xlu0 %1650
  %1653 = vset.pattern.permute.xlu0 1
  %1654 = vperm.xlu0 %1653, %v111
  %v1655 = vpop.permute.xlu0 %1654
  %1657 = vset.pattern.permute.xlu0 1
  %1658 = vperm.xlu0 %1657, %v112
  %v1659 = vpop.permute.xlu0 %1658
  %1661 = vset.pattern.permute.xlu0 1
  %1662 = vperm.xlu0 %1661, %v113
  %v1663 = vpop.permute.xlu0 %1662
  %1665 = vset.pattern.permute.xlu0 1
  %1666 = vperm.xlu0 %1665, %v114
  %v1667 = vpop.permute.xlu0 %1666
  %1669 = vset.pattern.permute.xlu0 1
  %1670 = vperm.xlu0 %1669, %v115
  %v1671 = vpop.permute.xlu0 %1670
  %1673 = vset.pattern.permute.xlu0 1
  %1674 = vperm.xlu0 %1673, %v116
  %v1675 = vpop.permute.xlu0 %1674
  %1677 = vset.pattern.permute.xlu0 1
  %1678 = vperm.xlu0 %1677, %v117
  %v1679 = vpop.permute.xlu0 %1678
  %1681 = vset.pattern.permute.xlu0 1
  %1682 = vperm.xlu0 %1681, %v118
  %v1683 = vpop.permute.xlu0 %1682
  %1685 = vset.pattern.permute.xlu0 1
  %1686 = vperm.xlu0 %1685, %v119
  %v1687 = vpop.permute.xlu0 %1686
  %1689 = vset.pattern.permute.xlu0 1
  %1690 = vperm.xlu0 %1689, %v120
  %v1691 = vpop.permute.xlu0 %1690
  %v1693 = vperm.slane %v121, 1
  %v1694 = vperm.slane %v121, 5
  %v1697 = vperm.slane %v1693, 1
  %v1698 = vperm.slane %v1694, 1
  %v1699 = vsub.f32 %v1327, %v1697
  %v1700 = vsub.f32 %v1327, %v1698
  %v1701 = vsub.f32 %v1331, %v1697
  %v1702 = vsub.f32 %v1331, %v1698
  %v1703 = vsub.f32 %v1335, %v1697
  %v1704 = vsub.f32 %v1335, %v1698
  %v1705 = vsub.f32 %v1339, %v1697
  %v1706 = vsub.f32 %v1339, %v1698
  %v1707 = vsub.f32 %v1343, %v1697
  %v1708 = vsub.f32 %v1343, %v1698
  %v1709 = vsub.f32 %v1347, %v1697
  %v1710 = vsub.f32 %v1347, %v1698
  %v1711 = vsub.f32 %v1351, %v1697
  %v1712 = vsub.f32 %v1351, %v1698
  %v1713 = vsub.f32 %v1355, %v1697
  %v1714 = vsub.f32 %v1355, %v1698
  %v1715 = vsub.f32 %v1359, %v1697
  %v1716 = vsub.f32 %v1359, %v1698
  %v1717 = vsub.f32 %v1363, %v1697
  %v1718 = vsub.f32 %v1363, %v1698
  %v1719 = vsub.f32 %v1367, %v1697
  %v1720 = vsub.f32 %v1367, %v1698
  %v1721 = vsub.f32 %v1371, %v1697
  %v1722 = vsub.f32 %v1371, %v1698
  %v1723 = vsub.f32 %v1375, %v1697
  %v1724 = vsub.f32 %v1375, %v1698
  %v1725 = vsub.f32 %v1379, %v1697
  %v1726 = vsub.f32 %v1379, %v1698
  %v1727 = vsub.f32 %v1383, %v1697
  %v1728 = vsub.f32 %v1383, %v1698
  %v1729 = vsub.f32 %v1387, %v1697
  %v1730 = vsub.f32 %v1387, %v1698
  %v1731 = vsub.f32 %v1391, %v1697
  %v1732 = vsub.f32 %v1391, %v1698
  %v1733 = vsub.f32 %v1395, %v1697
  %v1734 = vsub.f32 %v1395, %v1698
  %v1735 = vsub.f32 %v1399, %v1697
  %v1736 = vsub.f32 %v1399, %v1698
  %v1737 = vsub.f32 %v1403, %v1697
  %v1738 = vsub.f32 %v1403, %v1698
  %v1739 = vsub.f32 %v1407, %v1697
  %v1740 = vsub.f32 %v1407, %v1698
  %v1741 = vsub.f32 %v1411, %v1697
  %v1742 = vsub.f32 %v1411, %v1698
  %v1743 = vsub.f32 %v1415, %v1697
  %v1744 = vsub.f32 %v1415, %v1698
  %v1745 = vsub.f32 %v1419, %v1697
  %v1746 = vsub.f32 %v1419, %v1698
  %v1747 = vsub.f32 %v1423, %v1697
  %v1748 = vsub.f32 %v1423, %v1698
  %v1749 = vsub.f32 %v1427, %v1697
  %v1750 = vsub.f32 %v1427, %v1698
  %v1751 = vsub.f32 %v1431, %v1697
  %v1752 = vsub.f32 %v1431, %v1698
  %v1753 = vsub.f32 %v1435, %v1697
  %v1754 = vsub.f32 %v1435, %v1698
  %v1755 = vsub.f32 %v1439, %v1697
  %v1756 = vsub.f32 %v1439, %v1698
  %v1757 = vsub.f32 %v1443, %v1697
  %v1758 = vsub.f32 %v1443, %v1698
  %v1759 = vsub.f32 %v1447, %v1697
  %v1760 = vsub.f32 %v1447, %v1698
  %v1761 = vsub.f32 %v1451, %v1697
  %v1762 = vsub.f32 %v1451, %v1698
  %v1763 = vsub.f32 %v1455, %v1697
  %v1764 = vsub.f32 %v1455, %v1698
  %v1765 = vsub.f32 %v1459, %v1697
  %v1766 = vsub.f32 %v1459, %v1698
  %v1767 = vsub.f32 %v1463, %v1697
  %v1768 = vsub.f32 %v1463, %v1698
  %v1769 = vsub.f32 %v1467, %v1697
  %v1770 = vsub.f32 %v1467, %v1698
  %v1771 = vsub.f32 %v1471, %v1697
  %v1772 = vsub.f32 %v1471, %v1698
  %v1773 = vsub.f32 %v1475, %v1697
  %v1774 = vsub.f32 %v1475, %v1698
  %v1775 = vsub.f32 %v1479, %v1697
  %v1776 = vsub.f32 %v1479, %v1698
  %v1777 = vsub.f32 %v1483, %v1697
  %v1778 = vsub.f32 %v1483, %v1698
  %v1779 = vsub.f32 %v1487, %v1697
  %v1780 = vsub.f32 %v1487, %v1698
  %v1781 = vsub.f32 %v1491, %v1697
  %v1782 = vsub.f32 %v1491, %v1698
  %v1783 = vsub.f32 %v1495, %v1697
  %v1784 = vsub.f32 %v1495, %v1698
  %v1785 = vsub.f32 %v1499, %v1697
  %v1786 = vsub.f32 %v1499, %v1698
  %v1787 = vsub.f32 %v1503, %v1697
  %v1788 = vsub.f32 %v1503, %v1698
  %v1789 = vsub.f32 %v1507, %v1697
  %v1790 = vsub.f32 %v1507, %v1698
  %v1791 = vsub.f32 %v1511, %v1697
  %v1792 = vsub.f32 %v1511, %v1698
  %v1793 = vsub.f32 %v1515, %v1697
  %v1794 = vsub.f32 %v1515, %v1698
  %v1795 = vsub.f32 %v1519, %v1697
  %v1796 = vsub.f32 %v1519, %v1698
  %v1797 = vsub.f32 %v1523, %v1697
  %v1798 = vsub.f32 %v1523, %v1698
  %v1799 = vsub.f32 %v1527, %v1697
  %v1800 = vsub.f32 %v1527, %v1698
  %v1801 = vsub.f32 %v1531, %v1697
  %v1802 = vsub.f32 %v1531, %v1698
  %v1803 = vsub.f32 %v1535, %v1697
  %v1804 = vsub.f32 %v1535, %v1698
  %v1805 = vsub.f32 %v1539, %v1697
  %v1806 = vsub.f32 %v1539, %v1698
  %v1807 = vsub.f32 %v1543, %v1697
  %v1808 = vsub.f32 %v1543, %v1698
  %v1809 = vsub.f32 %v1547, %v1697
  %v1810 = vsub.f32 %v1547, %v1698
  %v1811 = vsub.f32 %v1551, %v1697
  %v1812 = vsub.f32 %v1551, %v1698
  %v1813 = vsub.f32 %v1555, %v1697
  %v1814 = vsub.f32 %v1555, %v1698
  %v1815 = vsub.f32 %v1559, %v1697
  %v1816 = vsub.f32 %v1559, %v1698
  %v1817 = vsub.f32 %v1563, %v1697
  %v1818 = vsub.f32 %v1563, %v1698
  %v1819 = vsub.f32 %v1567, %v1697
  %v1820 = vsub.f32 %v1567, %v1698
  %v1821 = vsub.f32 %v1571, %v1697
  %v1822 = vsub.f32 %v1571, %v1698
  %v1823 = vsub.f32 %v1575, %v1697
  %v1824 = vsub.f32 %v1575, %v1698
  %v1825 = vsub.f32 %v1579, %v1697
  %v1826 = vsub.f32 %v1579, %v1698
  %v1827 = vsub.f32 %v1583, %v1697
  %v1828 = vsub.f32 %v1583, %v1698
  %v1829 = vsub.f32 %v1587, %v1697
  %v1830 = vsub.f32 %v1587, %v1698
  %v1831 = vsub.f32 %v1591, %v1697
  %v1832 = vsub.f32 %v1591, %v1698
  %v1833 = vsub.f32 %v1595, %v1697
  %v1834 = vsub.f32 %v1595, %v1698
  %v1835 = vsub.f32 %v1599, %v1697
  %v1836 = vsub.f32 %v1599, %v1698
  %v1837 = vsub.f32 %v1603, %v1697
  %v1838 = vsub.f32 %v1603, %v1698
  %v1839 = vsub.f32 %v1607, %v1697
  %v1840 = vsub.f32 %v1607, %v1698
  %v1841 = vsub.f32 %v1611, %v1697
  %v1842 = vsub.f32 %v1611, %v1698
  %v1843 = vsub.f32 %v1615, %v1697
  %v1844 = vsub.f32 %v1615, %v1698
  %v1845 = vsub.f32 %v1619, %v1697
  %v1846 = vsub.f32 %v1619, %v1698
  %v1847 = vsub.f32 %v1623, %v1697
  %v1848 = vsub.f32 %v1623, %v1698
  %v1849 = vsub.f32 %v1627, %v1697
  %v1850 = vsub.f32 %v1627, %v1698
  %v1851 = vsub.f32 %v1631, %v1697
  %v1852 = vsub.f32 %v1631, %v1698
  %v1853 = vsub.f32 %v1635, %v1697
  %v1854 = vsub.f32 %v1635, %v1698
  %v1855 = vsub.f32 %v1639, %v1697
  %v1856 = vsub.f32 %v1639, %v1698
  %v1857 = vsub.f32 %v1643, %v1697
  %v1858 = vsub.f32 %v1643, %v1698
  %v1859 = vsub.f32 %v1647, %v1697
  %v1860 = vsub.f32 %v1647, %v1698
  %v1861 = vsub.f32 %v1651, %v1697
  %v1862 = vsub.f32 %v1651, %v1698
  %v1863 = vsub.f32 %v1655, %v1697
  %v1864 = vsub.f32 %v1655, %v1698
  %v1865 = vsub.f32 %v1659, %v1697
  %v1866 = vsub.f32 %v1659, %v1698
  %v1867 = vsub.f32 %v1663, %v1697
  %v1868 = vsub.f32 %v1663, %v1698
  %v1869 = vsub.f32 %v1667, %v1697
  %v1870 = vsub.f32 %v1667, %v1698
  %v1871 = vsub.f32 %v1671, %v1697
  %v1872 = vsub.f32 %v1671, %v1698
  %v1873 = vsub.f32 %v1675, %v1697
  %v1874 = vsub.f32 %v1675, %v1698
  %v1875 = vsub.f32 %v1679, %v1697
  %v1876 = vsub.f32 %v1679, %v1698
  %v1877 = vsub.f32 %v1683, %v1697
  %v1878 = vsub.f32 %v1683, %v1698
  %v1879 = vsub.f32 %v1687, %v1697
  %v1880 = vsub.f32 %v1687, %v1698
  %v1881 = vsub.f32 %v1691, %v1697
  %v1882 = vsub.f32 %v1691, %v1698
  %v1883 = vand.u32 2147483647, %v1699
  %v1884 = vand.u32 2147483647, %v1700
  %v1885 = vand.u32 2147483647, %v1701
  %v1886 = vand.u32 2147483647, %v1702
  %v1887 = vand.u32 2147483647, %v1703
  %v1888 = vand.u32 2147483647, %v1704
  %v1889 = vand.u32 2147483647, %v1705
  %v1890 = vand.u32 2147483647, %v1706
  %v1891 = vand.u32 2147483647, %v1707
  %v1892 = vand.u32 2147483647, %v1708
  %v1893 = vand.u32 2147483647, %v1709
  %v1894 = vand.u32 2147483647, %v1710
  %v1895 = vand.u32 2147483647, %v1711
  %v1896 = vand.u32 2147483647, %v1712
  %v1897 = vand.u32 2147483647, %v1713
  %v1898 = vand.u32 2147483647, %v1714
  %v1899 = vand.u32 2147483647, %v1715
  %v1900 = vand.u32 2147483647, %v1716
  %v1901 = vand.u32 2147483647, %v1717
  %v1902 = vand.u32 2147483647, %v1718
  %v1903 = vand.u32 2147483647, %v1719
  %v1904 = vand.u32 2147483647, %v1720
  %v1905 = vand.u32 2147483647, %v1721
  %v1906 = vand.u32 2147483647, %v1722
  %v1907 = vand.u32 2147483647, %v1723
  %v1908 = vand.u32 2147483647, %v1724
  %v1909 = vand.u32 2147483647, %v1725
  %v1910 = vand.u32 2147483647, %v1726
  %v1911 = vand.u32 2147483647, %v1727
  %v1912 = vand.u32 2147483647, %v1728
  %v1913 = vand.u32 2147483647, %v1729
  %v1914 = vand.u32 2147483647, %v1730
  %v1915 = vand.u32 2147483647, %v1731
  %v1916 = vand.u32 2147483647, %v1732
  %v1917 = vand.u32 2147483647, %v1733
  %v1918 = vand.u32 2147483647, %v1734
  %v1919 = vand.u32 2147483647, %v1735
  %v1920 = vand.u32 2147483647, %v1736
  %v1921 = vand.u32 2147483647, %v1737
  %v1922 = vand.u32 2147483647, %v1738
  %v1923 = vand.u32 2147483647, %v1739
  %v1924 = vand.u32 2147483647, %v1740
  %v1925 = vand.u32 2147483647, %v1741
  %v1926 = vand.u32 2147483647, %v1742
  %v1927 = vand.u32 2147483647, %v1743
  %v1928 = vand.u32 2147483647, %v1744
  %v1929 = vand.u32 2147483647, %v1745
  %v1930 = vand.u32 2147483647, %v1746
  %v1931 = vand.u32 2147483647, %v1747
  %v1932 = vand.u32 2147483647, %v1748
  %v1933 = vand.u32 2147483647, %v1749
  %v1934 = vand.u32 2147483647, %v1750
  %v1935 = vand.u32 2147483647, %v1751
  %v1936 = vand.u32 2147483647, %v1752
  %v1937 = vand.u32 2147483647, %v1753
  %v1938 = vand.u32 2147483647, %v1754
  %v1939 = vand.u32 2147483647, %v1755
  %v1940 = vand.u32 2147483647, %v1756
  %v1941 = vand.u32 2147483647, %v1757
  %v1942 = vand.u32 2147483647, %v1758
  %v1943 = vand.u32 2147483647, %v1759
  %v1944 = vand.u32 2147483647, %v1760
  %v1945 = vand.u32 2147483647, %v1761
  %v1946 = vand.u32 2147483647, %v1762
  %v1947 = vand.u32 2147483647, %v1763
  %v1948 = vand.u32 2147483647, %v1764
  %v1949 = vand.u32 2147483647, %v1765
  %v1950 = vand.u32 2147483647, %v1766
  %v1951 = vand.u32 2147483647, %v1767
  %v1952 = vand.u32 2147483647, %v1768
  %v1953 = vand.u32 2147483647, %v1769
  %v1954 = vand.u32 2147483647, %v1770
  %v1955 = vand.u32 2147483647, %v1771
  %v1956 = vand.u32 2147483647, %v1772
  %v1957 = vand.u32 2147483647, %v1773
  %v1958 = vand.u32 2147483647, %v1774
  %v1959 = vand.u32 2147483647, %v1775
  %v1960 = vand.u32 2147483647, %v1776
  %v1961 = vand.u32 2147483647, %v1777
  %v1962 = vand.u32 2147483647, %v1778
  %v1963 = vand.u32 2147483647, %v1779
  %v1964 = vand.u32 2147483647, %v1780
  %v1965 = vand.u32 2147483647, %v1781
  %v1966 = vand.u32 2147483647, %v1782
  %v1967 = vand.u32 2147483647, %v1783
  %v1968 = vand.u32 2147483647, %v1784
  %v1969 = vand.u32 2147483647, %v1785
  %v1970 = vand.u32 2147483647, %v1786
  %v1971 = vand.u32 2147483647, %v1787
  %v1972 = vand.u32 2147483647, %v1788
  %v1973 = vand.u32 2147483647, %v1789
  %v1974 = vand.u32 2147483647, %v1790
  %v1975 = vand.u32 2147483647, %v1791
  %v1976 = vand.u32 2147483647, %v1792
  %v1977 = vand.u32 2147483647, %v1793
  %v1978 = vand.u32 2147483647, %v1794
  %v1979 = vand.u32 2147483647, %v1795
  %v1980 = vand.u32 2147483647, %v1796
  %v1981 = vand.u32 2147483647, %v1797
  %v1982 = vand.u32 2147483647, %v1798
  %v1983 = vand.u32 2147483647, %v1799
  %v1984 = vand.u32 2147483647, %v1800
  %v1985 = vand.u32 2147483647, %v1801
  %v1986 = vand.u32 2147483647, %v1802
  %v1987 = vand.u32 2147483647, %v1803
  %v1988 = vand.u32 2147483647, %v1804
  %v1989 = vand.u32 2147483647, %v1805
  %v1990 = vand.u32 2147483647, %v1806
  %v1991 = vand.u32 2147483647, %v1807
  %v1992 = vand.u32 2147483647, %v1808
  %v1993 = vand.u32 2147483647, %v1809
  %v1994 = vand.u32 2147483647, %v1810
  %v1995 = vand.u32 2147483647, %v1811
  %v1996 = vand.u32 2147483647, %v1812
  %v1997 = vand.u32 2147483647, %v1813
  %v1998 = vand.u32 2147483647, %v1814
  %v1999 = vand.u32 2147483647, %v1815
  %v2000 = vand.u32 2147483647, %v1816
  %v2001 = vand.u32 2147483647, %v1817
  %v2002 = vand.u32 2147483647, %v1818
  %v2003 = vand.u32 2147483647, %v1819
  %v2004 = vand.u32 2147483647, %v1820
  %v2005 = vand.u32 2147483647, %v1821
  %v2006 = vand.u32 2147483647, %v1822
  %v2007 = vand.u32 2147483647, %v1823
  %v2008 = vand.u32 2147483647, %v1824
  %v2009 = vand.u32 2147483647, %v1825
  %v2010 = vand.u32 2147483647, %v1826
  %v2011 = vand.u32 2147483647, %v1827
  %v2012 = vand.u32 2147483647, %v1828
  %v2013 = vand.u32 2147483647, %v1829
  %v2014 = vand.u32 2147483647, %v1830
  %v2015 = vand.u32 2147483647, %v1831
  %v2016 = vand.u32 2147483647, %v1832
  %v2017 = vand.u32 2147483647, %v1833
  %v2018 = vand.u32 2147483647, %v1834
  %v2019 = vand.u32 2147483647, %v1835
  %v2020 = vand.u32 2147483647, %v1836
  %v2021 = vand.u32 2147483647, %v1837
  %v2022 = vand.u32 2147483647, %v1838
  %v2023 = vand.u32 2147483647, %v1839
  %v2024 = vand.u32 2147483647, %v1840
  %v2025 = vand.u32 2147483647, %v1841
  %v2026 = vand.u32 2147483647, %v1842
  %v2027 = vand.u32 2147483647, %v1843
  %v2028 = vand.u32 2147483647, %v1844
  %v2029 = vand.u32 2147483647, %v1845
  %v2030 = vand.u32 2147483647, %v1846
  %v2031 = vand.u32 2147483647, %v1847
  %v2032 = vand.u32 2147483647, %v1848
  %v2033 = vand.u32 2147483647, %v1849
  %v2034 = vand.u32 2147483647, %v1850
  %v2035 = vand.u32 2147483647, %v1851
  %v2036 = vand.u32 2147483647, %v1852
  %v2037 = vand.u32 2147483647, %v1853
  %v2038 = vand.u32 2147483647, %v1854
  %v2039 = vand.u32 2147483647, %v1855
  %v2040 = vand.u32 2147483647, %v1856
  %v2041 = vand.u32 2147483647, %v1857
  %v2042 = vand.u32 2147483647, %v1858
  %v2043 = vand.u32 2147483647, %v1859
  %v2044 = vand.u32 2147483647, %v1860
  %v2045 = vand.u32 2147483647, %v1861
  %v2046 = vand.u32 2147483647, %v1862
  %v2047 = vand.u32 2147483647, %v1863
  %v2048 = vand.u32 2147483647, %v1864
  %v2049 = vand.u32 2147483647, %v1865
  %v2050 = vand.u32 2147483647, %v1866
  %v2051 = vand.u32 2147483647, %v1867
  %v2052 = vand.u32 2147483647, %v1868
  %v2053 = vand.u32 2147483647, %v1869
  %v2054 = vand.u32 2147483647, %v1870
  %v2055 = vand.u32 2147483647, %v1871
  %v2056 = vand.u32 2147483647, %v1872
  %v2057 = vand.u32 2147483647, %v1873
  %v2058 = vand.u32 2147483647, %v1874
  %v2059 = vand.u32 2147483647, %v1875
  %v2060 = vand.u32 2147483647, %v1876
  %v2061 = vand.u32 2147483647, %v1877
  %v2062 = vand.u32 2147483647, %v1878
  %v2063 = vand.u32 2147483647, %v1879
  %v2064 = vand.u32 2147483647, %v1880
  %v2065 = vand.u32 2147483647, %v1881
  %v2066 = vand.u32 2147483647, %v1882
  %v2067 = vsub.f32 1.0, %v1883
  %v2068 = vsub.f32 1.0, %v1884
  %v2069 = vsub.f32 1.0, %v1885
  %v2070 = vsub.f32 1.0, %v1886
  %v2071 = vsub.f32 1.0, %v1887
  %v2072 = vsub.f32 1.0, %v1888
  %v2073 = vsub.f32 1.0, %v1889
  %v2074 = vsub.f32 1.0, %v1890
  %v2075 = vsub.f32 1.0, %v1891
  %v2076 = vsub.f32 1.0, %v1892
  %v2077 = vsub.f32 1.0, %v1893
  %v2078 = vsub.f32 1.0, %v1894
  %v2079 = vsub.f32 1.0, %v1895
  %v2080 = vsub.f32 1.0, %v1896
  %v2081 = vsub.f32 1.0, %v1897
  %v2082 = vsub.f32 1.0, %v1898
  %v2083 = vsub.f32 1.0, %v1899
  %v2084 = vsub.f32 1.0, %v1900
  %v2085 = vsub.f32 1.0, %v1901
  %v2086 = vsub.f32 1.0, %v1902
  %v2087 = vsub.f32 1.0, %v1903
  %v2088 = vsub.f32 1.0, %v1904
  %v2089 = vsub.f32 1.0, %v1905
  %v2090 = vsub.f32 1.0, %v1906
  %v2091 = vsub.f32 1.0, %v1907
  %v2092 = vsub.f32 1.0, %v1908
  %v2093 = vsub.f32 1.0, %v1909
  %v2094 = vsub.f32 1.0, %v1910
  %v2095 = vsub.f32 1.0, %v1911
  %v2096 = vsub.f32 1.0, %v1912
  %v2097 = vsub.f32 1.0, %v1913
  %v2098 = vsub.f32 1.0, %v1914
  %v2099 = vsub.f32 1.0, %v1915
  %v2100 = vsub.f32 1.0, %v1916
  %v2101 = vsub.f32 1.0, %v1917
  %v2102 = vsub.f32 1.0, %v1918
  %v2103 = vsub.f32 1.0, %v1919
  %v2104 = vsub.f32 1.0, %v1920
  %v2105 = vsub.f32 1.0, %v1921
  %v2106 = vsub.f32 1.0, %v1922
  %v2107 = vsub.f32 1.0, %v1923
  %v2108 = vsub.f32 1.0, %v1924
  %v2109 = vsub.f32 1.0, %v1925
  %v2110 = vsub.f32 1.0, %v1926
  %v2111 = vsub.f32 1.0, %v1927
  %v2112 = vsub.f32 1.0, %v1928
  %v2113 = vsub.f32 1.0, %v1929
  %v2114 = vsub.f32 1.0, %v1930
  %v2115 = vsub.f32 1.0, %v1931
  %v2116 = vsub.f32 1.0, %v1932
  %v2117 = vsub.f32 1.0, %v1933
  %v2118 = vsub.f32 1.0, %v1934
  %v2119 = vsub.f32 1.0, %v1935
  %v2120 = vsub.f32 1.0, %v1936
  %v2121 = vsub.f32 1.0, %v1937
  %v2122 = vsub.f32 1.0, %v1938
  %v2123 = vsub.f32 1.0, %v1939
  %v2124 = vsub.f32 1.0, %v1940
  %v2125 = vsub.f32 1.0, %v1941
  %v2126 = vsub.f32 1.0, %v1942
  %v2127 = vsub.f32 1.0, %v1943
  %v2128 = vsub.f32 1.0, %v1944
  %v2129 = vsub.f32 1.0, %v1945
  %v2130 = vsub.f32 1.0, %v1946
  %v2131 = vsub.f32 1.0, %v1947
  %v2132 = vsub.f32 1.0, %v1948
  %v2133 = vsub.f32 1.0, %v1949
  %v2134 = vsub.f32 1.0, %v1950
  %v2135 = vsub.f32 1.0, %v1951
  %v2136 = vsub.f32 1.0, %v1952
  %v2137 = vsub.f32 1.0, %v1953
  %v2138 = vsub.f32 1.0, %v1954
  %v2139 = vsub.f32 1.0, %v1955
  %v2140 = vsub.f32 1.0, %v1956
  %v2141 = vsub.f32 1.0, %v1957
  %v2142 = vsub.f32 1.0, %v1958
  %v2143 = vsub.f32 1.0, %v1959
  %v2144 = vsub.f32 1.0, %v1960
  %v2145 = vsub.f32 1.0, %v1961
  %v2146 = vsub.f32 1.0, %v1962
  %v2147 = vsub.f32 1.0, %v1963
  %v2148 = vsub.f32 1.0, %v1964
  %v2149 = vsub.f32 1.0, %v1965
  %v2150 = vsub.f32 1.0, %v1966
  %v2151 = vsub.f32 1.0, %v1967
  %v2152 = vsub.f32 1.0, %v1968
  %v2153 = vsub.f32 1.0, %v1969
  %v2154 = vsub.f32 1.0, %v1970
  %v2155 = vsub.f32 1.0, %v1971
  %v2156 = vsub.f32 1.0, %v1972
  %v2157 = vsub.f32 1.0, %v1973
  %v2158 = vsub.f32 1.0, %v1974
  %v2159 = vsub.f32 1.0, %v1975
  %v2160 = vsub.f32 1.0, %v1976
  %v2161 = vsub.f32 1.0, %v1977
  %v2162 = vsub.f32 1.0, %v1978
  %v2163 = vsub.f32 1.0, %v1979
  %v2164 = vsub.f32 1.0, %v1980
  %v2165 = vsub.f32 1.0, %v1981
  %v2166 = vsub.f32 1.0, %v1982
  %v2167 = vsub.f32 1.0, %v1983
  %v2168 = vsub.f32 1.0, %v1984
  %v2169 = vsub.f32 1.0, %v1985
  %v2170 = vsub.f32 1.0, %v1986
  %v2171 = vsub.f32 1.0, %v1987
  %v2172 = vsub.f32 1.0, %v1988
  %v2173 = vsub.f32 1.0, %v1989
  %v2174 = vsub.f32 1.0, %v1990
  %v2175 = vsub.f32 1.0, %v1991
  %v2176 = vsub.f32 1.0, %v1992
  %v2177 = vsub.f32 1.0, %v1993
  %v2178 = vsub.f32 1.0, %v1994
  %v2179 = vsub.f32 1.0, %v1995
  %v2180 = vsub.f32 1.0, %v1996
  %v2181 = vsub.f32 1.0, %v1997
  %v2182 = vsub.f32 1.0, %v1998
  %v2183 = vsub.f32 1.0, %v1999
  %v2184 = vsub.f32 1.0, %v2000
  %v2185 = vsub.f32 1.0, %v2001
  %v2186 = vsub.f32 1.0, %v2002
  %v2187 = vsub.f32 1.0, %v2003
  %v2188 = vsub.f32 1.0, %v2004
  %v2189 = vsub.f32 1.0, %v2005
  %v2190 = vsub.f32 1.0, %v2006
  %v2191 = vsub.f32 1.0, %v2007
  %v2192 = vsub.f32 1.0, %v2008
  %v2193 = vsub.f32 1.0, %v2009
  %v2194 = vsub.f32 1.0, %v2010
  %v2195 = vsub.f32 1.0, %v2011
  %v2196 = vsub.f32 1.0, %v2012
  %v2197 = vsub.f32 1.0, %v2013
  %v2198 = vsub.f32 1.0, %v2014
  %v2199 = vsub.f32 1.0, %v2015
  %v2200 = vsub.f32 1.0, %v2016
  %v2201 = vsub.f32 1.0, %v2017
  %v2202 = vsub.f32 1.0, %v2018
  %v2203 = vsub.f32 1.0, %v2019
  %v2204 = vsub.f32 1.0, %v2020
  %v2205 = vsub.f32 1.0, %v2021
  %v2206 = vsub.f32 1.0, %v2022
  %v2207 = vsub.f32 1.0, %v2023
  %v2208 = vsub.f32 1.0, %v2024
  %v2209 = vsub.f32 1.0, %v2025
  %v2210 = vsub.f32 1.0, %v2026
  %v2211 = vsub.f32 1.0, %v2027
  %v2212 = vsub.f32 1.0, %v2028
  %v2213 = vsub.f32 1.0, %v2029
  %v2214 = vsub.f32 1.0, %v2030
  %v2215 = vsub.f32 1.0, %v2031
  %v2216 = vsub.f32 1.0, %v2032
  %v2217 = vsub.f32 1.0, %v2033
  %v2218 = vsub.f32 1.0, %v2034
  %v2219 = vsub.f32 1.0, %v2035
  %v2220 = vsub.f32 1.0, %v2036
  %v2221 = vsub.f32 1.0, %v2037
  %v2222 = vsub.f32 1.0, %v2038
  %v2223 = vsub.f32 1.0, %v2039
  %v2224 = vsub.f32 1.0, %v2040
  %v2225 = vsub.f32 1.0, %v2041
  %v2226 = vsub.f32 1.0, %v2042
  %v2227 = vsub.f32 1.0, %v2043
  %v2228 = vsub.f32 1.0, %v2044
  %v2229 = vsub.f32 1.0, %v2045
  %v2230 = vsub.f32 1.0, %v2046
  %v2231 = vsub.f32 1.0, %v2047
  %v2232 = vsub.f32 1.0, %v2048
  %v2233 = vsub.f32 1.0, %v2049
  %v2234 = vsub.f32 1.0, %v2050
  %v2235 = vsub.f32 1.0, %v2051
  %v2236 = vsub.f32 1.0, %v2052
  %v2237 = vsub.f32 1.0, %v2053
  %v2238 = vsub.f32 1.0, %v2054
  %v2239 = vsub.f32 1.0, %v2055
  %v2240 = vsub.f32 1.0, %v2056
  %v2241 = vsub.f32 1.0, %v2057
  %v2242 = vsub.f32 1.0, %v2058
  %v2243 = vsub.f32 1.0, %v2059
  %v2244 = vsub.f32 1.0, %v2060
  %v2245 = vsub.f32 1.0, %v2061
  %v2246 = vsub.f32 1.0, %v2062
  %v2247 = vsub.f32 1.0, %v2063
  %v2248 = vsub.f32 1.0, %v2064
  %v2249 = vsub.f32 1.0, %v2065
  %v2250 = vsub.f32 1.0, %v2066
  %v2251 = vmax.f32 %v2067, 0.0
  %v2252 = vmax.f32 %v2068, 0.0
  %v2253 = vmax.f32 %v2069, 0.0
  %v2254 = vmax.f32 %v2070, 0.0
  %v2255 = vmax.f32 %v2071, 0.0
  %v2256 = vmax.f32 %v2072, 0.0
  %v2257 = vmax.f32 %v2073, 0.0
  %v2258 = vmax.f32 %v2074, 0.0
  %v2259 = vmax.f32 %v2075, 0.0
  %v2260 = vmax.f32 %v2076, 0.0
  %v2261 = vmax.f32 %v2077, 0.0
  %v2262 = vmax.f32 %v2078, 0.0
  %v2263 = vmax.f32 %v2079, 0.0
  %v2264 = vmax.f32 %v2080, 0.0
  %v2265 = vmax.f32 %v2081, 0.0
  %v2266 = vmax.f32 %v2082, 0.0
  %v2267 = vmax.f32 %v2083, 0.0
  %v2268 = vmax.f32 %v2084, 0.0
  %v2269 = vmax.f32 %v2085, 0.0
  %v2270 = vmax.f32 %v2086, 0.0
  %v2271 = vmax.f32 %v2087, 0.0
  %v2272 = vmax.f32 %v2088, 0.0
  %v2273 = vmax.f32 %v2089, 0.0
  %v2274 = vmax.f32 %v2090, 0.0
  %v2275 = vmax.f32 %v2091, 0.0
  %v2276 = vmax.f32 %v2092, 0.0
  %v2277 = vmax.f32 %v2093, 0.0
  %v2278 = vmax.f32 %v2094, 0.0
  %v2279 = vmax.f32 %v2095, 0.0
  %v2280 = vmax.f32 %v2096, 0.0
  %v2281 = vmax.f32 %v2097, 0.0
  %v2282 = vmax.f32 %v2098, 0.0
  %v2283 = vmax.f32 %v2099, 0.0
  %v2284 = vmax.f32 %v2100, 0.0
  %v2285 = vmax.f32 %v2101, 0.0
  %v2286 = vmax.f32 %v2102, 0.0
  %v2287 = vmax.f32 %v2103, 0.0
  %v2288 = vmax.f32 %v2104, 0.0
  %v2289 = vmax.f32 %v2105, 0.0
  %v2290 = vmax.f32 %v2106, 0.0
  %v2291 = vmax.f32 %v2107, 0.0
  %v2292 = vmax.f32 %v2108, 0.0
  %v2293 = vmax.f32 %v2109, 0.0
  %v2294 = vmax.f32 %v2110, 0.0
  %v2295 = vmax.f32 %v2111, 0.0
  %v2296 = vmax.f32 %v2112, 0.0
  %v2297 = vmax.f32 %v2113, 0.0
  %v2298 = vmax.f32 %v2114, 0.0
  %v2299 = vmax.f32 %v2115, 0.0
  %v2300 = vmax.f32 %v2116, 0.0
  %v2301 = vmax.f32 %v2117, 0.0
  %v2302 = vmax.f32 %v2118, 0.0
  %v2303 = vmax.f32 %v2119, 0.0
  %v2304 = vmax.f32 %v2120, 0.0
  %v2305 = vmax.f32 %v2121, 0.0
  %v2306 = vmax.f32 %v2122, 0.0
  %v2307 = vmax.f32 %v2123, 0.0
  %v2308 = vmax.f32 %v2124, 0.0
  %v2309 = vmax.f32 %v2125, 0.0
  %v2310 = vmax.f32 %v2126, 0.0
  %v2311 = vmax.f32 %v2127, 0.0
  %v2312 = vmax.f32 %v2128, 0.0
  %v2313 = vmax.f32 %v2129, 0.0
  %v2314 = vmax.f32 %v2130, 0.0
  %v2315 = vmax.f32 %v2131, 0.0
  %v2316 = vmax.f32 %v2132, 0.0
  %v2317 = vmax.f32 %v2133, 0.0
  %v2318 = vmax.f32 %v2134, 0.0
  %v2319 = vmax.f32 %v2135, 0.0
  %v2320 = vmax.f32 %v2136, 0.0
  %v2321 = vmax.f32 %v2137, 0.0
  %v2322 = vmax.f32 %v2138, 0.0
  %v2323 = vmax.f32 %v2139, 0.0
  %v2324 = vmax.f32 %v2140, 0.0
  %v2325 = vmax.f32 %v2141, 0.0
  %v2326 = vmax.f32 %v2142, 0.0
  %v2327 = vmax.f32 %v2143, 0.0
  %v2328 = vmax.f32 %v2144, 0.0
  %v2329 = vmax.f32 %v2145, 0.0
  %v2330 = vmax.f32 %v2146, 0.0
  %v2331 = vmax.f32 %v2147, 0.0
  %v2332 = vmax.f32 %v2148, 0.0
  %v2333 = vmax.f32 %v2149, 0.0
  %v2334 = vmax.f32 %v2150, 0.0
  %v2335 = vmax.f32 %v2151, 0.0
  %v2336 = vmax.f32 %v2152, 0.0
  %v2337 = vmax.f32 %v2153, 0.0
  %v2338 = vmax.f32 %v2154, 0.0
  %v2339 = vmax.f32 %v2155, 0.0
  %v2340 = vmax.f32 %v2156, 0.0
  %v2341 = vmax.f32 %v2157, 0.0
  %v2342 = vmax.f32 %v2158, 0.0
  %v2343 = vmax.f32 %v2159, 0.0
  %v2344 = vmax.f32 %v2160, 0.0
  %v2345 = vmax.f32 %v2161, 0.0
  %v2346 = vmax.f32 %v2162, 0.0
  %v2347 = vmax.f32 %v2163, 0.0
  %v2348 = vmax.f32 %v2164, 0.0
  %v2349 = vmax.f32 %v2165, 0.0
  %v2350 = vmax.f32 %v2166, 0.0
  %v2351 = vmax.f32 %v2167, 0.0
  %v2352 = vmax.f32 %v2168, 0.0
  %v2353 = vmax.f32 %v2169, 0.0
  %v2354 = vmax.f32 %v2170, 0.0
  %v2355 = vmax.f32 %v2171, 0.0
  %v2356 = vmax.f32 %v2172, 0.0
  %v2357 = vmax.f32 %v2173, 0.0
  %v2358 = vmax.f32 %v2174, 0.0
  %v2359 = vmax.f32 %v2175, 0.0
  %v2360 = vmax.f32 %v2176, 0.0
  %v2361 = vmax.f32 %v2177, 0.0
  %v2362 = vmax.f32 %v2178, 0.0
  %v2363 = vmax.f32 %v2179, 0.0
  %v2364 = vmax.f32 %v2180, 0.0
  %v2365 = vmax.f32 %v2181, 0.0
  %v2366 = vmax.f32 %v2182, 0.0
  %v2367 = vmax.f32 %v2183, 0.0
  %v2368 = vmax.f32 %v2184, 0.0
  %v2369 = vmax.f32 %v2185, 0.0
  %v2370 = vmax.f32 %v2186, 0.0
  %v2371 = vmax.f32 %v2187, 0.0
  %v2372 = vmax.f32 %v2188, 0.0
  %v2373 = vmax.f32 %v2189, 0.0
  %v2374 = vmax.f32 %v2190, 0.0
  %v2375 = vmax.f32 %v2191, 0.0
  %v2376 = vmax.f32 %v2192, 0.0
  %v2377 = vmax.f32 %v2193, 0.0
  %v2378 = vmax.f32 %v2194, 0.0
  %v2379 = vmax.f32 %v2195, 0.0
  %v2380 = vmax.f32 %v2196, 0.0
  %v2381 = vmax.f32 %v2197, 0.0
  %v2382 = vmax.f32 %v2198, 0.0
  %v2383 = vmax.f32 %v2199, 0.0
  %v2384 = vmax.f32 %v2200, 0.0
  %v2385 = vmax.f32 %v2201, 0.0
  %v2386 = vmax.f32 %v2202, 0.0
  %v2387 = vmax.f32 %v2203, 0.0
  %v2388 = vmax.f32 %v2204, 0.0
  %v2389 = vmax.f32 %v2205, 0.0
  %v2390 = vmax.f32 %v2206, 0.0
  %v2391 = vmax.f32 %v2207, 0.0
  %v2392 = vmax.f32 %v2208, 0.0
  %v2393 = vmax.f32 %v2209, 0.0
  %v2394 = vmax.f32 %v2210, 0.0
  %v2395 = vmax.f32 %v2211, 0.0
  %v2396 = vmax.f32 %v2212, 0.0
  %v2397 = vmax.f32 %v2213, 0.0
  %v2398 = vmax.f32 %v2214, 0.0
  %v2399 = vmax.f32 %v2215, 0.0
  %v2400 = vmax.f32 %v2216, 0.0
  %v2401 = vmax.f32 %v2217, 0.0
  %v2402 = vmax.f32 %v2218, 0.0
  %v2403 = vmax.f32 %v2219, 0.0
  %v2404 = vmax.f32 %v2220, 0.0
  %v2405 = vmax.f32 %v2221, 0.0
  %v2406 = vmax.f32 %v2222, 0.0
  %v2407 = vmax.f32 %v2223, 0.0
  %v2408 = vmax.f32 %v2224, 0.0
  %v2409 = vmax.f32 %v2225, 0.0
  %v2410 = vmax.f32 %v2226, 0.0
  %v2411 = vmax.f32 %v2227, 0.0
  %v2412 = vmax.f32 %v2228, 0.0
  %v2413 = vmax.f32 %v2229, 0.0
  %v2414 = vmax.f32 %v2230, 0.0
  %v2415 = vmax.f32 %v2231, 0.0
  %v2416 = vmax.f32 %v2232, 0.0
  %v2417 = vmax.f32 %v2233, 0.0
  %v2418 = vmax.f32 %v2234, 0.0
  %v2419 = vmax.f32 %v2235, 0.0
  %v2420 = vmax.f32 %v2236, 0.0
  %v2421 = vmax.f32 %v2237, 0.0
  %v2422 = vmax.f32 %v2238, 0.0
  %v2423 = vmax.f32 %v2239, 0.0
  %v2424 = vmax.f32 %v2240, 0.0
  %v2425 = vmax.f32 %v2241, 0.0
  %v2426 = vmax.f32 %v2242, 0.0
  %v2427 = vmax.f32 %v2243, 0.0
  %v2428 = vmax.f32 %v2244, 0.0
  %v2429 = vmax.f32 %v2245, 0.0
  %v2430 = vmax.f32 %v2246, 0.0
  %v2431 = vmax.f32 %v2247, 0.0
  %v2432 = vmax.f32 %v2248, 0.0
  %v2433 = vmax.f32 %v2249, 0.0
  %v2434 = vmax.f32 %v2250, 0.0
  %v2435 = vmul.f32 %v1141, %v2251
  %v2436 = vmul.f32 %v1142, %v2252
  %v2437 = vmul.f32 %v1143, %v2253
  %v2438 = vmul.f32 %v1144, %v2254
  %v2439 = vmul.f32 %v1145, %v2255
  %v2440 = vmul.f32 %v1146, %v2256
  %v2441 = vmul.f32 %v1147, %v2257
  %v2442 = vmul.f32 %v1148, %v2258
  %v2443 = vmul.f32 %v1149, %v2259
  %v2444 = vmul.f32 %v1150, %v2260
  %v2445 = vmul.f32 %v1151, %v2261
  %v2446 = vmul.f32 %v1152, %v2262
  %v2447 = vmul.f32 %v1153, %v2263
  %v2448 = vmul.f32 %v1154, %v2264
  %v2449 = vmul.f32 %v1155, %v2265
  %v2450 = vmul.f32 %v1156, %v2266
  %v2451 = vmul.f32 %v1157, %v2267
  %v2452 = vmul.f32 %v1158, %v2268
  %v2453 = vmul.f32 %v1159, %v2269
  %v2454 = vmul.f32 %v1160, %v2270
  %v2455 = vmul.f32 %v1161, %v2271
  %v2456 = vmul.f32 %v1162, %v2272
  %v2457 = vmul.f32 %v1163, %v2273
  %v2458 = vmul.f32 %v1164, %v2274
  %v2459 = vmul.f32 %v1165, %v2275
  %v2460 = vmul.f32 %v1166, %v2276
  %v2461 = vmul.f32 %v1167, %v2277
  %v2462 = vmul.f32 %v1168, %v2278
  %v2463 = vmul.f32 %v1169, %v2279
  %v2464 = vmul.f32 %v1170, %v2280
  %v2465 = vmul.f32 %v1171, %v2281
  %v2466 = vmul.f32 %v1172, %v2282
  %v2467 = vmul.f32 %v1173, %v2283
  %v2468 = vmul.f32 %v1174, %v2284
  %v2469 = vmul.f32 %v1175, %v2285
  %v2470 = vmul.f32 %v1176, %v2286
  %v2471 = vmul.f32 %v1177, %v2287
  %v2472 = vmul.f32 %v1178, %v2288
  %v2473 = vmul.f32 %v1179, %v2289
  %v2474 = vmul.f32 %v1180, %v2290
  %v2475 = vmul.f32 %v1181, %v2291
  %v2476 = vmul.f32 %v1182, %v2292
  %v2477 = vmul.f32 %v1183, %v2293
  %v2478 = vmul.f32 %v1184, %v2294
  %v2479 = vmul.f32 %v1185, %v2295
  %v2480 = vmul.f32 %v1186, %v2296
  %v2481 = vmul.f32 %v1187, %v2297
  %v2482 = vmul.f32 %v1188, %v2298
  %v2483 = vmul.f32 %v1189, %v2299
  %v2484 = vmul.f32 %v1190, %v2300
  %v2485 = vmul.f32 %v1191, %v2301
  %v2486 = vmul.f32 %v1192, %v2302
  %v2487 = vmul.f32 %v1193, %v2303
  %v2488 = vmul.f32 %v1194, %v2304
  %v2489 = vmul.f32 %v1195, %v2305
  %v2490 = vmul.f32 %v1196, %v2306
  %v2491 = vmul.f32 %v1197, %v2307
  %v2492 = vmul.f32 %v1198, %v2308
  %v2493 = vmul.f32 %v1199, %v2309
  %v2494 = vmul.f32 %v1200, %v2310
  %v2495 = vmul.f32 %v1201, %v2311
  %v2496 = vmul.f32 %v1202, %v2312
  %v2497 = vmul.f32 %v1203, %v2313
  %v2498 = vmul.f32 %v1204, %v2314
  %v2499 = vmul.f32 %v1205, %v2315
  %v2500 = vmul.f32 %v1206, %v2316
  %v2501 = vmul.f32 %v1207, %v2317
  %v2502 = vmul.f32 %v1208, %v2318
  %v2503 = vmul.f32 %v1209, %v2319
  %v2504 = vmul.f32 %v1210, %v2320
  %v2505 = vmul.f32 %v1211, %v2321
  %v2506 = vmul.f32 %v1212, %v2322
  %v2507 = vmul.f32 %v1213, %v2323
  %v2508 = vmul.f32 %v1214, %v2324
  %v2509 = vmul.f32 %v1215, %v2325
  %v2510 = vmul.f32 %v1216, %v2326
  %v2511 = vmul.f32 %v1217, %v2327
  %v2512 = vmul.f32 %v1218, %v2328
  %v2513 = vmul.f32 %v1219, %v2329
  %v2514 = vmul.f32 %v1220, %v2330
  %v2515 = vmul.f32 %v1221, %v2331
  %v2516 = vmul.f32 %v1222, %v2332
  %v2517 = vmul.f32 %v1223, %v2333
  %v2518 = vmul.f32 %v1224, %v2334
  %v2519 = vmul.f32 %v1225, %v2335
  %v2520 = vmul.f32 %v1226, %v2336
  %v2521 = vmul.f32 %v1227, %v2337
  %v2522 = vmul.f32 %v1228, %v2338
  %v2523 = vmul.f32 %v1229, %v2339
  %v2524 = vmul.f32 %v1230, %v2340
  %v2525 = vmul.f32 %v1231, %v2341
  %v2526 = vmul.f32 %v1232, %v2342
  %v2527 = vmul.f32 %v1233, %v2343
  %v2528 = vmul.f32 %v1234, %v2344
  %v2529 = vmul.f32 %v1235, %v2345
  %v2530 = vmul.f32 %v1236, %v2346
  %v2531 = vmul.f32 %v1237, %v2347
  %v2532 = vmul.f32 %v1238, %v2348
  %v2533 = vmul.f32 %v1239, %v2349
  %v2534 = vmul.f32 %v1240, %v2350
  %v2535 = vmul.f32 %v1241, %v2351
  %v2536 = vmul.f32 %v1242, %v2352
  %v2537 = vmul.f32 %v1243, %v2353
  %v2538 = vmul.f32 %v1244, %v2354
  %v2539 = vmul.f32 %v1245, %v2355
  %v2540 = vmul.f32 %v1246, %v2356
  %v2541 = vmul.f32 %v1247, %v2357
  %v2542 = vmul.f32 %v1248, %v2358
  %v2543 = vmul.f32 %v1249, %v2359
  %v2544 = vmul.f32 %v1250, %v2360
  %v2545 = vmul.f32 %v1251, %v2361
  %v2546 = vmul.f32 %v1252, %v2362
  %v2547 = vmul.f32 %v1253, %v2363
  %v2548 = vmul.f32 %v1254, %v2364
  %v2549 = vmul.f32 %v1255, %v2365
  %v2550 = vmul.f32 %v1256, %v2366
  %v2551 = vmul.f32 %v1257, %v2367
  %v2552 = vmul.f32 %v1258, %v2368
  %v2553 = vmul.f32 %v1259, %v2369
  %v2554 = vmul.f32 %v1260, %v2370
  %v2555 = vmul.f32 %v1261, %v2371
  %v2556 = vmul.f32 %v1262, %v2372
  %v2557 = vmul.f32 %v1263, %v2373
  %v2558 = vmul.f32 %v1264, %v2374
  %v2559 = vmul.f32 %v1265, %v2375
  %v2560 = vmul.f32 %v1266, %v2376
  %v2561 = vmul.f32 %v1267, %v2377
  %v2562 = vmul.f32 %v1268, %v2378
  %v2563 = vmul.f32 %v1269, %v2379
  %v2564 = vmul.f32 %v1270, %v2380
  %v2565 = vmul.f32 %v1271, %v2381
  %v2566 = vmul.f32 %v1272, %v2382
  %v2567 = vmul.f32 %v1273, %v2383
  %v2568 = vmul.f32 %v1274, %v2384
  %v2569 = vmul.f32 %v1275, %v2385
  %v2570 = vmul.f32 %v1276, %v2386
  %v2571 = vmul.f32 %v1277, %v2387
  %v2572 = vmul.f32 %v1278, %v2388
  %v2573 = vmul.f32 %v1279, %v2389
  %v2574 = vmul.f32 %v1280, %v2390
  %v2575 = vmul.f32 %v1281, %v2391
  %v2576 = vmul.f32 %v1282, %v2392
  %v2577 = vmul.f32 %v1283, %v2393
  %v2578 = vmul.f32 %v1284, %v2394
  %v2579 = vmul.f32 %v1285, %v2395
  %v2580 = vmul.f32 %v1286, %v2396
  %v2581 = vmul.f32 %v1287, %v2397
  %v2582 = vmul.f32 %v1288, %v2398
  %v2583 = vmul.f32 %v1289, %v2399
  %v2584 = vmul.f32 %v1290, %v2400
  %v2585 = vmul.f32 %v1291, %v2401
  %v2586 = vmul.f32 %v1292, %v2402
  %v2587 = vmul.f32 %v1293, %v2403
  %v2588 = vmul.f32 %v1294, %v2404
  %v2589 = vmul.f32 %v1295, %v2405
  %v2590 = vmul.f32 %v1296, %v2406
  %v2591 = vmul.f32 %v1297, %v2407
  %v2592 = vmul.f32 %v1298, %v2408
  %v2593 = vmul.f32 %v1299, %v2409
  %v2594 = vmul.f32 %v1300, %v2410
  %v2595 = vmul.f32 %v1301, %v2411
  %v2596 = vmul.f32 %v1302, %v2412
  %v2597 = vmul.f32 %v1303, %v2413
  %v2598 = vmul.f32 %v1304, %v2414
  %v2599 = vmul.f32 %v1305, %v2415
  %v2600 = vmul.f32 %v1306, %v2416
  %v2601 = vmul.f32 %v1307, %v2417
  %v2602 = vmul.f32 %v1308, %v2418
  %v2603 = vmul.f32 %v1309, %v2419
  %v2604 = vmul.f32 %v1310, %v2420
  %v2605 = vmul.f32 %v1311, %v2421
  %v2606 = vmul.f32 %v1312, %v2422
  %v2607 = vmul.f32 %v1313, %v2423
  %v2608 = vmul.f32 %v1314, %v2424
  %v2609 = vmul.f32 %v1315, %v2425
  %v2610 = vmul.f32 %v1316, %v2426
  %v2611 = vmul.f32 %v1317, %v2427
  %v2612 = vmul.f32 %v1318, %v2428
  %v2613 = vmul.f32 %v1319, %v2429
  %v2614 = vmul.f32 %v1320, %v2430
  %v2615 = vmul.f32 %v1321, %v2431
  %v2616 = vmul.f32 %v1322, %v2432
  %v2617 = vmul.f32 %v1323, %v2433
  %v2618 = vmul.f32 %v1324, %v2434
  %2619 = vset.pattern.permute.xlu0 2
  %2620 = vperm.xlu0 %2619, %v29
  %v2621 = vpop.permute.xlu0 %2620
  %2623 = vset.pattern.permute.xlu0 2
  %2624 = vperm.xlu0 %2623, %v30
  %v2625 = vpop.permute.xlu0 %2624
  %2627 = vset.pattern.permute.xlu0 2
  %2628 = vperm.xlu0 %2627, %v31
  %v2629 = vpop.permute.xlu0 %2628
  %2631 = vset.pattern.permute.xlu0 2
  %2632 = vperm.xlu0 %2631, %v32
  %v2633 = vpop.permute.xlu0 %2632
  %2635 = vset.pattern.permute.xlu0 2
  %2636 = vperm.xlu0 %2635, %v33
  %v2637 = vpop.permute.xlu0 %2636
  %2639 = vset.pattern.permute.xlu0 2
  %2640 = vperm.xlu0 %2639, %v34
  %v2641 = vpop.permute.xlu0 %2640
  %2643 = vset.pattern.permute.xlu0 2
  %2644 = vperm.xlu0 %2643, %v35
  %v2645 = vpop.permute.xlu0 %2644
  %2647 = vset.pattern.permute.xlu0 2
  %2648 = vperm.xlu0 %2647, %v36
  %v2649 = vpop.permute.xlu0 %2648
  %2651 = vset.pattern.permute.xlu0 2
  %2652 = vperm.xlu0 %2651, %v37
  %v2653 = vpop.permute.xlu0 %2652
  %2655 = vset.pattern.permute.xlu0 2
  %2656 = vperm.xlu0 %2655, %v38
  %v2657 = vpop.permute.xlu0 %2656
  %2659 = vset.pattern.permute.xlu0 2
  %2660 = vperm.xlu0 %2659, %v39
  %v2661 = vpop.permute.xlu0 %2660
  %2663 = vset.pattern.permute.xlu0 2
  %2664 = vperm.xlu0 %2663, %v40
  %v2665 = vpop.permute.xlu0 %2664
  %2667 = vset.pattern.permute.xlu0 2
  %2668 = vperm.xlu0 %2667, %v41
  %v2669 = vpop.permute.xlu0 %2668
  %2671 = vset.pattern.permute.xlu0 2
  %2672 = vperm.xlu0 %2671, %v42
  %v2673 = vpop.permute.xlu0 %2672
  %2675 = vset.pattern.permute.xlu0 2
  %2676 = vperm.xlu0 %2675, %v43
  %v2677 = vpop.permute.xlu0 %2676
  %2679 = vset.pattern.permute.xlu0 2
  %2680 = vperm.xlu0 %2679, %v44
  %v2681 = vpop.permute.xlu0 %2680
  %2683 = vset.pattern.permute.xlu0 2
  %2684 = vperm.xlu0 %2683, %v45
  %v2685 = vpop.permute.xlu0 %2684
  %2687 = vset.pattern.permute.xlu0 2
  %2688 = vperm.xlu0 %2687, %v46
  %v2689 = vpop.permute.xlu0 %2688
  %2691 = vset.pattern.permute.xlu0 2
  %2692 = vperm.xlu0 %2691, %v47
  %v2693 = vpop.permute.xlu0 %2692
  %2695 = vset.pattern.permute.xlu0 2
  %2696 = vperm.xlu0 %2695, %v48
  %v2697 = vpop.permute.xlu0 %2696
  %2699 = vset.pattern.permute.xlu0 2
  %2700 = vperm.xlu0 %2699, %v49
  %v2701 = vpop.permute.xlu0 %2700
  %2703 = vset.pattern.permute.xlu0 2
  %2704 = vperm.xlu0 %2703, %v50
  %v2705 = vpop.permute.xlu0 %2704
  %2707 = vset.pattern.permute.xlu0 2
  %2708 = vperm.xlu0 %2707, %v51
  %v2709 = vpop.permute.xlu0 %2708
  %2711 = vset.pattern.permute.xlu0 2
  %2712 = vperm.xlu0 %2711, %v52
  %v2713 = vpop.permute.xlu0 %2712
  %2715 = vset.pattern.permute.xlu0 2
  %2716 = vperm.xlu0 %2715, %v53
  %v2717 = vpop.permute.xlu0 %2716
  %2719 = vset.pattern.permute.xlu0 2
  %2720 = vperm.xlu0 %2719, %v54
  %v2721 = vpop.permute.xlu0 %2720
  %2723 = vset.pattern.permute.xlu0 2
  %2724 = vperm.xlu0 %2723, %v55
  %v2725 = vpop.permute.xlu0 %2724
  %2727 = vset.pattern.permute.xlu0 2
  %2728 = vperm.xlu0 %2727, %v56
  %v2729 = vpop.permute.xlu0 %2728
  %2731 = vset.pattern.permute.xlu0 2
  %2732 = vperm.xlu0 %2731, %v57
  %v2733 = vpop.permute.xlu0 %2732
  %2735 = vset.pattern.permute.xlu0 2
  %2736 = vperm.xlu0 %2735, %v58
  %v2737 = vpop.permute.xlu0 %2736
  %2739 = vset.pattern.permute.xlu0 2
  %2740 = vperm.xlu0 %2739, %v59
  %v2741 = vpop.permute.xlu0 %2740
  %2743 = vset.pattern.permute.xlu0 2
  %2744 = vperm.xlu0 %2743, %v60
  %v2745 = vpop.permute.xlu0 %2744
  %2747 = vset.pattern.permute.xlu0 2
  %2748 = vperm.xlu0 %2747, %v61
  %v2749 = vpop.permute.xlu0 %2748
  %2751 = vset.pattern.permute.xlu0 2
  %2752 = vperm.xlu0 %2751, %v62
  %v2753 = vpop.permute.xlu0 %2752
  %2755 = vset.pattern.permute.xlu0 2
  %2756 = vperm.xlu0 %2755, %v63
  %v2757 = vpop.permute.xlu0 %2756
  %2759 = vset.pattern.permute.xlu0 2
  %2760 = vperm.xlu0 %2759, %v64
  %v2761 = vpop.permute.xlu0 %2760
  %2763 = vset.pattern.permute.xlu0 2
  %2764 = vperm.xlu0 %2763, %v65
  %v2765 = vpop.permute.xlu0 %2764
  %2767 = vset.pattern.permute.xlu0 2
  %2768 = vperm.xlu0 %2767, %v66
  %v2769 = vpop.permute.xlu0 %2768
  %2771 = vset.pattern.permute.xlu0 2
  %2772 = vperm.xlu0 %2771, %v67
  %v2773 = vpop.permute.xlu0 %2772
  %2775 = vset.pattern.permute.xlu0 2
  %2776 = vperm.xlu0 %2775, %v68
  %v2777 = vpop.permute.xlu0 %2776
  %2779 = vset.pattern.permute.xlu0 2
  %2780 = vperm.xlu0 %2779, %v69
  %v2781 = vpop.permute.xlu0 %2780
  %2783 = vset.pattern.permute.xlu0 2
  %2784 = vperm.xlu0 %2783, %v70
  %v2785 = vpop.permute.xlu0 %2784
  %2787 = vset.pattern.permute.xlu0 2
  %2788 = vperm.xlu0 %2787, %v71
  %v2789 = vpop.permute.xlu0 %2788
  %2791 = vset.pattern.permute.xlu0 2
  %2792 = vperm.xlu0 %2791, %v72
  %v2793 = vpop.permute.xlu0 %2792
  %2795 = vset.pattern.permute.xlu0 2
  %2796 = vperm.xlu0 %2795, %v73
  %v2797 = vpop.permute.xlu0 %2796
  %2799 = vset.pattern.permute.xlu0 2
  %2800 = vperm.xlu0 %2799, %v74
  %v2801 = vpop.permute.xlu0 %2800
  %2803 = vset.pattern.permute.xlu0 2
  %2804 = vperm.xlu0 %2803, %v75
  %v2805 = vpop.permute.xlu0 %2804
  %2807 = vset.pattern.permute.xlu0 2
  %2808 = vperm.xlu0 %2807, %v76
  %v2809 = vpop.permute.xlu0 %2808
  %2811 = vset.pattern.permute.xlu0 2
  %2812 = vperm.xlu0 %2811, %v77
  %v2813 = vpop.permute.xlu0 %2812
  %2815 = vset.pattern.permute.xlu0 2
  %2816 = vperm.xlu0 %2815, %v78
  %v2817 = vpop.permute.xlu0 %2816
  %2819 = vset.pattern.permute.xlu0 2
  %2820 = vperm.xlu0 %2819, %v79
  %v2821 = vpop.permute.xlu0 %2820
  %2823 = vset.pattern.permute.xlu0 2
  %2824 = vperm.xlu0 %2823, %v80
  %v2825 = vpop.permute.xlu0 %2824
  %2827 = vset.pattern.permute.xlu0 2
  %2828 = vperm.xlu0 %2827, %v81
  %v2829 = vpop.permute.xlu0 %2828
  %2831 = vset.pattern.permute.xlu0 2
  %2832 = vperm.xlu0 %2831, %v82
  %v2833 = vpop.permute.xlu0 %2832
  %2835 = vset.pattern.permute.xlu0 2
  %2836 = vperm.xlu0 %2835, %v83
  %v2837 = vpop.permute.xlu0 %2836
  %2839 = vset.pattern.permute.xlu0 2
  %2840 = vperm.xlu0 %2839, %v84
  %v2841 = vpop.permute.xlu0 %2840
  %2843 = vset.pattern.permute.xlu0 2
  %2844 = vperm.xlu0 %2843, %v85
  %v2845 = vpop.permute.xlu0 %2844
  %2847 = vset.pattern.permute.xlu0 2
  %2848 = vperm.xlu0 %2847, %v86
  %v2849 = vpop.permute.xlu0 %2848
  %2851 = vset.pattern.permute.xlu0 2
  %2852 = vperm.xlu0 %2851, %v87
  %v2853 = vpop.permute.xlu0 %2852
  %2855 = vset.pattern.permute.xlu0 2
  %2856 = vperm.xlu0 %2855, %v88
  %v2857 = vpop.permute.xlu0 %2856
  %2859 = vset.pattern.permute.xlu0 2
  %2860 = vperm.xlu0 %2859, %v89
  %v2861 = vpop.permute.xlu0 %2860
  %2863 = vset.pattern.permute.xlu0 2
  %2864 = vperm.xlu0 %2863, %v90
  %v2865 = vpop.permute.xlu0 %2864
  %2867 = vset.pattern.permute.xlu0 2
  %2868 = vperm.xlu0 %2867, %v91
  %v2869 = vpop.permute.xlu0 %2868
  %2871 = vset.pattern.permute.xlu0 2
  %2872 = vperm.xlu0 %2871, %v92
  %v2873 = vpop.permute.xlu0 %2872
  %2875 = vset.pattern.permute.xlu0 2
  %2876 = vperm.xlu0 %2875, %v93
  %v2877 = vpop.permute.xlu0 %2876
  %2879 = vset.pattern.permute.xlu0 2
  %2880 = vperm.xlu0 %2879, %v94
  %v2881 = vpop.permute.xlu0 %2880
  %2883 = vset.pattern.permute.xlu0 2
  %2884 = vperm.xlu0 %2883, %v95
  %v2885 = vpop.permute.xlu0 %2884
  %2887 = vset.pattern.permute.xlu0 2
  %2888 = vperm.xlu0 %2887, %v96
  %v2889 = vpop.permute.xlu0 %2888
  %2891 = vset.pattern.permute.xlu0 2
  %2892 = vperm.xlu0 %2891, %v97
  %v2893 = vpop.permute.xlu0 %2892
  %2895 = vset.pattern.permute.xlu0 2
  %2896 = vperm.xlu0 %2895, %v98
  %v2897 = vpop.permute.xlu0 %2896
  %2899 = vset.pattern.permute.xlu0 2
  %2900 = vperm.xlu0 %2899, %v99
  %v2901 = vpop.permute.xlu0 %2900
  %2903 = vset.pattern.permute.xlu0 2
  %2904 = vperm.xlu0 %2903, %v100
  %v2905 = vpop.permute.xlu0 %2904
  %2907 = vset.pattern.permute.xlu0 2
  %2908 = vperm.xlu0 %2907, %v101
  %v2909 = vpop.permute.xlu0 %2908
  %2911 = vset.pattern.permute.xlu0 2
  %2912 = vperm.xlu0 %2911, %v102
  %v2913 = vpop.permute.xlu0 %2912
  %2915 = vset.pattern.permute.xlu0 2
  %2916 = vperm.xlu0 %2915, %v103
  %v2917 = vpop.permute.xlu0 %2916
  %2919 = vset.pattern.permute.xlu0 2
  %2920 = vperm.xlu0 %2919, %v104
  %v2921 = vpop.permute.xlu0 %2920
  %2923 = vset.pattern.permute.xlu0 2
  %2924 = vperm.xlu0 %2923, %v105
  %v2925 = vpop.permute.xlu0 %2924
  %2927 = vset.pattern.permute.xlu0 2
  %2928 = vperm.xlu0 %2927, %v106
  %v2929 = vpop.permute.xlu0 %2928
  %2931 = vset.pattern.permute.xlu0 2
  %2932 = vperm.xlu0 %2931, %v107
  %v2933 = vpop.permute.xlu0 %2932
  %2935 = vset.pattern.permute.xlu0 2
  %2936 = vperm.xlu0 %2935, %v108
  %v2937 = vpop.permute.xlu0 %2936
  %2939 = vset.pattern.permute.xlu0 2
  %2940 = vperm.xlu0 %2939, %v109
  %v2941 = vpop.permute.xlu0 %2940
  %2943 = vset.pattern.permute.xlu0 2
  %2944 = vperm.xlu0 %2943, %v110
  %v2945 = vpop.permute.xlu0 %2944
  %2947 = vset.pattern.permute.xlu0 2
  %2948 = vperm.xlu0 %2947, %v111
  %v2949 = vpop.permute.xlu0 %2948
  %2951 = vset.pattern.permute.xlu0 2
  %2952 = vperm.xlu0 %2951, %v112
  %v2953 = vpop.permute.xlu0 %2952
  %2955 = vset.pattern.permute.xlu0 2
  %2956 = vperm.xlu0 %2955, %v113
  %v2957 = vpop.permute.xlu0 %2956
  %2959 = vset.pattern.permute.xlu0 2
  %2960 = vperm.xlu0 %2959, %v114
  %v2961 = vpop.permute.xlu0 %2960
  %2963 = vset.pattern.permute.xlu0 2
  %2964 = vperm.xlu0 %2963, %v115
  %v2965 = vpop.permute.xlu0 %2964
  %2967 = vset.pattern.permute.xlu0 2
  %2968 = vperm.xlu0 %2967, %v116
  %v2969 = vpop.permute.xlu0 %2968
  %2971 = vset.pattern.permute.xlu0 2
  %2972 = vperm.xlu0 %2971, %v117
  %v2973 = vpop.permute.xlu0 %2972
  %2975 = vset.pattern.permute.xlu0 2
  %2976 = vperm.xlu0 %2975, %v118
  %v2977 = vpop.permute.xlu0 %2976
  %2979 = vset.pattern.permute.xlu0 2
  %2980 = vperm.xlu0 %2979, %v119
  %v2981 = vpop.permute.xlu0 %2980
  %2983 = vset.pattern.permute.xlu0 2
  %2984 = vperm.xlu0 %2983, %v120
  %v2985 = vpop.permute.xlu0 %2984
  %v2987 = vperm.slane %v121, 2
  %v2988 = vperm.slane %v121, 6
  %v2991 = vperm.slane %v2987, 2
  %v2992 = vperm.slane %v2988, 2
  %v2993 = vsub.f32 %v2621, %v2991
  %v2994 = vsub.f32 %v2621, %v2992
  %v2995 = vsub.f32 %v2625, %v2991
  %v2996 = vsub.f32 %v2625, %v2992
  %v2997 = vsub.f32 %v2629, %v2991
  %v2998 = vsub.f32 %v2629, %v2992
  %v2999 = vsub.f32 %v2633, %v2991
  %v3000 = vsub.f32 %v2633, %v2992
  %v3001 = vsub.f32 %v2637, %v2991
  %v3002 = vsub.f32 %v2637, %v2992
  %v3003 = vsub.f32 %v2641, %v2991
  %v3004 = vsub.f32 %v2641, %v2992
  %v3005 = vsub.f32 %v2645, %v2991
  %v3006 = vsub.f32 %v2645, %v2992
  %v3007 = vsub.f32 %v2649, %v2991
  %v3008 = vsub.f32 %v2649, %v2992
  %v3009 = vsub.f32 %v2653, %v2991
  %v3010 = vsub.f32 %v2653, %v2992
  %v3011 = vsub.f32 %v2657, %v2991
  %v3012 = vsub.f32 %v2657, %v2992
  %v3013 = vsub.f32 %v2661, %v2991
  %v3014 = vsub.f32 %v2661, %v2992
  %v3015 = vsub.f32 %v2665, %v2991
  %v3016 = vsub.f32 %v2665, %v2992
  %v3017 = vsub.f32 %v2669, %v2991
  %v3018 = vsub.f32 %v2669, %v2992
  %v3019 = vsub.f32 %v2673, %v2991
  %v3020 = vsub.f32 %v2673, %v2992
  %v3021 = vsub.f32 %v2677, %v2991
  %v3022 = vsub.f32 %v2677, %v2992
  %v3023 = vsub.f32 %v2681, %v2991
  %v3024 = vsub.f32 %v2681, %v2992
  %v3025 = vsub.f32 %v2685, %v2991
  %v3026 = vsub.f32 %v2685, %v2992
  %v3027 = vsub.f32 %v2689, %v2991
  %v3028 = vsub.f32 %v2689, %v2992
  %v3029 = vsub.f32 %v2693, %v2991
  %v3030 = vsub.f32 %v2693, %v2992
  %v3031 = vsub.f32 %v2697, %v2991
  %v3032 = vsub.f32 %v2697, %v2992
  %v3033 = vsub.f32 %v2701, %v2991
  %v3034 = vsub.f32 %v2701, %v2992
  %v3035 = vsub.f32 %v2705, %v2991
  %v3036 = vsub.f32 %v2705, %v2992
  %v3037 = vsub.f32 %v2709, %v2991
  %v3038 = vsub.f32 %v2709, %v2992
  %v3039 = vsub.f32 %v2713, %v2991
  %v3040 = vsub.f32 %v2713, %v2992
  %v3041 = vsub.f32 %v2717, %v2991
  %v3042 = vsub.f32 %v2717, %v2992
  %v3043 = vsub.f32 %v2721, %v2991
  %v3044 = vsub.f32 %v2721, %v2992
  %v3045 = vsub.f32 %v2725, %v2991
  %v3046 = vsub.f32 %v2725, %v2992
  %v3047 = vsub.f32 %v2729, %v2991
  %v3048 = vsub.f32 %v2729, %v2992
  %v3049 = vsub.f32 %v2733, %v2991
  %v3050 = vsub.f32 %v2733, %v2992
  %v3051 = vsub.f32 %v2737, %v2991
  %v3052 = vsub.f32 %v2737, %v2992
  %v3053 = vsub.f32 %v2741, %v2991
  %v3054 = vsub.f32 %v2741, %v2992
  %v3055 = vsub.f32 %v2745, %v2991
  %v3056 = vsub.f32 %v2745, %v2992
  %v3057 = vsub.f32 %v2749, %v2991
  %v3058 = vsub.f32 %v2749, %v2992
  %v3059 = vsub.f32 %v2753, %v2991
  %v3060 = vsub.f32 %v2753, %v2992
  %v3061 = vsub.f32 %v2757, %v2991
  %v3062 = vsub.f32 %v2757, %v2992
  %v3063 = vsub.f32 %v2761, %v2991
  %v3064 = vsub.f32 %v2761, %v2992
  %v3065 = vsub.f32 %v2765, %v2991
  %v3066 = vsub.f32 %v2765, %v2992
  %v3067 = vsub.f32 %v2769, %v2991
  %v3068 = vsub.f32 %v2769, %v2992
  %v3069 = vsub.f32 %v2773, %v2991
  %v3070 = vsub.f32 %v2773, %v2992
  %v3071 = vsub.f32 %v2777, %v2991
  %v3072 = vsub.f32 %v2777, %v2992
  %v3073 = vsub.f32 %v2781, %v2991
  %v3074 = vsub.f32 %v2781, %v2992
  %v3075 = vsub.f32 %v2785, %v2991
  %v3076 = vsub.f32 %v2785, %v2992
  %v3077 = vsub.f32 %v2789, %v2991
  %v3078 = vsub.f32 %v2789, %v2992
  %v3079 = vsub.f32 %v2793, %v2991
  %v3080 = vsub.f32 %v2793, %v2992
  %v3081 = vsub.f32 %v2797, %v2991
  %v3082 = vsub.f32 %v2797, %v2992
  %v3083 = vsub.f32 %v2801, %v2991
  %v3084 = vsub.f32 %v2801, %v2992
  %v3085 = vsub.f32 %v2805, %v2991
  %v3086 = vsub.f32 %v2805, %v2992
  %v3087 = vsub.f32 %v2809, %v2991
  %v3088 = vsub.f32 %v2809, %v2992
  %v3089 = vsub.f32 %v2813, %v2991
  %v3090 = vsub.f32 %v2813, %v2992
  %v3091 = vsub.f32 %v2817, %v2991
  %v3092 = vsub.f32 %v2817, %v2992
  %v3093 = vsub.f32 %v2821, %v2991
  %v3094 = vsub.f32 %v2821, %v2992
  %v3095 = vsub.f32 %v2825, %v2991
  %v3096 = vsub.f32 %v2825, %v2992
  %v3097 = vsub.f32 %v2829, %v2991
  %v3098 = vsub.f32 %v2829, %v2992
  %v3099 = vsub.f32 %v2833, %v2991
  %v3100 = vsub.f32 %v2833, %v2992
  %v3101 = vsub.f32 %v2837, %v2991
  %v3102 = vsub.f32 %v2837, %v2992
  %v3103 = vsub.f32 %v2841, %v2991
  %v3104 = vsub.f32 %v2841, %v2992
  %v3105 = vsub.f32 %v2845, %v2991
  %v3106 = vsub.f32 %v2845, %v2992
  %v3107 = vsub.f32 %v2849, %v2991
  %v3108 = vsub.f32 %v2849, %v2992
  %v3109 = vsub.f32 %v2853, %v2991
  %v3110 = vsub.f32 %v2853, %v2992
  %v3111 = vsub.f32 %v2857, %v2991
  %v3112 = vsub.f32 %v2857, %v2992
  %v3113 = vsub.f32 %v2861, %v2991
  %v3114 = vsub.f32 %v2861, %v2992
  %v3115 = vsub.f32 %v2865, %v2991
  %v3116 = vsub.f32 %v2865, %v2992
  %v3117 = vsub.f32 %v2869, %v2991
  %v3118 = vsub.f32 %v2869, %v2992
  %v3119 = vsub.f32 %v2873, %v2991
  %v3120 = vsub.f32 %v2873, %v2992
  %v3121 = vsub.f32 %v2877, %v2991
  %v3122 = vsub.f32 %v2877, %v2992
  %v3123 = vsub.f32 %v2881, %v2991
  %v3124 = vsub.f32 %v2881, %v2992
  %v3125 = vsub.f32 %v2885, %v2991
  %v3126 = vsub.f32 %v2885, %v2992
  %v3127 = vsub.f32 %v2889, %v2991
  %v3128 = vsub.f32 %v2889, %v2992
  %v3129 = vsub.f32 %v2893, %v2991
  %v3130 = vsub.f32 %v2893, %v2992
  %v3131 = vsub.f32 %v2897, %v2991
  %v3132 = vsub.f32 %v2897, %v2992
  %v3133 = vsub.f32 %v2901, %v2991
  %v3134 = vsub.f32 %v2901, %v2992
  %v3135 = vsub.f32 %v2905, %v2991
  %v3136 = vsub.f32 %v2905, %v2992
  %v3137 = vsub.f32 %v2909, %v2991
  %v3138 = vsub.f32 %v2909, %v2992
  %v3139 = vsub.f32 %v2913, %v2991
  %v3140 = vsub.f32 %v2913, %v2992
  %v3141 = vsub.f32 %v2917, %v2991
  %v3142 = vsub.f32 %v2917, %v2992
  %v3143 = vsub.f32 %v2921, %v2991
  %v3144 = vsub.f32 %v2921, %v2992
  %v3145 = vsub.f32 %v2925, %v2991
  %v3146 = vsub.f32 %v2925, %v2992
  %v3147 = vsub.f32 %v2929, %v2991
  %v3148 = vsub.f32 %v2929, %v2992
  %v3149 = vsub.f32 %v2933, %v2991
  %v3150 = vsub.f32 %v2933, %v2992
  %v3151 = vsub.f32 %v2937, %v2991
  %v3152 = vsub.f32 %v2937, %v2992
  %v3153 = vsub.f32 %v2941, %v2991
  %v3154 = vsub.f32 %v2941, %v2992
  %v3155 = vsub.f32 %v2945, %v2991
  %v3156 = vsub.f32 %v2945, %v2992
  %v3157 = vsub.f32 %v2949, %v2991
  %v3158 = vsub.f32 %v2949, %v2992
  %v3159 = vsub.f32 %v2953, %v2991
  %v3160 = vsub.f32 %v2953, %v2992
  %v3161 = vsub.f32 %v2957, %v2991
  %v3162 = vsub.f32 %v2957, %v2992
  %v3163 = vsub.f32 %v2961, %v2991
  %v3164 = vsub.f32 %v2961, %v2992
  %v3165 = vsub.f32 %v2965, %v2991
  %v3166 = vsub.f32 %v2965, %v2992
  %v3167 = vsub.f32 %v2969, %v2991
  %v3168 = vsub.f32 %v2969, %v2992
  %v3169 = vsub.f32 %v2973, %v2991
  %v3170 = vsub.f32 %v2973, %v2992
  %v3171 = vsub.f32 %v2977, %v2991
  %v3172 = vsub.f32 %v2977, %v2992
  %v3173 = vsub.f32 %v2981, %v2991
  %v3174 = vsub.f32 %v2981, %v2992
  %v3175 = vsub.f32 %v2985, %v2991
  %v3176 = vsub.f32 %v2985, %v2992
  %v3177 = vand.u32 2147483647, %v2993
  %v3178 = vand.u32 2147483647, %v2994
  %v3179 = vand.u32 2147483647, %v2995
  %v3180 = vand.u32 2147483647, %v2996
  %v3181 = vand.u32 2147483647, %v2997
  %v3182 = vand.u32 2147483647, %v2998
  %v3183 = vand.u32 2147483647, %v2999
  %v3184 = vand.u32 2147483647, %v3000
  %v3185 = vand.u32 2147483647, %v3001
  %v3186 = vand.u32 2147483647, %v3002
  %v3187 = vand.u32 2147483647, %v3003
  %v3188 = vand.u32 2147483647, %v3004
  %v3189 = vand.u32 2147483647, %v3005
  %v3190 = vand.u32 2147483647, %v3006
  %v3191 = vand.u32 2147483647, %v3007
  %v3192 = vand.u32 2147483647, %v3008
  %v3193 = vand.u32 2147483647, %v3009
  %v3194 = vand.u32 2147483647, %v3010
  %v3195 = vand.u32 2147483647, %v3011
  %v3196 = vand.u32 2147483647, %v3012
  %v3197 = vand.u32 2147483647, %v3013
  %v3198 = vand.u32 2147483647, %v3014
  %v3199 = vand.u32 2147483647, %v3015
  %v3200 = vand.u32 2147483647, %v3016
  %v3201 = vand.u32 2147483647, %v3017
  %v3202 = vand.u32 2147483647, %v3018
  %v3203 = vand.u32 2147483647, %v3019
  %v3204 = vand.u32 2147483647, %v3020
  %v3205 = vand.u32 2147483647, %v3021
  %v3206 = vand.u32 2147483647, %v3022
  %v3207 = vand.u32 2147483647, %v3023
  %v3208 = vand.u32 2147483647, %v3024
  %v3209 = vand.u32 2147483647, %v3025
  %v3210 = vand.u32 2147483647, %v3026
  %v3211 = vand.u32 2147483647, %v3027
  %v3212 = vand.u32 2147483647, %v3028
  %v3213 = vand.u32 2147483647, %v3029
  %v3214 = vand.u32 2147483647, %v3030
  %v3215 = vand.u32 2147483647, %v3031
  %v3216 = vand.u32 2147483647, %v3032
  %v3217 = vand.u32 2147483647, %v3033
  %v3218 = vand.u32 2147483647, %v3034
  %v3219 = vand.u32 2147483647, %v3035
  %v3220 = vand.u32 2147483647, %v3036
  %v3221 = vand.u32 2147483647, %v3037
  %v3222 = vand.u32 2147483647, %v3038
  %v3223 = vand.u32 2147483647, %v3039
  %v3224 = vand.u32 2147483647, %v3040
  %v3225 = vand.u32 2147483647, %v3041
  %v3226 = vand.u32 2147483647, %v3042
  %v3227 = vand.u32 2147483647, %v3043
  %v3228 = vand.u32 2147483647, %v3044
  %v3229 = vand.u32 2147483647, %v3045
  %v3230 = vand.u32 2147483647, %v3046
  %v3231 = vand.u32 2147483647, %v3047
  %v3232 = vand.u32 2147483647, %v3048
  %v3233 = vand.u32 2147483647, %v3049
  %v3234 = vand.u32 2147483647, %v3050
  %v3235 = vand.u32 2147483647, %v3051
  %v3236 = vand.u32 2147483647, %v3052
  %v3237 = vand.u32 2147483647, %v3053
  %v3238 = vand.u32 2147483647, %v3054
  %v3239 = vand.u32 2147483647, %v3055
  %v3240 = vand.u32 2147483647, %v3056
  %v3241 = vand.u32 2147483647, %v3057
  %v3242 = vand.u32 2147483647, %v3058
  %v3243 = vand.u32 2147483647, %v3059
  %v3244 = vand.u32 2147483647, %v3060
  %v3245 = vand.u32 2147483647, %v3061
  %v3246 = vand.u32 2147483647, %v3062
  %v3247 = vand.u32 2147483647, %v3063
  %v3248 = vand.u32 2147483647, %v3064
  %v3249 = vand.u32 2147483647, %v3065
  %v3250 = vand.u32 2147483647, %v3066
  %v3251 = vand.u32 2147483647, %v3067
  %v3252 = vand.u32 2147483647, %v3068
  %v3253 = vand.u32 2147483647, %v3069
  %v3254 = vand.u32 2147483647, %v3070
  %v3255 = vand.u32 2147483647, %v3071
  %v3256 = vand.u32 2147483647, %v3072
  %v3257 = vand.u32 2147483647, %v3073
  %v3258 = vand.u32 2147483647, %v3074
  %v3259 = vand.u32 2147483647, %v3075
  %v3260 = vand.u32 2147483647, %v3076
  %v3261 = vand.u32 2147483647, %v3077
  %v3262 = vand.u32 2147483647, %v3078
  %v3263 = vand.u32 2147483647, %v3079
  %v3264 = vand.u32 2147483647, %v3080
  %v3265 = vand.u32 2147483647, %v3081
  %v3266 = vand.u32 2147483647, %v3082
  %v3267 = vand.u32 2147483647, %v3083
  %v3268 = vand.u32 2147483647, %v3084
  %v3269 = vand.u32 2147483647, %v3085
  %v3270 = vand.u32 2147483647, %v3086
  %v3271 = vand.u32 2147483647, %v3087
  %v3272 = vand.u32 2147483647, %v3088
  %v3273 = vand.u32 2147483647, %v3089
  %v3274 = vand.u32 2147483647, %v3090
  %v3275 = vand.u32 2147483647, %v3091
  %v3276 = vand.u32 2147483647, %v3092
  %v3277 = vand.u32 2147483647, %v3093
  %v3278 = vand.u32 2147483647, %v3094
  %v3279 = vand.u32 2147483647, %v3095
  %v3280 = vand.u32 2147483647, %v3096
  %v3281 = vand.u32 2147483647, %v3097
  %v3282 = vand.u32 2147483647, %v3098
  %v3283 = vand.u32 2147483647, %v3099
  %v3284 = vand.u32 2147483647, %v3100
  %v3285 = vand.u32 2147483647, %v3101
  %v3286 = vand.u32 2147483647, %v3102
  %v3287 = vand.u32 2147483647, %v3103
  %v3288 = vand.u32 2147483647, %v3104
  %v3289 = vand.u32 2147483647, %v3105
  %v3290 = vand.u32 2147483647, %v3106
  %v3291 = vand.u32 2147483647, %v3107
  %v3292 = vand.u32 2147483647, %v3108
  %v3293 = vand.u32 2147483647, %v3109
  %v3294 = vand.u32 2147483647, %v3110
  %v3295 = vand.u32 2147483647, %v3111
  %v3296 = vand.u32 2147483647, %v3112
  %v3297 = vand.u32 2147483647, %v3113
  %v3298 = vand.u32 2147483647, %v3114
  %v3299 = vand.u32 2147483647, %v3115
  %v3300 = vand.u32 2147483647, %v3116
  %v3301 = vand.u32 2147483647, %v3117
  %v3302 = vand.u32 2147483647, %v3118
  %v3303 = vand.u32 2147483647, %v3119
  %v3304 = vand.u32 2147483647, %v3120
  %v3305 = vand.u32 2147483647, %v3121
  %v3306 = vand.u32 2147483647, %v3122
  %v3307 = vand.u32 2147483647, %v3123
  %v3308 = vand.u32 2147483647, %v3124
  %v3309 = vand.u32 2147483647, %v3125
  %v3310 = vand.u32 2147483647, %v3126
  %v3311 = vand.u32 2147483647, %v3127
  %v3312 = vand.u32 2147483647, %v3128
  %v3313 = vand.u32 2147483647, %v3129
  %v3314 = vand.u32 2147483647, %v3130
  %v3315 = vand.u32 2147483647, %v3131
  %v3316 = vand.u32 2147483647, %v3132
  %v3317 = vand.u32 2147483647, %v3133
  %v3318 = vand.u32 2147483647, %v3134
  %v3319 = vand.u32 2147483647, %v3135
  %v3320 = vand.u32 2147483647, %v3136
  %v3321 = vand.u32 2147483647, %v3137
  %v3322 = vand.u32 2147483647, %v3138
  %v3323 = vand.u32 2147483647, %v3139
  %v3324 = vand.u32 2147483647, %v3140
  %v3325 = vand.u32 2147483647, %v3141
  %v3326 = vand.u32 2147483647, %v3142
  %v3327 = vand.u32 2147483647, %v3143
  %v3328 = vand.u32 2147483647, %v3144
  %v3329 = vand.u32 2147483647, %v3145
  %v3330 = vand.u32 2147483647, %v3146
  %v3331 = vand.u32 2147483647, %v3147
  %v3332 = vand.u32 2147483647, %v3148
  %v3333 = vand.u32 2147483647, %v3149
  %v3334 = vand.u32 2147483647, %v3150
  %v3335 = vand.u32 2147483647, %v3151
  %v3336 = vand.u32 2147483647, %v3152
  %v3337 = vand.u32 2147483647, %v3153
  %v3338 = vand.u32 2147483647, %v3154
  %v3339 = vand.u32 2147483647, %v3155
  %v3340 = vand.u32 2147483647, %v3156
  %v3341 = vand.u32 2147483647, %v3157
  %v3342 = vand.u32 2147483647, %v3158
  %v3343 = vand.u32 2147483647, %v3159
  %v3344 = vand.u32 2147483647, %v3160
  %v3345 = vand.u32 2147483647, %v3161
  %v3346 = vand.u32 2147483647, %v3162
  %v3347 = vand.u32 2147483647, %v3163
  %v3348 = vand.u32 2147483647, %v3164
  %v3349 = vand.u32 2147483647, %v3165
  %v3350 = vand.u32 2147483647, %v3166
  %v3351 = vand.u32 2147483647, %v3167
  %v3352 = vand.u32 2147483647, %v3168
  %v3353 = vand.u32 2147483647, %v3169
  %v3354 = vand.u32 2147483647, %v3170
  %v3355 = vand.u32 2147483647, %v3171
  %v3356 = vand.u32 2147483647, %v3172
  %v3357 = vand.u32 2147483647, %v3173
  %v3358 = vand.u32 2147483647, %v3174
  %v3359 = vand.u32 2147483647, %v3175
  %v3360 = vand.u32 2147483647, %v3176
  %v3361 = vsub.f32 1.0, %v3177
  %v3362 = vsub.f32 1.0, %v3178
  %v3363 = vsub.f32 1.0, %v3179
  %v3364 = vsub.f32 1.0, %v3180
  %v3365 = vsub.f32 1.0, %v3181
  %v3366 = vsub.f32 1.0, %v3182
  %v3367 = vsub.f32 1.0, %v3183
  %v3368 = vsub.f32 1.0, %v3184
  %v3369 = vsub.f32 1.0, %v3185
  %v3370 = vsub.f32 1.0, %v3186
  %v3371 = vsub.f32 1.0, %v3187
  %v3372 = vsub.f32 1.0, %v3188
  %v3373 = vsub.f32 1.0, %v3189
  %v3374 = vsub.f32 1.0, %v3190
  %v3375 = vsub.f32 1.0, %v3191
  %v3376 = vsub.f32 1.0, %v3192
  %v3377 = vsub.f32 1.0, %v3193
  %v3378 = vsub.f32 1.0, %v3194
  %v3379 = vsub.f32 1.0, %v3195
  %v3380 = vsub.f32 1.0, %v3196
  %v3381 = vsub.f32 1.0, %v3197
  %v3382 = vsub.f32 1.0, %v3198
  %v3383 = vsub.f32 1.0, %v3199
  %v3384 = vsub.f32 1.0, %v3200
  %v3385 = vsub.f32 1.0, %v3201
  %v3386 = vsub.f32 1.0, %v3202
  %v3387 = vsub.f32 1.0, %v3203
  %v3388 = vsub.f32 1.0, %v3204
  %v3389 = vsub.f32 1.0, %v3205
  %v3390 = vsub.f32 1.0, %v3206
  %v3391 = vsub.f32 1.0, %v3207
  %v3392 = vsub.f32 1.0, %v3208
  %v3393 = vsub.f32 1.0, %v3209
  %v3394 = vsub.f32 1.0, %v3210
  %v3395 = vsub.f32 1.0, %v3211
  %v3396 = vsub.f32 1.0, %v3212
  %v3397 = vsub.f32 1.0, %v3213
  %v3398 = vsub.f32 1.0, %v3214
  %v3399 = vsub.f32 1.0, %v3215
  %v3400 = vsub.f32 1.0, %v3216
  %v3401 = vsub.f32 1.0, %v3217
  %v3402 = vsub.f32 1.0, %v3218
  %v3403 = vsub.f32 1.0, %v3219
  %v3404 = vsub.f32 1.0, %v3220
  %v3405 = vsub.f32 1.0, %v3221
  %v3406 = vsub.f32 1.0, %v3222
  %v3407 = vsub.f32 1.0, %v3223
  %v3408 = vsub.f32 1.0, %v3224
  %v3409 = vsub.f32 1.0, %v3225
  %v3410 = vsub.f32 1.0, %v3226
  %v3411 = vsub.f32 1.0, %v3227
  %v3412 = vsub.f32 1.0, %v3228
  %v3413 = vsub.f32 1.0, %v3229
  %v3414 = vsub.f32 1.0, %v3230
  %v3415 = vsub.f32 1.0, %v3231
  %v3416 = vsub.f32 1.0, %v3232
  %v3417 = vsub.f32 1.0, %v3233
  %v3418 = vsub.f32 1.0, %v3234
  %v3419 = vsub.f32 1.0, %v3235
  %v3420 = vsub.f32 1.0, %v3236
  %v3421 = vsub.f32 1.0, %v3237
  %v3422 = vsub.f32 1.0, %v3238
  %v3423 = vsub.f32 1.0, %v3239
  %v3424 = vsub.f32 1.0, %v3240
  %v3425 = vsub.f32 1.0, %v3241
  %v3426 = vsub.f32 1.0, %v3242
  %v3427 = vsub.f32 1.0, %v3243
  %v3428 = vsub.f32 1.0, %v3244
  %v3429 = vsub.f32 1.0, %v3245
  %v3430 = vsub.f32 1.0, %v3246
  %v3431 = vsub.f32 1.0, %v3247
  %v3432 = vsub.f32 1.0, %v3248
  %v3433 = vsub.f32 1.0, %v3249
  %v3434 = vsub.f32 1.0, %v3250
  %v3435 = vsub.f32 1.0, %v3251
  %v3436 = vsub.f32 1.0, %v3252
  %v3437 = vsub.f32 1.0, %v3253
  %v3438 = vsub.f32 1.0, %v3254
  %v3439 = vsub.f32 1.0, %v3255
  %v3440 = vsub.f32 1.0, %v3256
  %v3441 = vsub.f32 1.0, %v3257
  %v3442 = vsub.f32 1.0, %v3258
  %v3443 = vsub.f32 1.0, %v3259
  %v3444 = vsub.f32 1.0, %v3260
  %v3445 = vsub.f32 1.0, %v3261
  %v3446 = vsub.f32 1.0, %v3262
  %v3447 = vsub.f32 1.0, %v3263
  %v3448 = vsub.f32 1.0, %v3264
  %v3449 = vsub.f32 1.0, %v3265
  %v3450 = vsub.f32 1.0, %v3266
  %v3451 = vsub.f32 1.0, %v3267
  %v3452 = vsub.f32 1.0, %v3268
  %v3453 = vsub.f32 1.0, %v3269
  %v3454 = vsub.f32 1.0, %v3270
  %v3455 = vsub.f32 1.0, %v3271
  %v3456 = vsub.f32 1.0, %v3272
  %v3457 = vsub.f32 1.0, %v3273
  %v3458 = vsub.f32 1.0, %v3274
  %v3459 = vsub.f32 1.0, %v3275
  %v3460 = vsub.f32 1.0, %v3276
  %v3461 = vsub.f32 1.0, %v3277
  %v3462 = vsub.f32 1.0, %v3278
  %v3463 = vsub.f32 1.0, %v3279
  %v3464 = vsub.f32 1.0, %v3280
  %v3465 = vsub.f32 1.0, %v3281
  %v3466 = vsub.f32 1.0, %v3282
  %v3467 = vsub.f32 1.0, %v3283
  %v3468 = vsub.f32 1.0, %v3284
  %v3469 = vsub.f32 1.0, %v3285
  %v3470 = vsub.f32 1.0, %v3286
  %v3471 = vsub.f32 1.0, %v3287
  %v3472 = vsub.f32 1.0, %v3288
  %v3473 = vsub.f32 1.0, %v3289
  %v3474 = vsub.f32 1.0, %v3290
  %v3475 = vsub.f32 1.0, %v3291
  %v3476 = vsub.f32 1.0, %v3292
  %v3477 = vsub.f32 1.0, %v3293
  %v3478 = vsub.f32 1.0, %v3294
  %v3479 = vsub.f32 1.0, %v3295
  %v3480 = vsub.f32 1.0, %v3296
  %v3481 = vsub.f32 1.0, %v3297
  %v3482 = vsub.f32 1.0, %v3298
  %v3483 = vsub.f32 1.0, %v3299
  %v3484 = vsub.f32 1.0, %v3300
  %v3485 = vsub.f32 1.0, %v3301
  %v3486 = vsub.f32 1.0, %v3302
  %v3487 = vsub.f32 1.0, %v3303
  %v3488 = vsub.f32 1.0, %v3304
  %v3489 = vsub.f32 1.0, %v3305
  %v3490 = vsub.f32 1.0, %v3306
  %v3491 = vsub.f32 1.0, %v3307
  %v3492 = vsub.f32 1.0, %v3308
  %v3493 = vsub.f32 1.0, %v3309
  %v3494 = vsub.f32 1.0, %v3310
  %v3495 = vsub.f32 1.0, %v3311
  %v3496 = vsub.f32 1.0, %v3312
  %v3497 = vsub.f32 1.0, %v3313
  %v3498 = vsub.f32 1.0, %v3314
  %v3499 = vsub.f32 1.0, %v3315
  %v3500 = vsub.f32 1.0, %v3316
  %v3501 = vsub.f32 1.0, %v3317
  %v3502 = vsub.f32 1.0, %v3318
  %v3503 = vsub.f32 1.0, %v3319
  %v3504 = vsub.f32 1.0, %v3320
  %v3505 = vsub.f32 1.0, %v3321
  %v3506 = vsub.f32 1.0, %v3322
  %v3507 = vsub.f32 1.0, %v3323
  %v3508 = vsub.f32 1.0, %v3324
  %v3509 = vsub.f32 1.0, %v3325
  %v3510 = vsub.f32 1.0, %v3326
  %v3511 = vsub.f32 1.0, %v3327
  %v3512 = vsub.f32 1.0, %v3328
  %v3513 = vsub.f32 1.0, %v3329
  %v3514 = vsub.f32 1.0, %v3330
  %v3515 = vsub.f32 1.0, %v3331
  %v3516 = vsub.f32 1.0, %v3332
  %v3517 = vsub.f32 1.0, %v3333
  %v3518 = vsub.f32 1.0, %v3334
  %v3519 = vsub.f32 1.0, %v3335
  %v3520 = vsub.f32 1.0, %v3336
  %v3521 = vsub.f32 1.0, %v3337
  %v3522 = vsub.f32 1.0, %v3338
  %v3523 = vsub.f32 1.0, %v3339
  %v3524 = vsub.f32 1.0, %v3340
  %v3525 = vsub.f32 1.0, %v3341
  %v3526 = vsub.f32 1.0, %v3342
  %v3527 = vsub.f32 1.0, %v3343
  %v3528 = vsub.f32 1.0, %v3344
  %v3529 = vsub.f32 1.0, %v3345
  %v3530 = vsub.f32 1.0, %v3346
  %v3531 = vsub.f32 1.0, %v3347
  %v3532 = vsub.f32 1.0, %v3348
  %v3533 = vsub.f32 1.0, %v3349
  %v3534 = vsub.f32 1.0, %v3350
  %v3535 = vsub.f32 1.0, %v3351
  %v3536 = vsub.f32 1.0, %v3352
  %v3537 = vsub.f32 1.0, %v3353
  %v3538 = vsub.f32 1.0, %v3354
  %v3539 = vsub.f32 1.0, %v3355
  %v3540 = vsub.f32 1.0, %v3356
  %v3541 = vsub.f32 1.0, %v3357
  %v3542 = vsub.f32 1.0, %v3358
  %v3543 = vsub.f32 1.0, %v3359
  %v3544 = vsub.f32 1.0, %v3360
  %v3545 = vmax.f32 %v3361, 0.0
  %v3546 = vmax.f32 %v3362, 0.0
  %v3547 = vmax.f32 %v3363, 0.0
  %v3548 = vmax.f32 %v3364, 0.0
  %v3549 = vmax.f32 %v3365, 0.0
  %v3550 = vmax.f32 %v3366, 0.0
  %v3551 = vmax.f32 %v3367, 0.0
  %v3552 = vmax.f32 %v3368, 0.0
  %v3553 = vmax.f32 %v3369, 0.0
  %v3554 = vmax.f32 %v3370, 0.0
  %v3555 = vmax.f32 %v3371, 0.0
  %v3556 = vmax.f32 %v3372, 0.0
  %v3557 = vmax.f32 %v3373, 0.0
  %v3558 = vmax.f32 %v3374, 0.0
  %v3559 = vmax.f32 %v3375, 0.0
  %v3560 = vmax.f32 %v3376, 0.0
  %v3561 = vmax.f32 %v3377, 0.0
  %v3562 = vmax.f32 %v3378, 0.0
  %v3563 = vmax.f32 %v3379, 0.0
  %v3564 = vmax.f32 %v3380, 0.0
  %v3565 = vmax.f32 %v3381, 0.0
  %v3566 = vmax.f32 %v3382, 0.0
  %v3567 = vmax.f32 %v3383, 0.0
  %v3568 = vmax.f32 %v3384, 0.0
  %v3569 = vmax.f32 %v3385, 0.0
  %v3570 = vmax.f32 %v3386, 0.0
  %v3571 = vmax.f32 %v3387, 0.0
  %v3572 = vmax.f32 %v3388, 0.0
  %v3573 = vmax.f32 %v3389, 0.0
  %v3574 = vmax.f32 %v3390, 0.0
  %v3575 = vmax.f32 %v3391, 0.0
  %v3576 = vmax.f32 %v3392, 0.0
  %v3577 = vmax.f32 %v3393, 0.0
  %v3578 = vmax.f32 %v3394, 0.0
  %v3579 = vmax.f32 %v3395, 0.0
  %v3580 = vmax.f32 %v3396, 0.0
  %v3581 = vmax.f32 %v3397, 0.0
  %v3582 = vmax.f32 %v3398, 0.0
  %v3583 = vmax.f32 %v3399, 0.0
  %v3584 = vmax.f32 %v3400, 0.0
  %v3585 = vmax.f32 %v3401, 0.0
  %v3586 = vmax.f32 %v3402, 0.0
  %v3587 = vmax.f32 %v3403, 0.0
  %v3588 = vmax.f32 %v3404, 0.0
  %v3589 = vmax.f32 %v3405, 0.0
  %v3590 = vmax.f32 %v3406, 0.0
  %v3591 = vmax.f32 %v3407, 0.0
  %v3592 = vmax.f32 %v3408, 0.0
  %v3593 = vmax.f32 %v3409, 0.0
  %v3594 = vmax.f32 %v3410, 0.0
  %v3595 = vmax.f32 %v3411, 0.0
  %v3596 = vmax.f32 %v3412, 0.0
  %v3597 = vmax.f32 %v3413, 0.0
  %v3598 = vmax.f32 %v3414, 0.0
  %v3599 = vmax.f32 %v3415, 0.0
  %v3600 = vmax.f32 %v3416, 0.0
  %v3601 = vmax.f32 %v3417, 0.0
  %v3602 = vmax.f32 %v3418, 0.0
  %v3603 = vmax.f32 %v3419, 0.0
  %v3604 = vmax.f32 %v3420, 0.0
  %v3605 = vmax.f32 %v3421, 0.0
  %v3606 = vmax.f32 %v3422, 0.0
  %v3607 = vmax.f32 %v3423, 0.0
  %v3608 = vmax.f32 %v3424, 0.0
  %v3609 = vmax.f32 %v3425, 0.0
  %v3610 = vmax.f32 %v3426, 0.0
  %v3611 = vmax.f32 %v3427, 0.0
  %v3612 = vmax.f32 %v3428, 0.0
  %v3613 = vmax.f32 %v3429, 0.0
  %v3614 = vmax.f32 %v3430, 0.0
  %v3615 = vmax.f32 %v3431, 0.0
  %v3616 = vmax.f32 %v3432, 0.0
  %v3617 = vmax.f32 %v3433, 0.0
  %v3618 = vmax.f32 %v3434, 0.0
  %v3619 = vmax.f32 %v3435, 0.0
  %v3620 = vmax.f32 %v3436, 0.0
  %v3621 = vmax.f32 %v3437, 0.0
  %v3622 = vmax.f32 %v3438, 0.0
  %v3623 = vmax.f32 %v3439, 0.0
  %v3624 = vmax.f32 %v3440, 0.0
  %v3625 = vmax.f32 %v3441, 0.0
  %v3626 = vmax.f32 %v3442, 0.0
  %v3627 = vmax.f32 %v3443, 0.0
  %v3628 = vmax.f32 %v3444, 0.0
  %v3629 = vmax.f32 %v3445, 0.0
  %v3630 = vmax.f32 %v3446, 0.0
  %v3631 = vmax.f32 %v3447, 0.0
  %v3632 = vmax.f32 %v3448, 0.0
  %v3633 = vmax.f32 %v3449, 0.0
  %v3634 = vmax.f32 %v3450, 0.0
  %v3635 = vmax.f32 %v3451, 0.0
  %v3636 = vmax.f32 %v3452, 0.0
  %v3637 = vmax.f32 %v3453, 0.0
  %v3638 = vmax.f32 %v3454, 0.0
  %v3639 = vmax.f32 %v3455, 0.0
  %v3640 = vmax.f32 %v3456, 0.0
  %v3641 = vmax.f32 %v3457, 0.0
  %v3642 = vmax.f32 %v3458, 0.0
  %v3643 = vmax.f32 %v3459, 0.0
  %v3644 = vmax.f32 %v3460, 0.0
  %v3645 = vmax.f32 %v3461, 0.0
  %v3646 = vmax.f32 %v3462, 0.0
  %v3647 = vmax.f32 %v3463, 0.0
  %v3648 = vmax.f32 %v3464, 0.0
  %v3649 = vmax.f32 %v3465, 0.0
  %v3650 = vmax.f32 %v3466, 0.0
  %v3651 = vmax.f32 %v3467, 0.0
  %v3652 = vmax.f32 %v3468, 0.0
  %v3653 = vmax.f32 %v3469, 0.0
  %v3654 = vmax.f32 %v3470, 0.0
  %v3655 = vmax.f32 %v3471, 0.0
  %v3656 = vmax.f32 %v3472, 0.0
  %v3657 = vmax.f32 %v3473, 0.0
  %v3658 = vmax.f32 %v3474, 0.0
  %v3659 = vmax.f32 %v3475, 0.0
  %v3660 = vmax.f32 %v3476, 0.0
  %v3661 = vmax.f32 %v3477, 0.0
  %v3662 = vmax.f32 %v3478, 0.0
  %v3663 = vmax.f32 %v3479, 0.0
  %v3664 = vmax.f32 %v3480, 0.0
  %v3665 = vmax.f32 %v3481, 0.0
  %v3666 = vmax.f32 %v3482, 0.0
  %v3667 = vmax.f32 %v3483, 0.0
  %v3668 = vmax.f32 %v3484, 0.0
  %v3669 = vmax.f32 %v3485, 0.0
  %v3670 = vmax.f32 %v3486, 0.0
  %v3671 = vmax.f32 %v3487, 0.0
  %v3672 = vmax.f32 %v3488, 0.0
  %v3673 = vmax.f32 %v3489, 0.0
  %v3674 = vmax.f32 %v3490, 0.0
  %v3675 = vmax.f32 %v3491, 0.0
  %v3676 = vmax.f32 %v3492, 0.0
  %v3677 = vmax.f32 %v3493, 0.0
  %v3678 = vmax.f32 %v3494, 0.0
  %v3679 = vmax.f32 %v3495, 0.0
  %v3680 = vmax.f32 %v3496, 0.0
  %v3681 = vmax.f32 %v3497, 0.0
  %v3682 = vmax.f32 %v3498, 0.0
  %v3683 = vmax.f32 %v3499, 0.0
  %v3684 = vmax.f32 %v3500, 0.0
  %v3685 = vmax.f32 %v3501, 0.0
  %v3686 = vmax.f32 %v3502, 0.0
  %v3687 = vmax.f32 %v3503, 0.0
  %v3688 = vmax.f32 %v3504, 0.0
  %v3689 = vmax.f32 %v3505, 0.0
  %v3690 = vmax.f32 %v3506, 0.0
  %v3691 = vmax.f32 %v3507, 0.0
  %v3692 = vmax.f32 %v3508, 0.0
  %v3693 = vmax.f32 %v3509, 0.0
  %v3694 = vmax.f32 %v3510, 0.0
  %v3695 = vmax.f32 %v3511, 0.0
  %v3696 = vmax.f32 %v3512, 0.0
  %v3697 = vmax.f32 %v3513, 0.0
  %v3698 = vmax.f32 %v3514, 0.0
  %v3699 = vmax.f32 %v3515, 0.0
  %v3700 = vmax.f32 %v3516, 0.0
  %v3701 = vmax.f32 %v3517, 0.0
  %v3702 = vmax.f32 %v3518, 0.0
  %v3703 = vmax.f32 %v3519, 0.0
  %v3704 = vmax.f32 %v3520, 0.0
  %v3705 = vmax.f32 %v3521, 0.0
  %v3706 = vmax.f32 %v3522, 0.0
  %v3707 = vmax.f32 %v3523, 0.0
  %v3708 = vmax.f32 %v3524, 0.0
  %v3709 = vmax.f32 %v3525, 0.0
  %v3710 = vmax.f32 %v3526, 0.0
  %v3711 = vmax.f32 %v3527, 0.0
  %v3712 = vmax.f32 %v3528, 0.0
  %v3713 = vmax.f32 %v3529, 0.0
  %v3714 = vmax.f32 %v3530, 0.0
  %v3715 = vmax.f32 %v3531, 0.0
  %v3716 = vmax.f32 %v3532, 0.0
  %v3717 = vmax.f32 %v3533, 0.0
  %v3718 = vmax.f32 %v3534, 0.0
  %v3719 = vmax.f32 %v3535, 0.0
  %v3720 = vmax.f32 %v3536, 0.0
  %v3721 = vmax.f32 %v3537, 0.0
  %v3722 = vmax.f32 %v3538, 0.0
  %v3723 = vmax.f32 %v3539, 0.0
  %v3724 = vmax.f32 %v3540, 0.0
  %v3725 = vmax.f32 %v3541, 0.0
  %v3726 = vmax.f32 %v3542, 0.0
  %v3727 = vmax.f32 %v3543, 0.0
  %v3728 = vmax.f32 %v3544, 0.0
  %v3729 = vmul.f32 %v2435, %v3545
  %v3730 = vmul.f32 %v2436, %v3546
  %v3731 = vmul.f32 %v2437, %v3547
  %v3732 = vmul.f32 %v2438, %v3548
  %v3733 = vmul.f32 %v2439, %v3549
  %v3734 = vmul.f32 %v2440, %v3550
  %v3735 = vmul.f32 %v2441, %v3551
  %v3736 = vmul.f32 %v2442, %v3552
  %v3737 = vmul.f32 %v2443, %v3553
  %v3738 = vmul.f32 %v2444, %v3554
  %v3739 = vmul.f32 %v2445, %v3555
  %v3740 = vmul.f32 %v2446, %v3556
  %v3741 = vmul.f32 %v2447, %v3557
  %v3742 = vmul.f32 %v2448, %v3558
  %v3743 = vmul.f32 %v2449, %v3559
  %v3744 = vmul.f32 %v2450, %v3560
  %v3745 = vmul.f32 %v2451, %v3561
  %v3746 = vmul.f32 %v2452, %v3562
  %v3747 = vmul.f32 %v2453, %v3563
  %v3748 = vmul.f32 %v2454, %v3564
  %v3749 = vmul.f32 %v2455, %v3565
  %v3750 = vmul.f32 %v2456, %v3566
  %v3751 = vmul.f32 %v2457, %v3567
  %v3752 = vmul.f32 %v2458, %v3568
  %v3753 = vmul.f32 %v2459, %v3569
  %v3754 = vmul.f32 %v2460, %v3570
  %v3755 = vmul.f32 %v2461, %v3571
  %v3756 = vmul.f32 %v2462, %v3572
  %v3757 = vmul.f32 %v2463, %v3573
  %v3758 = vmul.f32 %v2464, %v3574
  %v3759 = vmul.f32 %v2465, %v3575
  %v3760 = vmul.f32 %v2466, %v3576
  %v3761 = vmul.f32 %v2467, %v3577
  %v3762 = vmul.f32 %v2468, %v3578
  %v3763 = vmul.f32 %v2469, %v3579
  %v3764 = vmul.f32 %v2470, %v3580
  %v3765 = vmul.f32 %v2471, %v3581
  %v3766 = vmul.f32 %v2472, %v3582
  %v3767 = vmul.f32 %v2473, %v3583
  %v3768 = vmul.f32 %v2474, %v3584
  %v3769 = vmul.f32 %v2475, %v3585
  %v3770 = vmul.f32 %v2476, %v3586
  %v3771 = vmul.f32 %v2477, %v3587
  %v3772 = vmul.f32 %v2478, %v3588
  %v3773 = vmul.f32 %v2479, %v3589
  %v3774 = vmul.f32 %v2480, %v3590
  %v3775 = vmul.f32 %v2481, %v3591
  %v3776 = vmul.f32 %v2482, %v3592
  %v3777 = vmul.f32 %v2483, %v3593
  %v3778 = vmul.f32 %v2484, %v3594
  %v3779 = vmul.f32 %v2485, %v3595
  %v3780 = vmul.f32 %v2486, %v3596
  %v3781 = vmul.f32 %v2487, %v3597
  %v3782 = vmul.f32 %v2488, %v3598
  %v3783 = vmul.f32 %v2489, %v3599
  %v3784 = vmul.f32 %v2490, %v3600
  %v3785 = vmul.f32 %v2491, %v3601
  %v3786 = vmul.f32 %v2492, %v3602
  %v3787 = vmul.f32 %v2493, %v3603
  %v3788 = vmul.f32 %v2494, %v3604
  %v3789 = vmul.f32 %v2495, %v3605
  %v3790 = vmul.f32 %v2496, %v3606
  %v3791 = vmul.f32 %v2497, %v3607
  %v3792 = vmul.f32 %v2498, %v3608
  %v3793 = vmul.f32 %v2499, %v3609
  %v3794 = vmul.f32 %v2500, %v3610
  %v3795 = vmul.f32 %v2501, %v3611
  %v3796 = vmul.f32 %v2502, %v3612
  %v3797 = vmul.f32 %v2503, %v3613
  %v3798 = vmul.f32 %v2504, %v3614
  %v3799 = vmul.f32 %v2505, %v3615
  %v3800 = vmul.f32 %v2506, %v3616
  %v3801 = vmul.f32 %v2507, %v3617
  %v3802 = vmul.f32 %v2508, %v3618
  %v3803 = vmul.f32 %v2509, %v3619
  %v3804 = vmul.f32 %v2510, %v3620
  %v3805 = vmul.f32 %v2511, %v3621
  %v3806 = vmul.f32 %v2512, %v3622
  %v3807 = vmul.f32 %v2513, %v3623
  %v3808 = vmul.f32 %v2514, %v3624
  %v3809 = vmul.f32 %v2515, %v3625
  %v3810 = vmul.f32 %v2516, %v3626
  %v3811 = vmul.f32 %v2517, %v3627
  %v3812 = vmul.f32 %v2518, %v3628
  %v3813 = vmul.f32 %v2519, %v3629
  %v3814 = vmul.f32 %v2520, %v3630
  %v3815 = vmul.f32 %v2521, %v3631
  %v3816 = vmul.f32 %v2522, %v3632
  %v3817 = vmul.f32 %v2523, %v3633
  %v3818 = vmul.f32 %v2524, %v3634
  %v3819 = vmul.f32 %v2525, %v3635
  %v3820 = vmul.f32 %v2526, %v3636
  %v3821 = vmul.f32 %v2527, %v3637
  %v3822 = vmul.f32 %v2528, %v3638
  %v3823 = vmul.f32 %v2529, %v3639
  %v3824 = vmul.f32 %v2530, %v3640
  %v3825 = vmul.f32 %v2531, %v3641
  %v3826 = vmul.f32 %v2532, %v3642
  %v3827 = vmul.f32 %v2533, %v3643
  %v3828 = vmul.f32 %v2534, %v3644
  %v3829 = vmul.f32 %v2535, %v3645
  %v3830 = vmul.f32 %v2536, %v3646
  %v3831 = vmul.f32 %v2537, %v3647
  %v3832 = vmul.f32 %v2538, %v3648
  %v3833 = vmul.f32 %v2539, %v3649
  %v3834 = vmul.f32 %v2540, %v3650
  %v3835 = vmul.f32 %v2541, %v3651
  %v3836 = vmul.f32 %v2542, %v3652
  %v3837 = vmul.f32 %v2543, %v3653
  %v3838 = vmul.f32 %v2544, %v3654
  %v3839 = vmul.f32 %v2545, %v3655
  %v3840 = vmul.f32 %v2546, %v3656
  %v3841 = vmul.f32 %v2547, %v3657
  %v3842 = vmul.f32 %v2548, %v3658
  %v3843 = vmul.f32 %v2549, %v3659
  %v3844 = vmul.f32 %v2550, %v3660
  %v3845 = vmul.f32 %v2551, %v3661
  %v3846 = vmul.f32 %v2552, %v3662
  %v3847 = vmul.f32 %v2553, %v3663
  %v3848 = vmul.f32 %v2554, %v3664
  %v3849 = vmul.f32 %v2555, %v3665
  %v3850 = vmul.f32 %v2556, %v3666
  %v3851 = vmul.f32 %v2557, %v3667
  %v3852 = vmul.f32 %v2558, %v3668
  %v3853 = vmul.f32 %v2559, %v3669
  %v3854 = vmul.f32 %v2560, %v3670
  %v3855 = vmul.f32 %v2561, %v3671
  %v3856 = vmul.f32 %v2562, %v3672
  %v3857 = vmul.f32 %v2563, %v3673
  %v3858 = vmul.f32 %v2564, %v3674
  %v3859 = vmul.f32 %v2565, %v3675
  %v3860 = vmul.f32 %v2566, %v3676
  %v3861 = vmul.f32 %v2567, %v3677
  %v3862 = vmul.f32 %v2568, %v3678
  %v3863 = vmul.f32 %v2569, %v3679
  %v3864 = vmul.f32 %v2570, %v3680
  %v3865 = vmul.f32 %v2571, %v3681
  %v3866 = vmul.f32 %v2572, %v3682
  %v3867 = vmul.f32 %v2573, %v3683
  %v3868 = vmul.f32 %v2574, %v3684
  %v3869 = vmul.f32 %v2575, %v3685
  %v3870 = vmul.f32 %v2576, %v3686
  %v3871 = vmul.f32 %v2577, %v3687
  %v3872 = vmul.f32 %v2578, %v3688
  %v3873 = vmul.f32 %v2579, %v3689
  %v3874 = vmul.f32 %v2580, %v3690
  %v3875 = vmul.f32 %v2581, %v3691
  %v3876 = vmul.f32 %v2582, %v3692
  %v3877 = vmul.f32 %v2583, %v3693
  %v3878 = vmul.f32 %v2584, %v3694
  %v3879 = vmul.f32 %v2585, %v3695
  %v3880 = vmul.f32 %v2586, %v3696
  %v3881 = vmul.f32 %v2587, %v3697
  %v3882 = vmul.f32 %v2588, %v3698
  %v3883 = vmul.f32 %v2589, %v3699
  %v3884 = vmul.f32 %v2590, %v3700
  %v3885 = vmul.f32 %v2591, %v3701
  %v3886 = vmul.f32 %v2592, %v3702
  %v3887 = vmul.f32 %v2593, %v3703
  %v3888 = vmul.f32 %v2594, %v3704
  %v3889 = vmul.f32 %v2595, %v3705
  %v3890 = vmul.f32 %v2596, %v3706
  %v3891 = vmul.f32 %v2597, %v3707
  %v3892 = vmul.f32 %v2598, %v3708
  %v3893 = vmul.f32 %v2599, %v3709
  %v3894 = vmul.f32 %v2600, %v3710
  %v3895 = vmul.f32 %v2601, %v3711
  %v3896 = vmul.f32 %v2602, %v3712
  %v3897 = vmul.f32 %v2603, %v3713
  %v3898 = vmul.f32 %v2604, %v3714
  %v3899 = vmul.f32 %v2605, %v3715
  %v3900 = vmul.f32 %v2606, %v3716
  %v3901 = vmul.f32 %v2607, %v3717
  %v3902 = vmul.f32 %v2608, %v3718
  %v3903 = vmul.f32 %v2609, %v3719
  %v3904 = vmul.f32 %v2610, %v3720
  %v3905 = vmul.f32 %v2611, %v3721
  %v3906 = vmul.f32 %v2612, %v3722
  %v3907 = vmul.f32 %v2613, %v3723
  %v3908 = vmul.f32 %v2614, %v3724
  %v3909 = vmul.f32 %v2615, %v3725
  %v3910 = vmul.f32 %v2616, %v3726
  %v3911 = vmul.f32 %v2617, %v3727
  %v3912 = vmul.f32 %v2618, %v3728
  %v3913 = vld [vmem:[%s1] sm:$0xff]
  %v3914 = vld [vmem:[%s1 + $0x8] sm:$0xff]
  %v3915 = vld [vmem:[%s1 + $0x10] sm:$0xff]
  %v3916 = vld [vmem:[%s1 + $0x18] sm:$0xff]
  %v3917 = vld [vmem:[%s1 + $0x20] sm:$0xff]
  %v3918 = vld [vmem:[%s1 + $0x28] sm:$0xff]
  %vm3919 = vcmask 728064
  %v3921 = vsel %vm3919, %v3918, 0
  %vm3923 = vcmask 1040384
  %v3925 = vsel %vm3923, %v3911, 0
  %v3928 = vsel %vm3923, %v3912, 0
  %3930 = vmatpush.msra.mxu0 %v3759
  %3931 = vmatpush.msra.mxu0 %v3757
  %3932 = vmatpush.msra.mxu0 %v3755
  %3933 = vmatpush.msra.mxu0 %v3753
  %3934 = vmatpush.msra.mxu0 %v3751
  %3935 = vmatpush.msra.mxu0 %v3749
  %3936 = vmatpush.msra.mxu0 %v3747
  %3937 = vmatpush.msra.mxu0 %v3745
  %3938 = vmatpush.msra.mxu0 %v3743
  %3939 = vmatpush.msra.mxu0 %v3741
  %3940 = vmatpush.msra.mxu0 %v3739
  %3941 = vmatpush.msra.mxu0 %v3737
  %3942 = vmatpush.msra.mxu0 %v3735
  %3943 = vmatpush.msra.mxu0 %v3733
  %3944 = vmatpush.msra.mxu0 %v3731
  %3945 = vmatpush.msra.mxu0 %v3729
  %3946 = vmatmul.f32.gmra.mxu0 %v3913
  %v3947 = vpop.f32.mrf.mxu0
  %v3948 = vadd.f32 0.0, %v3947
  %3949 = vdwg.mxu0
  %3950 = vmatpush.msra.mxu0 %v3791
  %3951 = vmatpush.msra.mxu0 %v3789
  %3952 = vmatpush.msra.mxu0 %v3787
  %3953 = vmatpush.msra.mxu0 %v3785
  %3954 = vmatpush.msra.mxu0 %v3783
  %3955 = vmatpush.msra.mxu0 %v3781
  %3956 = vmatpush.msra.mxu0 %v3779
  %3957 = vmatpush.msra.mxu0 %v3777
  %3958 = vmatpush.msra.mxu0 %v3775
  %3959 = vmatpush.msra.mxu0 %v3773
  %3960 = vmatpush.msra.mxu0 %v3771
  %3961 = vmatpush.msra.mxu0 %v3769
  %3962 = vmatpush.msra.mxu0 %v3767
  %3963 = vmatpush.msra.mxu0 %v3765
  %3964 = vmatpush.msra.mxu0 %v3763
  %3965 = vmatpush.msra.mxu0 %v3761
  %3966 = vmatmul.f32.gmra.mxu0 %v3914
  %v3967 = vpop.f32.mrf.mxu0
  %v3968 = vadd.f32 %v3948, %v3967
  %3969 = vdwg.mxu0
  %3970 = vmatpush.msra.mxu0 %v3823
  %3971 = vmatpush.msra.mxu0 %v3821
  %3972 = vmatpush.msra.mxu0 %v3819
  %3973 = vmatpush.msra.mxu0 %v3817
  %3974 = vmatpush.msra.mxu0 %v3815
  %3975 = vmatpush.msra.mxu0 %v3813
  %3976 = vmatpush.msra.mxu0 %v3811
  %3977 = vmatpush.msra.mxu0 %v3809
  %3978 = vmatpush.msra.mxu0 %v3807
  %3979 = vmatpush.msra.mxu0 %v3805
  %3980 = vmatpush.msra.mxu0 %v3803
  %3981 = vmatpush.msra.mxu0 %v3801
  %3982 = vmatpush.msra.mxu0 %v3799
  %3983 = vmatpush.msra.mxu0 %v3797
  %3984 = vmatpush.msra.mxu0 %v3795
  %3985 = vmatpush.msra.mxu0 %v3793
  %3986 = vmatmul.f32.gmra.mxu0 %v3915
  %v3987 = vpop.f32.mrf.mxu0
  %v3988 = vadd.f32 %v3968, %v3987
  %3989 = vdwg.mxu0
  %3990 = vmatpush.msra.mxu0 %v3855
  %3991 = vmatpush.msra.mxu0 %v3853
  %3992 = vmatpush.msra.mxu0 %v3851
  %3993 = vmatpush.msra.mxu0 %v3849
  %3994 = vmatpush.msra.mxu0 %v3847
  %3995 = vmatpush.msra.mxu0 %v3845
  %3996 = vmatpush.msra.mxu0 %v3843
  %3997 = vmatpush.msra.mxu0 %v3841
  %3998 = vmatpush.msra.mxu0 %v3839
  %3999 = vmatpush.msra.mxu0 %v3837
  %4000 = vmatpush.msra.mxu0 %v3835
  %4001 = vmatpush.msra.mxu0 %v3833
  %4002 = vmatpush.msra.mxu0 %v3831
  %4003 = vmatpush.msra.mxu0 %v3829
  %4004 = vmatpush.msra.mxu0 %v3827
  %4005 = vmatpush.msra.mxu0 %v3825
  %4006 = vmatmul.f32.gmra.mxu0 %v3916
  %v4007 = vpop.f32.mrf.mxu0
  %v4008 = vadd.f32 %v3988, %v4007
  %4009 = vdwg.mxu0
  %4010 = vmatpush.msra.mxu0 %v3887
  %4011 = vmatpush.msra.mxu0 %v3885
  %4012 = vmatpush.msra.mxu0 %v3883
  %4013 = vmatpush.msra.mxu0 %v3881
  %4014 = vmatpush.msra.mxu0 %v3879
  %4015 = vmatpush.msra.mxu0 %v3877
  %4016 = vmatpush.msra.mxu0 %v3875
  %4017 = vmatpush.msra.mxu0 %v3873
  %4018 = vmatpush.msra.mxu0 %v3871
  %4019 = vmatpush.msra.mxu0 %v3869
  %4020 = vmatpush.msra.mxu0 %v3867
  %4021 = vmatpush.msra.mxu0 %v3865
  %4022 = vmatpush.msra.mxu0 %v3863
  %4023 = vmatpush.msra.mxu0 %v3861
  %4024 = vmatpush.msra.mxu0 %v3859
  %4025 = vmatpush.msra.mxu0 %v3857
  %4026 = vmatmul.f32.gmra.mxu0 %v3917
  %v4027 = vpop.f32.mrf.mxu0
  %v4028 = vadd.f32 %v4008, %v4027
  %4029 = vdwg.mxu0
  %4030 = vmatpush.msra.mxu0 0.0
  %4031 = vmatpush.msra.mxu0 0.0
  %4032 = vmatpush.msra.mxu0 0.0
  %4033 = vmatpush.msra.mxu0 0.0
  %4034 = vmatpush.msra.mxu0 %v3925
  %4035 = vmatpush.msra.mxu0 %v3909
  %4036 = vmatpush.msra.mxu0 %v3907
  %4037 = vmatpush.msra.mxu0 %v3905
  %4038 = vmatpush.msra.mxu0 %v3903
  %4039 = vmatpush.msra.mxu0 %v3901
  %4040 = vmatpush.msra.mxu0 %v3899
  %4041 = vmatpush.msra.mxu0 %v3897
  %4042 = vmatpush.msra.mxu0 %v3895
  %4043 = vmatpush.msra.mxu0 %v3893
  %4044 = vmatpush.msra.mxu0 %v3891
  %4045 = vmatpush.msra.mxu0 %v3889
  %4046 = vmatmul.f32.gmra.mxu0 %v3921
  %v4047 = vpop.f32.mrf.mxu0
  %v4048 = vadd.f32 %v4028, %v4047
  %4049 = vdwg.mxu0
  %4050 = vmatpush.msra.mxu0 %v3760
  %4051 = vmatpush.msra.mxu0 %v3758
  %4052 = vmatpush.msra.mxu0 %v3756
  %4053 = vmatpush.msra.mxu0 %v3754
  %4054 = vmatpush.msra.mxu0 %v3752
  %4055 = vmatpush.msra.mxu0 %v3750
  %4056 = vmatpush.msra.mxu0 %v3748
  %4057 = vmatpush.msra.mxu0 %v3746
  %4058 = vmatpush.msra.mxu0 %v3744
  %4059 = vmatpush.msra.mxu0 %v3742
  %4060 = vmatpush.msra.mxu0 %v3740
  %4061 = vmatpush.msra.mxu0 %v3738
  %4062 = vmatpush.msra.mxu0 %v3736
  %4063 = vmatpush.msra.mxu0 %v3734
  %4064 = vmatpush.msra.mxu0 %v3732
  %4065 = vmatpush.msra.mxu0 %v3730
  %4066 = vmatmul.f32.gmra.mxu0 %v3913
  %v4067 = vpop.f32.mrf.mxu0
  %v4068 = vadd.f32 0.0, %v4067
  %4069 = vdwg.mxu0
  %4070 = vmatpush.msra.mxu0 %v3792
  %4071 = vmatpush.msra.mxu0 %v3790
  %4072 = vmatpush.msra.mxu0 %v3788
  %4073 = vmatpush.msra.mxu0 %v3786
  %4074 = vmatpush.msra.mxu0 %v3784
  %4075 = vmatpush.msra.mxu0 %v3782
  %4076 = vmatpush.msra.mxu0 %v3780
  %4077 = vmatpush.msra.mxu0 %v3778
  %4078 = vmatpush.msra.mxu0 %v3776
  %4079 = vmatpush.msra.mxu0 %v3774
  %4080 = vmatpush.msra.mxu0 %v3772
  %4081 = vmatpush.msra.mxu0 %v3770
  %4082 = vmatpush.msra.mxu0 %v3768
  %4083 = vmatpush.msra.mxu0 %v3766
  %4084 = vmatpush.msra.mxu0 %v3764
  %4085 = vmatpush.msra.mxu0 %v3762
  %4086 = vmatmul.f32.gmra.mxu0 %v3914
  %v4087 = vpop.f32.mrf.mxu0
  %v4088 = vadd.f32 %v4068, %v4087
  %4089 = vdwg.mxu0
  %4090 = vmatpush.msra.mxu0 %v3824
  %4091 = vmatpush.msra.mxu0 %v3822
  %4092 = vmatpush.msra.mxu0 %v3820
  %4093 = vmatpush.msra.mxu0 %v3818
  %4094 = vmatpush.msra.mxu0 %v3816
  %4095 = vmatpush.msra.mxu0 %v3814
  %4096 = vmatpush.msra.mxu0 %v3812
  %4097 = vmatpush.msra.mxu0 %v3810
  %4098 = vmatpush.msra.mxu0 %v3808
  %4099 = vmatpush.msra.mxu0 %v3806
  %4100 = vmatpush.msra.mxu0 %v3804
  %4101 = vmatpush.msra.mxu0 %v3802
  %4102 = vmatpush.msra.mxu0 %v3800
  %4103 = vmatpush.msra.mxu0 %v3798
  %4104 = vmatpush.msra.mxu0 %v3796
  %4105 = vmatpush.msra.mxu0 %v3794
  %4106 = vmatmul.f32.gmra.mxu0 %v3915
  %v4107 = vpop.f32.mrf.mxu0
  %v4108 = vadd.f32 %v4088, %v4107
  %4109 = vdwg.mxu0
  %4110 = vmatpush.msra.mxu0 %v3856
  %4111 = vmatpush.msra.mxu0 %v3854
  %4112 = vmatpush.msra.mxu0 %v3852
  %4113 = vmatpush.msra.mxu0 %v3850
  %4114 = vmatpush.msra.mxu0 %v3848
  %4115 = vmatpush.msra.mxu0 %v3846
  %4116 = vmatpush.msra.mxu0 %v3844
  %4117 = vmatpush.msra.mxu0 %v3842
  %4118 = vmatpush.msra.mxu0 %v3840
  %4119 = vmatpush.msra.mxu0 %v3838
  %4120 = vmatpush.msra.mxu0 %v3836
  %4121 = vmatpush.msra.mxu0 %v3834
  %4122 = vmatpush.msra.mxu0 %v3832
  %4123 = vmatpush.msra.mxu0 %v3830
  %4124 = vmatpush.msra.mxu0 %v3828
  %4125 = vmatpush.msra.mxu0 %v3826
  %4126 = vmatmul.f32.gmra.mxu0 %v3916
  %v4127 = vpop.f32.mrf.mxu0
  %v4128 = vadd.f32 %v4108, %v4127
  %4129 = vdwg.mxu0
  %4130 = vmatpush.msra.mxu0 %v3888
  %4131 = vmatpush.msra.mxu0 %v3886
  %4132 = vmatpush.msra.mxu0 %v3884
  %4133 = vmatpush.msra.mxu0 %v3882
  %4134 = vmatpush.msra.mxu0 %v3880
  %4135 = vmatpush.msra.mxu0 %v3878
  %4136 = vmatpush.msra.mxu0 %v3876
  %4137 = vmatpush.msra.mxu0 %v3874
  %4138 = vmatpush.msra.mxu0 %v3872
  %4139 = vmatpush.msra.mxu0 %v3870
  %4140 = vmatpush.msra.mxu0 %v3868
  %4141 = vmatpush.msra.mxu0 %v3866
  %4142 = vmatpush.msra.mxu0 %v3864
  %4143 = vmatpush.msra.mxu0 %v3862
  %4144 = vmatpush.msra.mxu0 %v3860
  %4145 = vmatpush.msra.mxu0 %v3858
  %4146 = vmatmul.f32.gmra.mxu0 %v3917
  %v4147 = vpop.f32.mrf.mxu0
  %v4148 = vadd.f32 %v4128, %v4147
  %4149 = vdwg.mxu0
  %4150 = vmatpush.msra.mxu0 0.0
  %4151 = vmatpush.msra.mxu0 0.0
  %4152 = vmatpush.msra.mxu0 0.0
  %4153 = vmatpush.msra.mxu0 0.0
  %4154 = vmatpush.msra.mxu0 %v3928
  %4155 = vmatpush.msra.mxu0 %v3910
  %4156 = vmatpush.msra.mxu0 %v3908
  %4157 = vmatpush.msra.mxu0 %v3906
  %4158 = vmatpush.msra.mxu0 %v3904
  %4159 = vmatpush.msra.mxu0 %v3902
  %4160 = vmatpush.msra.mxu0 %v3900
  %4161 = vmatpush.msra.mxu0 %v3898
  %4162 = vmatpush.msra.mxu0 %v3896
  %4163 = vmatpush.msra.mxu0 %v3894
  %4164 = vmatpush.msra.mxu0 %v3892
  %4165 = vmatpush.msra.mxu0 %v3890
  %4166 = vmatmul.f32.gmra.mxu0 %v3921
  %v4167 = vpop.f32.mrf.mxu0
  %v4168 = vadd.f32 %v4148, %v4167
  %4169 = vdwg.mxu0
  %4170 = vst [vmem:[%s7] sm:$0xff] %v4048
  %4171 = vst [vmem:[%s7 + $0x8] sm:$0xff] %v4168
  %v4172 = vld [vmem:[%s5] sm:$0xff]
  %v4173 = vld [vmem:[%s5 + $0x8] sm:$0xff]
  %v4174 = vld [vmem:[%s5 + $0x10] sm:$0xff]
  %v4175 = vld [vmem:[%s5 + $0x18] sm:$0xff]
  %v4176 = vld [vmem:[%s5 + $0x20] sm:$0xff]
  %v4177 = vld [vmem:[%s5 + $0x28] sm:$0xff]
  %v4178 = vld [vmem:[%s5 + $0x30] sm:$0xff]
  %v4179 = vld [vmem:[%s5 + $0x38] sm:$0xff]
  %v4180 = vld [vmem:[%s5 + $0x40] sm:$0xff]
  %v4181 = vld [vmem:[%s5 + $0x48] sm:$0xff]
  %v4182 = vld [vmem:[%s5 + $0x50] sm:$0xff]
  %v4183 = vld [vmem:[%s5 + $0x58] sm:$0xff]
  %v4184 = vld [vmem:[%s5 + $0x60] sm:$0xff]
  %v4185 = vld [vmem:[%s5 + $0x68] sm:$0xff]
  %v4186 = vld [vmem:[%s5 + $0x70] sm:$0xff]
  %v4187 = vld [vmem:[%s5 + $0x78] sm:$0x1f]
  %v4188 = vmul.f32 %v28, 4.0
  %4190 = vset.pattern.permute.xlu0 0
  %4191 = vperm.xlu0 %4190, %v4172
  %v4192 = vpop.permute.xlu0 %4191
  %4195 = vset.pattern.permute.xlu0 0
  %4196 = vperm.xlu0 %4195, %v4173
  %v4197 = vpop.permute.xlu0 %4196
  %4200 = vset.pattern.permute.xlu0 0
  %4201 = vperm.xlu0 %4200, %v4174
  %v4202 = vpop.permute.xlu0 %4201
  %4205 = vset.pattern.permute.xlu0 0
  %4206 = vperm.xlu0 %4205, %v4175
  %v4207 = vpop.permute.xlu0 %4206
  %4210 = vset.pattern.permute.xlu0 0
  %4211 = vperm.xlu0 %4210, %v4176
  %v4212 = vpop.permute.xlu0 %4211
  %4215 = vset.pattern.permute.xlu0 0
  %4216 = vperm.xlu0 %4215, %v4177
  %v4217 = vpop.permute.xlu0 %4216
  %4220 = vset.pattern.permute.xlu0 0
  %4221 = vperm.xlu0 %4220, %v4178
  %v4222 = vpop.permute.xlu0 %4221
  %4225 = vset.pattern.permute.xlu0 0
  %4226 = vperm.xlu0 %4225, %v4179
  %v4227 = vpop.permute.xlu0 %4226
  %4230 = vset.pattern.permute.xlu0 0
  %4231 = vperm.xlu0 %4230, %v4180
  %v4232 = vpop.permute.xlu0 %4231
  %4235 = vset.pattern.permute.xlu0 0
  %4236 = vperm.xlu0 %4235, %v4181
  %v4237 = vpop.permute.xlu0 %4236
  %4240 = vset.pattern.permute.xlu0 0
  %4241 = vperm.xlu0 %4240, %v4182
  %v4242 = vpop.permute.xlu0 %4241
  %4245 = vset.pattern.permute.xlu0 0
  %4246 = vperm.xlu0 %4245, %v4183
  %v4247 = vpop.permute.xlu0 %4246
  %4250 = vset.pattern.permute.xlu0 0
  %4251 = vperm.xlu0 %4250, %v4184
  %v4252 = vpop.permute.xlu0 %4251
  %4255 = vset.pattern.permute.xlu0 0
  %4256 = vperm.xlu0 %4255, %v4185
  %v4257 = vpop.permute.xlu0 %4256
  %4260 = vset.pattern.permute.xlu0 0
  %4261 = vperm.xlu0 %4260, %v4186
  %v4262 = vpop.permute.xlu0 %4261
  %4265 = vset.pattern.permute.xlu0 0
  %4266 = vperm.xlu0 %4265, %v4187
  %v4267 = vpop.permute.xlu0 %4266
  %v4270 = vperm.slane %v4188, 0
  %v4271 = vperm.slane %v4188, 4
  %v4274 = vperm.slane %v4270, 0
  %v4275 = vperm.slane %v4271, 0
  %v4276 = vsub.f32 %v4192, %v4274
  %v4277 = vsub.f32 %v4192, %v4275
  %v4278 = vsub.f32 %v4197, %v4274
  %v4279 = vsub.f32 %v4197, %v4275
  %v4280 = vsub.f32 %v4202, %v4274
  %v4281 = vsub.f32 %v4202, %v4275
  %v4282 = vsub.f32 %v4207, %v4274
  %v4283 = vsub.f32 %v4207, %v4275
  %v4284 = vsub.f32 %v4212, %v4274
  %v4285 = vsub.f32 %v4212, %v4275
  %v4286 = vsub.f32 %v4217, %v4274
  %v4287 = vsub.f32 %v4217, %v4275
  %v4288 = vsub.f32 %v4222, %v4274
  %v4289 = vsub.f32 %v4222, %v4275
  %v4290 = vsub.f32 %v4227, %v4274
  %v4291 = vsub.f32 %v4227, %v4275
  %v4292 = vsub.f32 %v4232, %v4274
  %v4293 = vsub.f32 %v4232, %v4275
  %v4294 = vsub.f32 %v4237, %v4274
  %v4295 = vsub.f32 %v4237, %v4275
  %v4296 = vsub.f32 %v4242, %v4274
  %v4297 = vsub.f32 %v4242, %v4275
  %v4298 = vsub.f32 %v4247, %v4274
  %v4299 = vsub.f32 %v4247, %v4275
  %v4300 = vsub.f32 %v4252, %v4274
  %v4301 = vsub.f32 %v4252, %v4275
  %v4302 = vsub.f32 %v4257, %v4274
  %v4303 = vsub.f32 %v4257, %v4275
  %v4304 = vsub.f32 %v4262, %v4274
  %v4305 = vsub.f32 %v4262, %v4275
  %v4306 = vsub.f32 %v4267, %v4274
  %v4307 = vsub.f32 %v4267, %v4275
  %v4308 = vand.u32 2147483647, %v4276
  %v4309 = vand.u32 2147483647, %v4277
  %v4310 = vand.u32 2147483647, %v4278
  %v4311 = vand.u32 2147483647, %v4279
  %v4312 = vand.u32 2147483647, %v4280
  %v4313 = vand.u32 2147483647, %v4281
  %v4314 = vand.u32 2147483647, %v4282
  %v4315 = vand.u32 2147483647, %v4283
  %v4316 = vand.u32 2147483647, %v4284
  %v4317 = vand.u32 2147483647, %v4285
  %v4318 = vand.u32 2147483647, %v4286
  %v4319 = vand.u32 2147483647, %v4287
  %v4320 = vand.u32 2147483647, %v4288
  %v4321 = vand.u32 2147483647, %v4289
  %v4322 = vand.u32 2147483647, %v4290
  %v4323 = vand.u32 2147483647, %v4291
  %v4324 = vand.u32 2147483647, %v4292
  %v4325 = vand.u32 2147483647, %v4293
  %v4326 = vand.u32 2147483647, %v4294
  %v4327 = vand.u32 2147483647, %v4295
  %v4328 = vand.u32 2147483647, %v4296
  %v4329 = vand.u32 2147483647, %v4297
  %v4330 = vand.u32 2147483647, %v4298
  %v4331 = vand.u32 2147483647, %v4299
  %v4332 = vand.u32 2147483647, %v4300
  %v4333 = vand.u32 2147483647, %v4301
  %v4334 = vand.u32 2147483647, %v4302
  %v4335 = vand.u32 2147483647, %v4303
  %v4336 = vand.u32 2147483647, %v4304
  %v4337 = vand.u32 2147483647, %v4305
  %v4338 = vand.u32 2147483647, %v4306
  %v4339 = vand.u32 2147483647, %v4307
  %v4340 = vsub.f32 1.0, %v4308
  %v4341 = vsub.f32 1.0, %v4309
  %v4342 = vsub.f32 1.0, %v4310
  %v4343 = vsub.f32 1.0, %v4311
  %v4344 = vsub.f32 1.0, %v4312
  %v4345 = vsub.f32 1.0, %v4313
  %v4346 = vsub.f32 1.0, %v4314
  %v4347 = vsub.f32 1.0, %v4315
  %v4348 = vsub.f32 1.0, %v4316
  %v4349 = vsub.f32 1.0, %v4317
  %v4350 = vsub.f32 1.0, %v4318
  %v4351 = vsub.f32 1.0, %v4319
  %v4352 = vsub.f32 1.0, %v4320
  %v4353 = vsub.f32 1.0, %v4321
  %v4354 = vsub.f32 1.0, %v4322
  %v4355 = vsub.f32 1.0, %v4323
  %v4356 = vsub.f32 1.0, %v4324
  %v4357 = vsub.f32 1.0, %v4325
  %v4358 = vsub.f32 1.0, %v4326
  %v4359 = vsub.f32 1.0, %v4327
  %v4360 = vsub.f32 1.0, %v4328
  %v4361 = vsub.f32 1.0, %v4329
  %v4362 = vsub.f32 1.0, %v4330
  %v4363 = vsub.f32 1.0, %v4331
  %v4364 = vsub.f32 1.0, %v4332
  %v4365 = vsub.f32 1.0, %v4333
  %v4366 = vsub.f32 1.0, %v4334
  %v4367 = vsub.f32 1.0, %v4335
  %v4368 = vsub.f32 1.0, %v4336
  %v4369 = vsub.f32 1.0, %v4337
  %v4370 = vsub.f32 1.0, %v4338
  %v4371 = vsub.f32 1.0, %v4339
  %v4372 = vmax.f32 %v4340, 0.0
  %v4373 = vmax.f32 %v4341, 0.0
  %v4374 = vmax.f32 %v4342, 0.0
  %v4375 = vmax.f32 %v4343, 0.0
  %v4376 = vmax.f32 %v4344, 0.0
  %v4377 = vmax.f32 %v4345, 0.0
  %v4378 = vmax.f32 %v4346, 0.0
  %v4379 = vmax.f32 %v4347, 0.0
  %v4380 = vmax.f32 %v4348, 0.0
  %v4381 = vmax.f32 %v4349, 0.0
  %v4382 = vmax.f32 %v4350, 0.0
  %v4383 = vmax.f32 %v4351, 0.0
  %v4384 = vmax.f32 %v4352, 0.0
  %v4385 = vmax.f32 %v4353, 0.0
  %v4386 = vmax.f32 %v4354, 0.0
  %v4387 = vmax.f32 %v4355, 0.0
  %v4388 = vmax.f32 %v4356, 0.0
  %v4389 = vmax.f32 %v4357, 0.0
  %v4390 = vmax.f32 %v4358, 0.0
  %v4391 = vmax.f32 %v4359, 0.0
  %v4392 = vmax.f32 %v4360, 0.0
  %v4393 = vmax.f32 %v4361, 0.0
  %v4394 = vmax.f32 %v4362, 0.0
  %v4395 = vmax.f32 %v4363, 0.0
  %v4396 = vmax.f32 %v4364, 0.0
  %v4397 = vmax.f32 %v4365, 0.0
  %v4398 = vmax.f32 %v4366, 0.0
  %v4399 = vmax.f32 %v4367, 0.0
  %v4400 = vmax.f32 %v4368, 0.0
  %v4401 = vmax.f32 %v4369, 0.0
  %v4402 = vmax.f32 %v4370, 0.0
  %v4403 = vmax.f32 %v4371, 0.0
  %4404 = vset.pattern.permute.xlu0 1
  %4405 = vperm.xlu0 %4404, %v4172
  %v4406 = vpop.permute.xlu0 %4405
  %4408 = vset.pattern.permute.xlu0 1
  %4409 = vperm.xlu0 %4408, %v4173
  %v4410 = vpop.permute.xlu0 %4409
  %4412 = vset.pattern.permute.xlu0 1
  %4413 = vperm.xlu0 %4412, %v4174
  %v4414 = vpop.permute.xlu0 %4413
  %4416 = vset.pattern.permute.xlu0 1
  %4417 = vperm.xlu0 %4416, %v4175
  %v4418 = vpop.permute.xlu0 %4417
  %4420 = vset.pattern.permute.xlu0 1
  %4421 = vperm.xlu0 %4420, %v4176
  %v4422 = vpop.permute.xlu0 %4421
  %4424 = vset.pattern.permute.xlu0 1
  %4425 = vperm.xlu0 %4424, %v4177
  %v4426 = vpop.permute.xlu0 %4425
  %4428 = vset.pattern.permute.xlu0 1
  %4429 = vperm.xlu0 %4428, %v4178
  %v4430 = vpop.permute.xlu0 %4429
  %4432 = vset.pattern.permute.xlu0 1
  %4433 = vperm.xlu0 %4432, %v4179
  %v4434 = vpop.permute.xlu0 %4433
  %4436 = vset.pattern.permute.xlu0 1
  %4437 = vperm.xlu0 %4436, %v4180
  %v4438 = vpop.permute.xlu0 %4437
  %4440 = vset.pattern.permute.xlu0 1
  %4441 = vperm.xlu0 %4440, %v4181
  %v4442 = vpop.permute.xlu0 %4441
  %4444 = vset.pattern.permute.xlu0 1
  %4445 = vperm.xlu0 %4444, %v4182
  %v4446 = vpop.permute.xlu0 %4445
  %4448 = vset.pattern.permute.xlu0 1
  %4449 = vperm.xlu0 %4448, %v4183
  %v4450 = vpop.permute.xlu0 %4449
  %4452 = vset.pattern.permute.xlu0 1
  %4453 = vperm.xlu0 %4452, %v4184
  %v4454 = vpop.permute.xlu0 %4453
  %4456 = vset.pattern.permute.xlu0 1
  %4457 = vperm.xlu0 %4456, %v4185
  %v4458 = vpop.permute.xlu0 %4457
  %4460 = vset.pattern.permute.xlu0 1
  %4461 = vperm.xlu0 %4460, %v4186
  %v4462 = vpop.permute.xlu0 %4461
  %4464 = vset.pattern.permute.xlu0 1
  %4465 = vperm.xlu0 %4464, %v4187
  %v4466 = vpop.permute.xlu0 %4465
  %v4468 = vperm.slane %v4188, 1
  %v4469 = vperm.slane %v4188, 5
  %v4472 = vperm.slane %v4468, 1
  %v4473 = vperm.slane %v4469, 1
  %v4474 = vsub.f32 %v4406, %v4472
  %v4475 = vsub.f32 %v4406, %v4473
  %v4476 = vsub.f32 %v4410, %v4472
  %v4477 = vsub.f32 %v4410, %v4473
  %v4478 = vsub.f32 %v4414, %v4472
  %v4479 = vsub.f32 %v4414, %v4473
  %v4480 = vsub.f32 %v4418, %v4472
  %v4481 = vsub.f32 %v4418, %v4473
  %v4482 = vsub.f32 %v4422, %v4472
  %v4483 = vsub.f32 %v4422, %v4473
  %v4484 = vsub.f32 %v4426, %v4472
  %v4485 = vsub.f32 %v4426, %v4473
  %v4486 = vsub.f32 %v4430, %v4472
  %v4487 = vsub.f32 %v4430, %v4473
  %v4488 = vsub.f32 %v4434, %v4472
  %v4489 = vsub.f32 %v4434, %v4473
  %v4490 = vsub.f32 %v4438, %v4472
  %v4491 = vsub.f32 %v4438, %v4473
  %v4492 = vsub.f32 %v4442, %v4472
  %v4493 = vsub.f32 %v4442, %v4473
  %v4494 = vsub.f32 %v4446, %v4472
  %v4495 = vsub.f32 %v4446, %v4473
  %v4496 = vsub.f32 %v4450, %v4472
  %v4497 = vsub.f32 %v4450, %v4473
  %v4498 = vsub.f32 %v4454, %v4472
  %v4499 = vsub.f32 %v4454, %v4473
  %v4500 = vsub.f32 %v4458, %v4472
  %v4501 = vsub.f32 %v4458, %v4473
  %v4502 = vsub.f32 %v4462, %v4472
  %v4503 = vsub.f32 %v4462, %v4473
  %v4504 = vsub.f32 %v4466, %v4472
  %v4505 = vsub.f32 %v4466, %v4473
  %v4506 = vand.u32 2147483647, %v4474
  %v4507 = vand.u32 2147483647, %v4475
  %v4508 = vand.u32 2147483647, %v4476
  %v4509 = vand.u32 2147483647, %v4477
  %v4510 = vand.u32 2147483647, %v4478
  %v4511 = vand.u32 2147483647, %v4479
  %v4512 = vand.u32 2147483647, %v4480
  %v4513 = vand.u32 2147483647, %v4481
  %v4514 = vand.u32 2147483647, %v4482
  %v4515 = vand.u32 2147483647, %v4483
  %v4516 = vand.u32 2147483647, %v4484
  %v4517 = vand.u32 2147483647, %v4485
  %v4518 = vand.u32 2147483647, %v4486
  %v4519 = vand.u32 2147483647, %v4487
  %v4520 = vand.u32 2147483647, %v4488
  %v4521 = vand.u32 2147483647, %v4489
  %v4522 = vand.u32 2147483647, %v4490
  %v4523 = vand.u32 2147483647, %v4491
  %v4524 = vand.u32 2147483647, %v4492
  %v4525 = vand.u32 2147483647, %v4493
  %v4526 = vand.u32 2147483647, %v4494
  %v4527 = vand.u32 2147483647, %v4495
  %v4528 = vand.u32 2147483647, %v4496
  %v4529 = vand.u32 2147483647, %v4497
  %v4530 = vand.u32 2147483647, %v4498
  %v4531 = vand.u32 2147483647, %v4499
  %v4532 = vand.u32 2147483647, %v4500
  %v4533 = vand.u32 2147483647, %v4501
  %v4534 = vand.u32 2147483647, %v4502
  %v4535 = vand.u32 2147483647, %v4503
  %v4536 = vand.u32 2147483647, %v4504
  %v4537 = vand.u32 2147483647, %v4505
  %v4538 = vsub.f32 1.0, %v4506
  %v4539 = vsub.f32 1.0, %v4507
  %v4540 = vsub.f32 1.0, %v4508
  %v4541 = vsub.f32 1.0, %v4509
  %v4542 = vsub.f32 1.0, %v4510
  %v4543 = vsub.f32 1.0, %v4511
  %v4544 = vsub.f32 1.0, %v4512
  %v4545 = vsub.f32 1.0, %v4513
  %v4546 = vsub.f32 1.0, %v4514
  %v4547 = vsub.f32 1.0, %v4515
  %v4548 = vsub.f32 1.0, %v4516
  %v4549 = vsub.f32 1.0, %v4517
  %v4550 = vsub.f32 1.0, %v4518
  %v4551 = vsub.f32 1.0, %v4519
  %v4552 = vsub.f32 1.0, %v4520
  %v4553 = vsub.f32 1.0, %v4521
  %v4554 = vsub.f32 1.0, %v4522
  %v4555 = vsub.f32 1.0, %v4523
  %v4556 = vsub.f32 1.0, %v4524
  %v4557 = vsub.f32 1.0, %v4525
  %v4558 = vsub.f32 1.0, %v4526
  %v4559 = vsub.f32 1.0, %v4527
  %v4560 = vsub.f32 1.0, %v4528
  %v4561 = vsub.f32 1.0, %v4529
  %v4562 = vsub.f32 1.0, %v4530
  %v4563 = vsub.f32 1.0, %v4531
  %v4564 = vsub.f32 1.0, %v4532
  %v4565 = vsub.f32 1.0, %v4533
  %v4566 = vsub.f32 1.0, %v4534
  %v4567 = vsub.f32 1.0, %v4535
  %v4568 = vsub.f32 1.0, %v4536
  %v4569 = vsub.f32 1.0, %v4537
  %v4570 = vmax.f32 %v4538, 0.0
  %v4571 = vmax.f32 %v4539, 0.0
  %v4572 = vmax.f32 %v4540, 0.0
  %v4573 = vmax.f32 %v4541, 0.0
  %v4574 = vmax.f32 %v4542, 0.0
  %v4575 = vmax.f32 %v4543, 0.0
  %v4576 = vmax.f32 %v4544, 0.0
  %v4577 = vmax.f32 %v4545, 0.0
  %v4578 = vmax.f32 %v4546, 0.0
  %v4579 = vmax.f32 %v4547, 0.0
  %v4580 = vmax.f32 %v4548, 0.0
  %v4581 = vmax.f32 %v4549, 0.0
  %v4582 = vmax.f32 %v4550, 0.0
  %v4583 = vmax.f32 %v4551, 0.0
  %v4584 = vmax.f32 %v4552, 0.0
  %v4585 = vmax.f32 %v4553, 0.0
  %v4586 = vmax.f32 %v4554, 0.0
  %v4587 = vmax.f32 %v4555, 0.0
  %v4588 = vmax.f32 %v4556, 0.0
  %v4589 = vmax.f32 %v4557, 0.0
  %v4590 = vmax.f32 %v4558, 0.0
  %v4591 = vmax.f32 %v4559, 0.0
  %v4592 = vmax.f32 %v4560, 0.0
  %v4593 = vmax.f32 %v4561, 0.0
  %v4594 = vmax.f32 %v4562, 0.0
  %v4595 = vmax.f32 %v4563, 0.0
  %v4596 = vmax.f32 %v4564, 0.0
  %v4597 = vmax.f32 %v4565, 0.0
  %v4598 = vmax.f32 %v4566, 0.0
  %v4599 = vmax.f32 %v4567, 0.0
  %v4600 = vmax.f32 %v4568, 0.0
  %v4601 = vmax.f32 %v4569, 0.0
  %v4602 = vmul.f32 %v4372, %v4570
  %v4603 = vmul.f32 %v4373, %v4571
  %v4604 = vmul.f32 %v4374, %v4572
  %v4605 = vmul.f32 %v4375, %v4573
  %v4606 = vmul.f32 %v4376, %v4574
  %v4607 = vmul.f32 %v4377, %v4575
  %v4608 = vmul.f32 %v4378, %v4576
  %v4609 = vmul.f32 %v4379, %v4577
  %v4610 = vmul.f32 %v4380, %v4578
  %v4611 = vmul.f32 %v4381, %v4579
  %v4612 = vmul.f32 %v4382, %v4580
  %v4613 = vmul.f32 %v4383, %v4581
  %v4614 = vmul.f32 %v4384, %v4582
  %v4615 = vmul.f32 %v4385, %v4583
  %v4616 = vmul.f32 %v4386, %v4584
  %v4617 = vmul.f32 %v4387, %v4585
  %v4618 = vmul.f32 %v4388, %v4586
  %v4619 = vmul.f32 %v4389, %v4587
  %v4620 = vmul.f32 %v4390, %v4588
  %v4621 = vmul.f32 %v4391, %v4589
  %v4622 = vmul.f32 %v4392, %v4590
  %v4623 = vmul.f32 %v4393, %v4591
  %v4624 = vmul.f32 %v4394, %v4592
  %v4625 = vmul.f32 %v4395, %v4593
  %v4626 = vmul.f32 %v4396, %v4594
  %v4627 = vmul.f32 %v4397, %v4595
  %v4628 = vmul.f32 %v4398, %v4596
  %v4629 = vmul.f32 %v4399, %v4597
  %v4630 = vmul.f32 %v4400, %v4598
  %v4631 = vmul.f32 %v4401, %v4599
  %v4632 = vmul.f32 %v4402, %v4600
  %v4633 = vmul.f32 %v4403, %v4601
  %4634 = vset.pattern.permute.xlu0 2
  %4635 = vperm.xlu0 %4634, %v4172
  %v4636 = vpop.permute.xlu0 %4635
  %4638 = vset.pattern.permute.xlu0 2
  %4639 = vperm.xlu0 %4638, %v4173
  %v4640 = vpop.permute.xlu0 %4639
  %4642 = vset.pattern.permute.xlu0 2
  %4643 = vperm.xlu0 %4642, %v4174
  %v4644 = vpop.permute.xlu0 %4643
  %4646 = vset.pattern.permute.xlu0 2
  %4647 = vperm.xlu0 %4646, %v4175
  %v4648 = vpop.permute.xlu0 %4647
  %4650 = vset.pattern.permute.xlu0 2
  %4651 = vperm.xlu0 %4650, %v4176
  %v4652 = vpop.permute.xlu0 %4651
  %4654 = vset.pattern.permute.xlu0 2
  %4655 = vperm.xlu0 %4654, %v4177
  %v4656 = vpop.permute.xlu0 %4655
  %4658 = vset.pattern.permute.xlu0 2
  %4659 = vperm.xlu0 %4658, %v4178
  %v4660 = vpop.permute.xlu0 %4659
  %4662 = vset.pattern.permute.xlu0 2
  %4663 = vperm.xlu0 %4662, %v4179
  %v4664 = vpop.permute.xlu0 %4663
  %4666 = vset.pattern.permute.xlu0 2
  %4667 = vperm.xlu0 %4666, %v4180
  %v4668 = vpop.permute.xlu0 %4667
  %4670 = vset.pattern.permute.xlu0 2
  %4671 = vperm.xlu0 %4670, %v4181
  %v4672 = vpop.permute.xlu0 %4671
  %4674 = vset.pattern.permute.xlu0 2
  %4675 = vperm.xlu0 %4674, %v4182
  %v4676 = vpop.permute.xlu0 %4675
  %4678 = vset.pattern.permute.xlu0 2
  %4679 = vperm.xlu0 %4678, %v4183
  %v4680 = vpop.permute.xlu0 %4679
  %4682 = vset.pattern.permute.xlu0 2
  %4683 = vperm.xlu0 %4682, %v4184
  %v4684 = vpop.permute.xlu0 %4683
  %4686 = vset.pattern.permute.xlu0 2
  %4687 = vperm.xlu0 %4686, %v4185
  %v4688 = vpop.permute.xlu0 %4687
  %4690 = vset.pattern.permute.xlu0 2
  %4691 = vperm.xlu0 %4690, %v4186
  %v4692 = vpop.permute.xlu0 %4691
  %4694 = vset.pattern.permute.xlu0 2
  %4695 = vperm.xlu0 %4694, %v4187
  %v4696 = vpop.permute.xlu0 %4695
  %v4698 = vperm.slane %v4188, 2
  %v4699 = vperm.slane %v4188, 6
  %v4702 = vperm.slane %v4698, 2
  %v4703 = vperm.slane %v4699, 2
  %v4704 = vsub.f32 %v4636, %v4702
  %v4705 = vsub.f32 %v4636, %v4703
  %v4706 = vsub.f32 %v4640, %v4702
  %v4707 = vsub.f32 %v4640, %v4703
  %v4708 = vsub.f32 %v4644, %v4702
  %v4709 = vsub.f32 %v4644, %v4703
  %v4710 = vsub.f32 %v4648, %v4702
  %v4711 = vsub.f32 %v4648, %v4703
  %v4712 = vsub.f32 %v4652, %v4702
  %v4713 = vsub.f32 %v4652, %v4703
  %v4714 = vsub.f32 %v4656, %v4702
  %v4715 = vsub.f32 %v4656, %v4703
  %v4716 = vsub.f32 %v4660, %v4702
  %v4717 = vsub.f32 %v4660, %v4703
  %v4718 = vsub.f32 %v4664, %v4702
  %v4719 = vsub.f32 %v4664, %v4703
  %v4720 = vsub.f32 %v4668, %v4702
  %v4721 = vsub.f32 %v4668, %v4703
  %v4722 = vsub.f32 %v4672, %v4702
  %v4723 = vsub.f32 %v4672, %v4703
  %v4724 = vsub.f32 %v4676, %v4702
  %v4725 = vsub.f32 %v4676, %v4703
  %v4726 = vsub.f32 %v4680, %v4702
  %v4727 = vsub.f32 %v4680, %v4703
  %v4728 = vsub.f32 %v4684, %v4702
  %v4729 = vsub.f32 %v4684, %v4703
  %v4730 = vsub.f32 %v4688, %v4702
  %v4731 = vsub.f32 %v4688, %v4703
  %v4732 = vsub.f32 %v4692, %v4702
  %v4733 = vsub.f32 %v4692, %v4703
  %v4734 = vsub.f32 %v4696, %v4702
  %v4735 = vsub.f32 %v4696, %v4703
  %v4736 = vand.u32 2147483647, %v4704
  %v4737 = vand.u32 2147483647, %v4705
  %v4738 = vand.u32 2147483647, %v4706
  %v4739 = vand.u32 2147483647, %v4707
  %v4740 = vand.u32 2147483647, %v4708
  %v4741 = vand.u32 2147483647, %v4709
  %v4742 = vand.u32 2147483647, %v4710
  %v4743 = vand.u32 2147483647, %v4711
  %v4744 = vand.u32 2147483647, %v4712
  %v4745 = vand.u32 2147483647, %v4713
  %v4746 = vand.u32 2147483647, %v4714
  %v4747 = vand.u32 2147483647, %v4715
  %v4748 = vand.u32 2147483647, %v4716
  %v4749 = vand.u32 2147483647, %v4717
  %v4750 = vand.u32 2147483647, %v4718
  %v4751 = vand.u32 2147483647, %v4719
  %v4752 = vand.u32 2147483647, %v4720
  %v4753 = vand.u32 2147483647, %v4721
  %v4754 = vand.u32 2147483647, %v4722
  %v4755 = vand.u32 2147483647, %v4723
  %v4756 = vand.u32 2147483647, %v4724
  %v4757 = vand.u32 2147483647, %v4725
  %v4758 = vand.u32 2147483647, %v4726
  %v4759 = vand.u32 2147483647, %v4727
  %v4760 = vand.u32 2147483647, %v4728
  %v4761 = vand.u32 2147483647, %v4729
  %v4762 = vand.u32 2147483647, %v4730
  %v4763 = vand.u32 2147483647, %v4731
  %v4764 = vand.u32 2147483647, %v4732
  %v4765 = vand.u32 2147483647, %v4733
  %v4766 = vand.u32 2147483647, %v4734
  %v4767 = vand.u32 2147483647, %v4735
  %v4768 = vsub.f32 1.0, %v4736
  %v4769 = vsub.f32 1.0, %v4737
  %v4770 = vsub.f32 1.0, %v4738
  %v4771 = vsub.f32 1.0, %v4739
  %v4772 = vsub.f32 1.0, %v4740
  %v4773 = vsub.f32 1.0, %v4741
  %v4774 = vsub.f32 1.0, %v4742
  %v4775 = vsub.f32 1.0, %v4743
  %v4776 = vsub.f32 1.0, %v4744
  %v4777 = vsub.f32 1.0, %v4745
  %v4778 = vsub.f32 1.0, %v4746
  %v4779 = vsub.f32 1.0, %v4747
  %v4780 = vsub.f32 1.0, %v4748
  %v4781 = vsub.f32 1.0, %v4749
  %v4782 = vsub.f32 1.0, %v4750
  %v4783 = vsub.f32 1.0, %v4751
  %v4784 = vsub.f32 1.0, %v4752
  %v4785 = vsub.f32 1.0, %v4753
  %v4786 = vsub.f32 1.0, %v4754
  %v4787 = vsub.f32 1.0, %v4755
  %v4788 = vsub.f32 1.0, %v4756
  %v4789 = vsub.f32 1.0, %v4757
  %v4790 = vsub.f32 1.0, %v4758
  %v4791 = vsub.f32 1.0, %v4759
  %v4792 = vsub.f32 1.0, %v4760
  %v4793 = vsub.f32 1.0, %v4761
  %v4794 = vsub.f32 1.0, %v4762
  %v4795 = vsub.f32 1.0, %v4763
  %v4796 = vsub.f32 1.0, %v4764
  %v4797 = vsub.f32 1.0, %v4765
  %v4798 = vsub.f32 1.0, %v4766
  %v4799 = vsub.f32 1.0, %v4767
  %v4800 = vmax.f32 %v4768, 0.0
  %v4801 = vmax.f32 %v4769, 0.0
  %v4802 = vmax.f32 %v4770, 0.0
  %v4803 = vmax.f32 %v4771, 0.0
  %v4804 = vmax.f32 %v4772, 0.0
  %v4805 = vmax.f32 %v4773, 0.0
  %v4806 = vmax.f32 %v4774, 0.0
  %v4807 = vmax.f32 %v4775, 0.0
  %v4808 = vmax.f32 %v4776, 0.0
  %v4809 = vmax.f32 %v4777, 0.0
  %v4810 = vmax.f32 %v4778, 0.0
  %v4811 = vmax.f32 %v4779, 0.0
  %v4812 = vmax.f32 %v4780, 0.0
  %v4813 = vmax.f32 %v4781, 0.0
  %v4814 = vmax.f32 %v4782, 0.0
  %v4815 = vmax.f32 %v4783, 0.0
  %v4816 = vmax.f32 %v4784, 0.0
  %v4817 = vmax.f32 %v4785, 0.0
  %v4818 = vmax.f32 %v4786, 0.0
  %v4819 = vmax.f32 %v4787, 0.0
  %v4820 = vmax.f32 %v4788, 0.0
  %v4821 = vmax.f32 %v4789, 0.0
  %v4822 = vmax.f32 %v4790, 0.0
  %v4823 = vmax.f32 %v4791, 0.0
  %v4824 = vmax.f32 %v4792, 0.0
  %v4825 = vmax.f32 %v4793, 0.0
  %v4826 = vmax.f32 %v4794, 0.0
  %v4827 = vmax.f32 %v4795, 0.0
  %v4828 = vmax.f32 %v4796, 0.0
  %v4829 = vmax.f32 %v4797, 0.0
  %v4830 = vmax.f32 %v4798, 0.0
  %v4831 = vmax.f32 %v4799, 0.0
  %v4832 = vmul.f32 %v4602, %v4800
  %v4833 = vmul.f32 %v4603, %v4801
  %v4834 = vmul.f32 %v4604, %v4802
  %v4835 = vmul.f32 %v4605, %v4803
  %v4836 = vmul.f32 %v4606, %v4804
  %v4837 = vmul.f32 %v4607, %v4805
  %v4838 = vmul.f32 %v4608, %v4806
  %v4839 = vmul.f32 %v4609, %v4807
  %v4840 = vmul.f32 %v4610, %v4808
  %v4841 = vmul.f32 %v4611, %v4809
  %v4842 = vmul.f32 %v4612, %v4810
  %v4843 = vmul.f32 %v4613, %v4811
  %v4844 = vmul.f32 %v4614, %v4812
  %v4845 = vmul.f32 %v4615, %v4813
  %v4846 = vmul.f32 %v4616, %v4814
  %v4847 = vmul.f32 %v4617, %v4815
  %v4848 = vmul.f32 %v4618, %v4816
  %v4849 = vmul.f32 %v4619, %v4817
  %v4850 = vmul.f32 %v4620, %v4818
  %v4851 = vmul.f32 %v4621, %v4819
  %v4852 = vmul.f32 %v4622, %v4820
  %v4853 = vmul.f32 %v4623, %v4821
  %v4854 = vmul.f32 %v4624, %v4822
  %v4855 = vmul.f32 %v4625, %v4823
  %v4856 = vmul.f32 %v4626, %v4824
  %v4857 = vmul.f32 %v4627, %v4825
  %v4858 = vmul.f32 %v4628, %v4826
  %v4859 = vmul.f32 %v4629, %v4827
  %v4860 = vmul.f32 %v4630, %v4828
  %v4861 = vmul.f32 %v4631, %v4829
  %v4862 = vmul.f32 %v4632, %v4830
  %v4863 = vmul.f32 %v4633, %v4831
  %v4864 = vld [vmem:[%s2] sm:$0xff]
  %vm4865 = vcmask 1022976
  %v4867 = vsel %vm4865, %v4864, 0
  %vm4869 = vcmask 1044480
  %v4871 = vsel %vm4869, %v4862, 0
  %v4874 = vsel %vm4869, %v4863, 0
  %4876 = vmatpush.msra.mxu0 %v4871
  %4877 = vmatpush.msra.mxu0 %v4860
  %4878 = vmatpush.msra.mxu0 %v4858
  %4879 = vmatpush.msra.mxu0 %v4856
  %4880 = vmatpush.msra.mxu0 %v4854
  %4881 = vmatpush.msra.mxu0 %v4852
  %4882 = vmatpush.msra.mxu0 %v4850
  %4883 = vmatpush.msra.mxu0 %v4848
  %4884 = vmatpush.msra.mxu0 %v4846
  %4885 = vmatpush.msra.mxu0 %v4844
  %4886 = vmatpush.msra.mxu0 %v4842
  %4887 = vmatpush.msra.mxu0 %v4840
  %4888 = vmatpush.msra.mxu0 %v4838
  %4889 = vmatpush.msra.mxu0 %v4836
  %4890 = vmatpush.msra.mxu0 %v4834
  %4891 = vmatpush.msra.mxu0 %v4832
  %4892 = vmatmul.f32.gmra.mxu0 %v4867
  %v4893 = vpop.f32.mrf.mxu0
  %v4894 = vadd.f32 0.0, %v4893
  %4895 = vdwg.mxu0
  %4896 = vmatpush.msra.mxu0 %v4874
  %4897 = vmatpush.msra.mxu0 %v4861
  %4898 = vmatpush.msra.mxu0 %v4859
  %4899 = vmatpush.msra.mxu0 %v4857
  %4900 = vmatpush.msra.mxu0 %v4855
  %4901 = vmatpush.msra.mxu0 %v4853
  %4902 = vmatpush.msra.mxu0 %v4851
  %4903 = vmatpush.msra.mxu0 %v4849
  %4904 = vmatpush.msra.mxu0 %v4847
  %4905 = vmatpush.msra.mxu0 %v4845
  %4906 = vmatpush.msra.mxu0 %v4843
  %4907 = vmatpush.msra.mxu0 %v4841
  %4908 = vmatpush.msra.mxu0 %v4839
  %4909 = vmatpush.msra.mxu0 %v4837
  %4910 = vmatpush.msra.mxu0 %v4835
  %4911 = vmatpush.msra.mxu0 %v4833
  %4912 = vmatmul.f32.gmra.mxu0 %v4867
  %v4913 = vpop.f32.mrf.mxu0
  %v4914 = vadd.f32 0.0, %v4913
  %4915 = vdwg.mxu0
  %4916 = vst [vmem:[%s7 + $0x10] sm:$0xff] %v4894
  %4917 = vst [vmem:[%s7 + $0x18] sm:$0xff] %v4914
  %v4918 = vld [vmem:[%s6] sm:$0xff]
  %v4919 = vld [vmem:[%s6 + $0x8] sm:$0xff]
  %v4920 = vld [vmem:[%s6 + $0x10] sm:$0xff]
  %v4921 = vld [vmem:[%s6 + $0x18] sm:$0x7]
  %v4922 = vmul.f32 %v28, 2.0
  %4924 = vset.pattern.permute.xlu0 0
  %4925 = vperm.xlu0 %4924, %v4918
  %v4926 = vpop.permute.xlu0 %4925
  %4929 = vset.pattern.permute.xlu0 0
  %4930 = vperm.xlu0 %4929, %v4919
  %v4931 = vpop.permute.xlu0 %4930
  %4934 = vset.pattern.permute.xlu0 0
  %4935 = vperm.xlu0 %4934, %v4920
  %v4936 = vpop.permute.xlu0 %4935
  %4939 = vset.pattern.permute.xlu0 0
  %4940 = vperm.xlu0 %4939, %v4921
  %v4941 = vpop.permute.xlu0 %4940
  %v4944 = vperm.slane %v4922, 0
  %v4945 = vperm.slane %v4922, 4
  %v4948 = vperm.slane %v4944, 0
  %v4949 = vperm.slane %v4945, 0
  %v4950 = vsub.f32 %v4926, %v4948
  %v4951 = vsub.f32 %v4926, %v4949
  %v4952 = vsub.f32 %v4931, %v4948
  %v4953 = vsub.f32 %v4931, %v4949
  %v4954 = vsub.f32 %v4936, %v4948
  %v4955 = vsub.f32 %v4936, %v4949
  %v4956 = vsub.f32 %v4941, %v4948
  %v4957 = vsub.f32 %v4941, %v4949
  %v4958 = vand.u32 2147483647, %v4950
  %v4959 = vand.u32 2147483647, %v4951
  %v4960 = vand.u32 2147483647, %v4952
  %v4961 = vand.u32 2147483647, %v4953
  %v4962 = vand.u32 2147483647, %v4954
  %v4963 = vand.u32 2147483647, %v4955
  %v4964 = vand.u32 2147483647, %v4956
  %v4965 = vand.u32 2147483647, %v4957
  %v4966 = vsub.f32 1.0, %v4958
  %v4967 = vsub.f32 1.0, %v4959
  %v4968 = vsub.f32 1.0, %v4960
  %v4969 = vsub.f32 1.0, %v4961
  %v4970 = vsub.f32 1.0, %v4962
  %v4971 = vsub.f32 1.0, %v4963
  %v4972 = vsub.f32 1.0, %v4964
  %v4973 = vsub.f32 1.0, %v4965
  %v4974 = vmax.f32 %v4966, 0.0
  %v4975 = vmax.f32 %v4967, 0.0
  %v4976 = vmax.f32 %v4968, 0.0
  %v4977 = vmax.f32 %v4969, 0.0
  %v4978 = vmax.f32 %v4970, 0.0
  %v4979 = vmax.f32 %v4971, 0.0
  %v4980 = vmax.f32 %v4972, 0.0
  %v4981 = vmax.f32 %v4973, 0.0
  %4982 = vset.pattern.permute.xlu0 1
  %4983 = vperm.xlu0 %4982, %v4918
  %v4984 = vpop.permute.xlu0 %4983
  %4986 = vset.pattern.permute.xlu0 1
  %4987 = vperm.xlu0 %4986, %v4919
  %v4988 = vpop.permute.xlu0 %4987
  %4990 = vset.pattern.permute.xlu0 1
  %4991 = vperm.xlu0 %4990, %v4920
  %v4992 = vpop.permute.xlu0 %4991
  %4994 = vset.pattern.permute.xlu0 1
  %4995 = vperm.xlu0 %4994, %v4921
  %v4996 = vpop.permute.xlu0 %4995
  %v4998 = vperm.slane %v4922, 1
  %v4999 = vperm.slane %v4922, 5
  %v5002 = vperm.slane %v4998, 1
  %v5003 = vperm.slane %v4999, 1
  %v5004 = vsub.f32 %v4984, %v5002
  %v5005 = vsub.f32 %v4984, %v5003
  %v5006 = vsub.f32 %v4988, %v5002
  %v5007 = vsub.f32 %v4988, %v5003
  %v5008 = vsub.f32 %v4992, %v5002
  %v5009 = vsub.f32 %v4992, %v5003
  %v5010 = vsub.f32 %v4996, %v5002
  %v5011 = vsub.f32 %v4996, %v5003
  %v5012 = vand.u32 2147483647, %v5004
  %v5013 = vand.u32 2147483647, %v5005
  %v5014 = vand.u32 2147483647, %v5006
  %v5015 = vand.u32 2147483647, %v5007
  %v5016 = vand.u32 2147483647, %v5008
  %v5017 = vand.u32 2147483647, %v5009
  %v5018 = vand.u32 2147483647, %v5010
  %v5019 = vand.u32 2147483647, %v5011
  %v5020 = vsub.f32 1.0, %v5012
  %v5021 = vsub.f32 1.0, %v5013
  %v5022 = vsub.f32 1.0, %v5014
  %v5023 = vsub.f32 1.0, %v5015
  %v5024 = vsub.f32 1.0, %v5016
  %v5025 = vsub.f32 1.0, %v5017
  %v5026 = vsub.f32 1.0, %v5018
  %v5027 = vsub.f32 1.0, %v5019
  %v5028 = vmax.f32 %v5020, 0.0
  %v5029 = vmax.f32 %v5021, 0.0
  %v5030 = vmax.f32 %v5022, 0.0
  %v5031 = vmax.f32 %v5023, 0.0
  %v5032 = vmax.f32 %v5024, 0.0
  %v5033 = vmax.f32 %v5025, 0.0
  %v5034 = vmax.f32 %v5026, 0.0
  %v5035 = vmax.f32 %v5027, 0.0
  %v5036 = vmul.f32 %v4974, %v5028
  %v5037 = vmul.f32 %v4975, %v5029
  %v5038 = vmul.f32 %v4976, %v5030
  %v5039 = vmul.f32 %v4977, %v5031
  %v5040 = vmul.f32 %v4978, %v5032
  %v5041 = vmul.f32 %v4979, %v5033
  %v5042 = vmul.f32 %v4980, %v5034
  %v5043 = vmul.f32 %v4981, %v5035
  %5044 = vset.pattern.permute.xlu0 2
  %5045 = vperm.xlu0 %5044, %v4918
  %v5046 = vpop.permute.xlu0 %5045
  %5048 = vset.pattern.permute.xlu0 2
  %5049 = vperm.xlu0 %5048, %v4919
  %v5050 = vpop.permute.xlu0 %5049
  %5052 = vset.pattern.permute.xlu0 2
  %5053 = vperm.xlu0 %5052, %v4920
  %v5054 = vpop.permute.xlu0 %5053
  %5056 = vset.pattern.permute.xlu0 2
  %5057 = vperm.xlu0 %5056, %v4921
  %v5058 = vpop.permute.xlu0 %5057
  %v5060 = vperm.slane %v4922, 2
  %v5061 = vperm.slane %v4922, 6
  %v5064 = vperm.slane %v5060, 2
  %v5065 = vperm.slane %v5061, 2
  %v5066 = vsub.f32 %v5046, %v5064
  %v5067 = vsub.f32 %v5046, %v5065
  %v5068 = vsub.f32 %v5050, %v5064
  %v5069 = vsub.f32 %v5050, %v5065
  %v5070 = vsub.f32 %v5054, %v5064
  %v5071 = vsub.f32 %v5054, %v5065
  %v5072 = vsub.f32 %v5058, %v5064
  %v5073 = vsub.f32 %v5058, %v5065
  %v5074 = vand.u32 2147483647, %v5066
  %v5075 = vand.u32 2147483647, %v5067
  %v5076 = vand.u32 2147483647, %v5068
  %v5077 = vand.u32 2147483647, %v5069
  %v5078 = vand.u32 2147483647, %v5070
  %v5079 = vand.u32 2147483647, %v5071
  %v5080 = vand.u32 2147483647, %v5072
  %v5081 = vand.u32 2147483647, %v5073
  %v5082 = vsub.f32 1.0, %v5074
  %v5083 = vsub.f32 1.0, %v5075
  %v5084 = vsub.f32 1.0, %v5076
  %v5085 = vsub.f32 1.0, %v5077
  %v5086 = vsub.f32 1.0, %v5078
  %v5087 = vsub.f32 1.0, %v5079
  %v5088 = vsub.f32 1.0, %v5080
  %v5089 = vsub.f32 1.0, %v5081
  %v5090 = vmax.f32 %v5082, 0.0
  %v5091 = vmax.f32 %v5083, 0.0
  %v5092 = vmax.f32 %v5084, 0.0
  %v5093 = vmax.f32 %v5085, 0.0
  %v5094 = vmax.f32 %v5086, 0.0
  %v5095 = vmax.f32 %v5087, 0.0
  %v5096 = vmax.f32 %v5088, 0.0
  %v5097 = vmax.f32 %v5089, 0.0
  %v5098 = vmul.f32 %v5036, %v5090
  %v5099 = vmul.f32 %v5037, %v5091
  %v5100 = vmul.f32 %v5038, %v5092
  %v5101 = vmul.f32 %v5039, %v5093
  %v5102 = vmul.f32 %v5040, %v5094
  %v5103 = vmul.f32 %v5041, %v5095
  %v5104 = vmul.f32 %v5042, %v5096
  %v5105 = vmul.f32 %v5043, %v5097
  %v5106 = vld [vmem:[%s3] sm:$0xff]
  %vm5107 = vcmask 220160
  %v5109 = vsel %vm5107, %v5106, 0
  %vm5111 = vcmask 1042432
  %v5113 = vsel %vm5111, %v5104, 0
  %v5116 = vsel %vm5111, %v5105, 0
  %5118 = vmatpush.msra.mxu0 0.0
  %5119 = vmatpush.msra.mxu0 0.0
  %5120 = vmatpush.msra.mxu0 0.0
  %5121 = vmatpush.msra.mxu0 0.0
  %5122 = vmatpush.msra.mxu0 0.0
  %5123 = vmatpush.msra.mxu0 0.0
  %5124 = vmatpush.msra.mxu0 0.0
  %5125 = vmatpush.msra.mxu0 0.0
  %5126 = vmatpush.msra.mxu0 0.0
  %5127 = vmatpush.msra.mxu0 0.0
  %5128 = vmatpush.msra.mxu0 0.0
  %5129 = vmatpush.msra.mxu0 0.0
  %5130 = vmatpush.msra.mxu0 %v5113
  %5131 = vmatpush.msra.mxu0 %v5102
  %5132 = vmatpush.msra.mxu0 %v5100
  %5133 = vmatpush.msra.mxu0 %v5098
  %5134 = vmatmul.f32.gmra.mxu0 %v5109
  %v5135 = vpop.f32.mrf.mxu0
  %v5136 = vadd.f32 0.0, %v5135
  %5137 = vdwg.mxu0
  %5138 = vmatpush.msra.mxu0 0.0
  %5139 = vmatpush.msra.mxu0 0.0
  %5140 = vmatpush.msra.mxu0 0.0
  %5141 = vmatpush.msra.mxu0 0.0
  %5142 = vmatpush.msra.mxu0 0.0
  %5143 = vmatpush.msra.mxu0 0.0
  %5144 = vmatpush.msra.mxu0 0.0
  %5145 = vmatpush.msra.mxu0 0.0
  %5146 = vmatpush.msra.mxu0 0.0
  %5147 = vmatpush.msra.mxu0 0.0
  %5148 = vmatpush.msra.mxu0 0.0
  %5149 = vmatpush.msra.mxu0 0.0
  %5150 = vmatpush.msra.mxu0 %v5116
  %5151 = vmatpush.msra.mxu0 %v5103
  %5152 = vmatpush.msra.mxu0 %v5101
  %5153 = vmatpush.msra.mxu0 %v5099
  %5154 = vmatmul.f32.gmra.mxu0 %v5109
  %v5155 = vpop.f32.mrf.mxu0
  %v5156 = vadd.f32 0.0, %v5155
  %5157 = vdwg.mxu0
  %5158 = vst [vmem:[%s7 + $0x20] sm:$0xff] %v5136
  %5159 = vst [vmem:[%s7 + $0x28] sm:$0xff] %v5156
  // Predicated region
  $region30: #{voxel_features.1} parent=0 // pred_check
    _
  $region31: #{voxel_features.1} parent=0 // pred_check_branch
    %5161 = sbr.rel (0) target = $region33
  $region32: #{voxel_features.1} parent=0 // pred_region
    _
  $region33: #{voxel_features.1} parent=0 // pred_fallthru
    _
  // Predicated region
  $region34: #{voxel_features.1} parent=0 // pred_check
    _
  $region35: #{voxel_features.1} parent=0 // pred_check_branch
    %5163 = sbr.rel (0) target = $region37
  $region36: #{voxel_features.1} parent=0 // pred_region
    _
  $region37: #{voxel_features.1} parent=0 // pred_fallthru
    _

</llo_original>
